<compile_context>
chip_gen: v7x
topology: tpu7x:2x2x1
jax: 0.10.0
libtpu: 0.0.40
codegen_flags: <defaults>
</compile_context>

<pallas_src>
import functools

import jax
import jax.numpy as jnp
from jax import lax
from jax.experimental import pallas as pl
from jax.experimental.pallas import tpu as pltpu


def _round_up(x, m):
    return (x + m - 1) // m * m


# ----------------------------------------------------------------------------
# Kernel
# ----------------------------------------------------------------------------
def _cbow_mlp_kernel(prem_ref, hypo_ref,          # SMEM (scalar prefetch): flat int32 ids
                     emb_ref,                     # (Vp, Ep) f32   embedding table
                     w1p_ref, w1h_ref, b1_ref,    # (Ep,Hp) bf16, (Ep,Hp) bf16, (1,Hp) f32
                     w2_ref, b2_ref,              # (Hp,Hp) bf16, (1,Hp) f32
                     w3_ref, b3_ref,              # (Hp,Lp) bf16, (1,Lp) f32
                     out_ref,                     # (TB, Lp) f32
                     *, seq_len, block_b, num_labels):
    base = pl.program_id(0) * block_b
    inv_s = jnp.float32(1.0 / seq_len)
    ep = emb_ref.shape[1]

    # ---- embedding gather + mean (per example in this batch block) ----------
    prem_rows = []
    hypo_rows = []
    for b in range(block_b):                      # small static unroll (block_b == 8)
        row = base + b

        def body(s, accs, _row=row):
            acc_p, acc_h = accs
            tok_p = prem_ref[_row * seq_len + s]
            tok_h = hypo_ref[_row * seq_len + s]
            acc_p = acc_p + emb_ref[pl.ds(tok_p, 1), :].astype(jnp.float32)
            acc_h = acc_h + emb_ref[pl.ds(tok_h, 1), :].astype(jnp.float32)
            return acc_p, acc_h

        zero = jnp.zeros((1, ep), jnp.float32)
        acc_p, acc_h = lax.fori_loop(0, seq_len, body, (zero, zero), unroll=True)
        prem_rows.append(acc_p * inv_s)
        hypo_rows.append(acc_h * inv_s)

    emb_prem = jnp.concatenate(prem_rows, axis=0)     # (TB, Ep) f32
    emb_hypo = jnp.concatenate(hypo_rows, axis=0)     # (TB, Ep) f32

    # TODO(synk): dropout(p=0.5) is identity here (eval / inference mode);
    # training mode would mask with pltpu.prng_seed + pltpu.prng_random_bits.

    # ---- 3-layer MLP: bf16 MXU operands, f32 accumulation & elementwise -----
    # linear_1 on concat([prem, hypo]) == prem @ W1[:E] + hypo @ W1[E:]
    h1 = (jnp.dot(emb_prem.astype(jnp.bfloat16), w1p_ref[...],
                  preferred_element_type=jnp.float32)
          + jnp.dot(emb_hypo.astype(jnp.bfloat16), w1h_ref[...],
                    preferred_element_type=jnp.float32)
          + b1_ref[...])
    h1 = jnp.maximum(h1, 0.0)

    h2 = jnp.dot(h1.astype(jnp.bfloat16), w2_ref[...],
                 preferred_element_type=jnp.float32) + b2_ref[...]
    h2 = jnp.maximum(h2, 0.0)

    logits = jnp.dot(h2.astype(jnp.bfloat16), w3_ref[...],
                     preferred_element_type=jnp.float32) + b3_ref[...]

    # ---- masked log_softmax over the (lane-padded) label dim ----------------
    lane = lax.broadcasted_iota(jnp.int32, logits.shape, 1)
    logits = jnp.where(lane < num_labels, logits, -jnp.inf)
    m = jnp.max(logits, axis=-1, keepdims=True)
    lse = m + jnp.log(jnp.sum(jnp.exp(logits - m), axis=-1, keepdims=True))
    out_ref[...] = logits - lse


# ----------------------------------------------------------------------------
# Host-side parameter prep (done once, outside the hot path)
# ----------------------------------------------------------------------------
def prepare_params(params):
    """Pad to lane-friendly shapes and cast MXU weights to bf16."""
    emb_w, w1, b1, w2, b2, w3, b3 = params
    V, E = emb_w.shape
    H = w2.shape[0]
    L = w3.shape[1]
    Vp = _round_up(V, 8)
    Ep = _round_up(E, 128)
    Hp = _round_up(H, 128)
    Lp = _round_up(L, 128)

    def pad2(x, r, c):
        return jnp.pad(x, ((0, r - x.shape[0]), (0, c - x.shape[1])))

    return dict(
        emb=pad2(emb_w, Vp, Ep).astype(jnp.float32),     # f32: safe dynamic row gather
        w1p=pad2(w1[:E], Ep, Hp).astype(jnp.bfloat16),
        w1h=pad2(w1[E:], Ep, Hp).astype(jnp.bfloat16),
        b1=pad2(b1.reshape(1, -1), 1, Hp).astype(jnp.float32),
        w2=pad2(w2, Hp, Hp).astype(jnp.bfloat16),
        b2=pad2(b2.reshape(1, -1), 1, Hp).astype(jnp.float32),
        w3=pad2(w3, Hp, Lp).astype(jnp.bfloat16),
        b3=pad2(b3.reshape(1, -1), 1, Lp).astype(jnp.float32),
        dims=(V, E, H, L),
    )


# ----------------------------------------------------------------------------
# Forward wrapper
# ----------------------------------------------------------------------------
def cbow_mlp_forward(prem, hypo, kp, *, block_b=8):
    V, E, H, L = kp["dims"]
    emb, w1p, w1h, b1 = kp["emb"], kp["w1p"], kp["w1h"], kp["b1"]
    w2, b2, w3, b3 = kp["w2"], kp["b2"], kp["w3"], kp["b3"]
    Vp, Ep = emb.shape
    Hp = w2.shape[0]
    Lp = w3.shape[1]
    B, S = prem.shape
    Bp = _round_up(B, block_b)

    # flat 1-D int32 ids -> compact SMEM layout for scalar prefetch
    def flat_ids(x):
        x = x.astype(jnp.int32)
        x = jnp.pad(x, ((0, Bp - B), (0, 0)))        # pad batch rows with token 0
        return x.reshape(-1)

    prem_f = flat_ids(prem)
    hypo_f = flat_ids(hypo)

    const = lambda i, *_: (0, 0)                     # weights resident across grid steps
    kernel = functools.partial(_cbow_mlp_kernel, seq_len=S,
                               block_b=block_b, num_labels=L)

    flops = 2 * Bp * (2 * Ep * Hp + Hp * Hp + Hp * Lp) + 2 * Bp * S * Ep
    bytes_accessed = (emb.size * 4
                      + (w1p.size + w1h.size + w2.size + w3.size) * 2
                      + (b1.size + b2.size + b3.size) * 4
                      + (prem_f.size + hypo_f.size) * 4
                      + Bp * Lp * 4)
    cost = pl.CostEstimate(flops=flops, transcendentals=Bp * Lp,
                           bytes_accessed=bytes_accessed)

    out = pl.pallas_call(
        kernel,
        out_shape=jax.ShapeDtypeStruct((Bp, Lp), jnp.float32),
        grid_spec=pltpu.PrefetchScalarGridSpec(
            num_scalar_prefetch=2,                   # prem ids, hypo ids -> SMEM
            grid=(Bp // block_b,),
            in_specs=[
                pl.BlockSpec((Vp, Ep), const),       # embedding table
                pl.BlockSpec((Ep, Hp), const),       # w1 (prem half)
                pl.BlockSpec((Ep, Hp), const),       # w1 (hypo half)
                pl.BlockSpec((1, Hp), const),        # b1
                pl.BlockSpec((Hp, Hp), const),       # w2
                pl.BlockSpec((1, Hp), const),        # b2
                pl.BlockSpec((Hp, Lp), const),       # w3
                pl.BlockSpec((1, Lp), const),        # b3
            ],
            out_specs=pl.BlockSpec((block_b, Lp), lambda i, *_: (i, 0)),
        ),
        compiler_params=pltpu.CompilerParams(
            dimension_semantics=("parallel",),       # split batch blocks across TCs (v7x)
            vmem_limit_bytes=32 * 1024 * 1024,
        ),
        cost_estimate=cost,
    )(prem_f, hypo_f, emb, w1p, w1h, b1, w2, b2, w3, b3)

    return out[:B, :L]


# ----------------------------------------------------------------------------
# Init (matches torch init_weights) + pure-JAX reference
# ----------------------------------------------------------------------------
def init_params(key, vocab_size, embedding_dim, hidden_dim, num_labels):
    initrange = 0.1
    k_emb, k1, k2, k3 = jax.random.split(key, 4)
    # torch init_weights fills the whole embedding (incl. padding_idx row)
    emb_w = jax.random.uniform(k_emb, (vocab_size, embedding_dim),
                               jnp.float32, -initrange, initrange)
    w1 = jax.random.uniform(k1, (2 * embedding_dim, hidden_dim),
                            jnp.float32, -initrange, initrange)
    b1 = jnp.zeros((hidden_dim,), jnp.float32)
    w2 = jax.random.uniform(k2, (hidden_dim, hidden_dim),
                            jnp.float32, -initrange, initrange)
    b2 = jnp.zeros((hidden_dim,), jnp.float32)
    w3 = jax.random.uniform(k3, (hidden_dim, num_labels),
                            jnp.float32, -initrange, initrange)
    b3 = jnp.zeros((num_labels,), jnp.float32)
    return (emb_w, w1, b1, w2, b2, w3, b3)


def reference_forward(prem, hypo, params):
    emb_w, w1, b1, w2, b2, w3, b3 = params
    ep = emb_w[prem].mean(axis=1)
    eh = emb_w[hypo].mean(axis=1)
    x = jnp.concatenate([ep, eh], axis=1)
    h1 = jax.nn.relu(x @ w1 + b1)
    h2 = jax.nn.relu(h1 @ w2 + b2)
    logits = h2 @ w3 + b3
    return jax.nn.log_softmax(logits, axis=-1)


if __name__ == "__main__":
    VOCAB, EMB, HID, LABELS = 64, 32, 32, 4
    B, S = 8, 10

    key = jax.random.PRNGKey(0)
    k_params, k_prem, k_hypo = jax.random.split(key, 3)
    params = init_params(k_params, VOCAB, EMB, HID, LABELS)
    kernel_params = prepare_params(params)

    prem = jax.random.randint(k_prem, (B, S), 0, VOCAB, dtype=jnp.int32)
    hypo = jax.random.randint(k_hypo, (B, S), 0, VOCAB, dtype=jnp.int32)

    out = cbow_mlp_forward(prem, hypo, kernel_params)
    out = jax.block_until_ready(out)

    ref = reference_forward(prem, hypo, params)

    assert out.shape == (B, LABELS)
    # log_softmax rows must exponentiate to 1
    assert jnp.allclose(jnp.exp(out).sum(axis=-1), 1.0, atol=1e-5)
    # match the pure-JAX reference (bf16 weights => loose-ish tolerance)
    assert jnp.allclose(out, ref, atol=5e-2, rtol=5e-2)
    print("KERNEL_OK")
</pallas_src>

<mosaic_0001>
module attributes {stable_mosaic.version = 11 : i64} {
  func.func @_cbow_mlp_kernel(%arg0: i32, %arg1: memref<80xi32, #tpu.memory_space<smem>>, %arg2: memref<80xi32, #tpu.memory_space<smem>>, %arg3: memref<64x128xf32, #tpu.memory_space<vmem>>, %arg4: memref<128x128xbf16, #tpu.memory_space<vmem>>, %arg5: memref<128x128xbf16, #tpu.memory_space<vmem>>, %arg6: memref<1x128xf32, #tpu.memory_space<vmem>>, %arg7: memref<128x128xbf16, #tpu.memory_space<vmem>>, %arg8: memref<1x128xf32, #tpu.memory_space<vmem>>, %arg9: memref<128x128xbf16, #tpu.memory_space<vmem>>, %arg10: memref<1x128xf32, #tpu.memory_space<vmem>>, %arg11: memref<8x128xf32, #tpu.memory_space<vmem>>) attributes {dimension_semantics = [#tpu.dimension_semantics<parallel>], iteration_bounds = array<i64: 1>, scalar_prefetch = 2 : i64, scratch_operands = 0 : i64, tpu.core_type = #tpu.core_type<tc>, window_params = [{pipeline_mode = #tpu.pipeline_mode<synchronous>, transform_indices = @transform_0, window_bounds = array<i64: 64, 128>}, {pipeline_mode = #tpu.pipeline_mode<synchronous>, transform_indices = @transform_1, window_bounds = array<i64: 128, 128>}, {pipeline_mode = #tpu.pipeline_mode<synchronous>, transform_indices = @transform_2, window_bounds = array<i64: 128, 128>}, {pipeline_mode = #tpu.pipeline_mode<synchronous>, transform_indices = @transform_3, window_bounds = array<i64: 1, 128>}, {pipeline_mode = #tpu.pipeline_mode<synchronous>, transform_indices = @transform_4, window_bounds = array<i64: 128, 128>}, {pipeline_mode = #tpu.pipeline_mode<synchronous>, transform_indices = @transform_5, window_bounds = array<i64: 1, 128>}, {pipeline_mode = #tpu.pipeline_mode<synchronous>, transform_indices = @transform_6, window_bounds = array<i64: 128, 128>}, {pipeline_mode = #tpu.pipeline_mode<synchronous>, transform_indices = @transform_7, window_bounds = array<i64: 1, 128>}, {transform_indices = @transform_8, window_bounds = array<i64: 8, 128>}]} {
    %c8_i32 = arith.constant 8 : i32
    %0 = arith.muli %arg0, %c8_i32 : i32
    %c0_i32 = arith.constant 0 : i32
    %1 = arith.addi %0, %c0_i32 : i32
    %cst = arith.constant 0.000000e+00 : f32
    %2 = vector.broadcast %cst : f32 to vector<1x128xf32>
    %c0_i32_0 = arith.constant 0 : i32
    %c10_i32 = arith.constant 10 : i32
    %3 = arith.muli %1, %c10_i32 : i32
    %4 = arith.addi %3, %c0_i32_0 : i32
    %5 = arith.index_cast %4 : i32 to index
    %6 = memref.load %arg1[%5] : memref<80xi32, #tpu.memory_space<smem>>
    %c10_i32_1 = arith.constant 10 : i32
    %7 = arith.muli %1, %c10_i32_1 : i32
    %8 = arith.addi %7, %c0_i32_0 : i32
    %9 = arith.index_cast %8 : i32 to index
    %10 = memref.load %arg2[%9] : memref<80xi32, #tpu.memory_space<smem>>
    %11 = arith.index_cast %6 : i32 to index
    %c0 = arith.constant 0 : index
    %12 = vector.load %arg3[%11, %c0] : memref<64x128xf32, #tpu.memory_space<vmem>>, vector<1x128xf32>
    %13 = arith.addf %2, %12 : vector<1x128xf32>
    %14 = arith.index_cast %10 : i32 to index
    %c0_2 = arith.constant 0 : index
    %15 = vector.load %arg3[%14, %c0_2] : memref<64x128xf32, #tpu.memory_space<vmem>>, vector<1x128xf32>
    %16 = arith.addf %2, %15 : vector<1x128xf32>
    %c1_i32 = arith.constant 1 : i32
    %c10_i32_3 = arith.constant 10 : i32
    %17 = arith.muli %1, %c10_i32_3 : i32
    %18 = arith.addi %17, %c1_i32 : i32
    %19 = arith.index_cast %18 : i32 to index
    %20 = memref.load %arg1[%19] : memref<80xi32, #tpu.memory_space<smem>>
    %c10_i32_4 = arith.constant 10 : i32
    %21 = arith.muli %1, %c10_i32_4 : i32
    %22 = arith.addi %21, %c1_i32 : i32
    %23 = arith.index_cast %22 : i32 to index
    %24 = memref.load %arg2[%23] : memref<80xi32, #tpu.memory_space<smem>>
    %25 = arith.index_cast %20 : i32 to index
    %c0_5 = arith.constant 0 : index
    %26 = vector.load %arg3[%25, %c0_5] : memref<64x128xf32, #tpu.memory_space<vmem>>, vector<1x128xf32>
    %27 = arith.addf %13, %26 : vector<1x128xf32>
    %28 = arith.index_cast %24 : i32 to index
    %c0_6 = arith.constant 0 : index
    %29 = vector.load %arg3[%28, %c0_6] : memref<64x128xf32, #tpu.memory_space<vmem>>, vector<1x128xf32>
    %30 = arith.addf %16, %29 : vector<1x128xf32>
    %c2_i32 = arith.constant 2 : i32
    %c10_i32_7 = arith.constant 10 : i32
    %31 = arith.muli %1, %c10_i32_7 : i32
    %32 = arith.addi %31, %c2_i32 : i32
    %33 = arith.index_cast %32 : i32 to index
    %34 = memref.load %arg1[%33] : memref<80xi32, #tpu.memory_space<smem>>
    %c10_i32_8 = arith.constant 10 : i32
    %35 = arith.muli %1, %c10_i32_8 : i32
    %36 = arith.addi %35, %c2_i32 : i32
    %37 = arith.index_cast %36 : i32 to index
    %38 = memref.load %arg2[%37] : memref<80xi32, #tpu.memory_space<smem>>
    %39 = arith.index_cast %34 : i32 to index
    %c0_9 = arith.constant 0 : index
    %40 = vector.load %arg3[%39, %c0_9] : memref<64x128xf32, #tpu.memory_space<vmem>>, vector<1x128xf32>
    %41 = arith.addf %27, %40 : vector<1x128xf32>
    %42 = arith.index_cast %38 : i32 to index
    %c0_10 = arith.constant 0 : index
    %43 = vector.load %arg3[%42, %c0_10] : memref<64x128xf32, #tpu.memory_space<vmem>>, vector<1x128xf32>
    %44 = arith.addf %30, %43 : vector<1x128xf32>
    %c3_i32 = arith.constant 3 : i32
    %c10_i32_11 = arith.constant 10 : i32
    %45 = arith.muli %1, %c10_i32_11 : i32
    %46 = arith.addi %45, %c3_i32 : i32
    %47 = arith.index_cast %46 : i32 to index
    %48 = memref.load %arg1[%47] : memref<80xi32, #tpu.memory_space<smem>>
    %c10_i32_12 = arith.constant 10 : i32
    %49 = arith.muli %1, %c10_i32_12 : i32
    %50 = arith.addi %49, %c3_i32 : i32
    %51 = arith.index_cast %50 : i32 to index
    %52 = memref.load %arg2[%51] : memref<80xi32, #tpu.memory_space<smem>>
    %53 = arith.index_cast %48 : i32 to index
    %c0_13 = arith.constant 0 : index
    %54 = vector.load %arg3[%53, %c0_13] : memref<64x128xf32, #tpu.memory_space<vmem>>, vector<1x128xf32>
    %55 = arith.addf %41, %54 : vector<1x128xf32>
    %56 = arith.index_cast %52 : i32 to index
    %c0_14 = arith.constant 0 : index
    %57 = vector.load %arg3[%56, %c0_14] : memref<64x128xf32, #tpu.memory_space<vmem>>, vector<1x128xf32>
    %58 = arith.addf %44, %57 : vector<1x128xf32>
    %c4_i32 = arith.constant 4 : i32
    %c10_i32_15 = arith.constant 10 : i32
    %59 = arith.muli %1, %c10_i32_15 : i32
    %60 = arith.addi %59, %c4_i32 : i32
    %61 = arith.index_cast %60 : i32 to index
    %62 = memref.load %arg1[%61] : memref<80xi32, #tpu.memory_space<smem>>
    %c10_i32_16 = arith.constant 10 : i32
    %63 = arith.muli %1, %c10_i32_16 : i32
    %64 = arith.addi %63, %c4_i32 : i32
    %65 = arith.index_cast %64 : i32 to index
    %66 = memref.load %arg2[%65] : memref<80xi32, #tpu.memory_space<smem>>
    %67 = arith.index_cast %62 : i32 to index
    %c0_17 = arith.constant 0 : index
    %68 = vector.load %arg3[%67, %c0_17] : memref<64x128xf32, #tpu.memory_space<vmem>>, vector<1x128xf32>
    %69 = arith.addf %55, %68 : vector<1x128xf32>
    %70 = arith.index_cast %66 : i32 to index
    %c0_18 = arith.constant 0 : index
    %71 = vector.load %arg3[%70, %c0_18] : memref<64x128xf32, #tpu.memory_space<vmem>>, vector<1x128xf32>
    %72 = arith.addf %58, %71 : vector<1x128xf32>
    %c5_i32 = arith.constant 5 : i32
    %c10_i32_19 = arith.constant 10 : i32
    %73 = arith.muli %1, %c10_i32_19 : i32
    %74 = arith.addi %73, %c5_i32 : i32
    %75 = arith.index_cast %74 : i32 to index
    %76 = memref.load %arg1[%75] : memref<80xi32, #tpu.memory_space<smem>>
    %c10_i32_20 = arith.constant 10 : i32
    %77 = arith.muli %1, %c10_i32_20 : i32
    %78 = arith.addi %77, %c5_i32 : i32
    %79 = arith.index_cast %78 : i32 to index
    %80 = memref.load %arg2[%79] : memref<80xi32, #tpu.memory_space<smem>>
    %81 = arith.index_cast %76 : i32 to index
    %c0_21 = arith.constant 0 : index
    %82 = vector.load %arg3[%81, %c0_21] : memref<64x128xf32, #tpu.memory_space<vmem>>, vector<1x128xf32>
    %83 = arith.addf %69, %82 : vector<1x128xf32>
    %84 = arith.index_cast %80 : i32 to index
    %c0_22 = arith.constant 0 : index
    %85 = vector.load %arg3[%84, %c0_22] : memref<64x128xf32, #tpu.memory_space<vmem>>, vector<1x128xf32>
    %86 = arith.addf %72, %85 : vector<1x128xf32>
    %c6_i32 = arith.constant 6 : i32
    %c10_i32_23 = arith.constant 10 : i32
    %87 = arith.muli %1, %c10_i32_23 : i32
    %88 = arith.addi %87, %c6_i32 : i32
    %89 = arith.index_cast %88 : i32 to index
    %90 = memref.load %arg1[%89] : memref<80xi32, #tpu.memory_space<smem>>
    %c10_i32_24 = arith.constant 10 : i32
    %91 = arith.muli %1, %c10_i32_24 : i32
    %92 = arith.addi %91, %c6_i32 : i32
    %93 = arith.index_cast %92 : i32 to index
    %94 = memref.load %arg2[%93] : memref<80xi32, #tpu.memory_space<smem>>
    %95 = arith.index_cast %90 : i32 to index
    %c0_25 = arith.constant 0 : index
    %96 = vector.load %arg3[%95, %c0_25] : memref<64x128xf32, #tpu.memory_space<vmem>>, vector<1x128xf32>
    %97 = arith.addf %83, %96 : vector<1x128xf32>
    %98 = arith.index_cast %94 : i32 to index
    %c0_26 = arith.constant 0 : index
    %99 = vector.load %arg3[%98, %c0_26] : memref<64x128xf32, #tpu.memory_space<vmem>>, vector<1x128xf32>
    %100 = arith.addf %86, %99 : vector<1x128xf32>
    %c7_i32 = arith.constant 7 : i32
    %c10_i32_27 = arith.constant 10 : i32
    %101 = arith.muli %1, %c10_i32_27 : i32
    %102 = arith.addi %101, %c7_i32 : i32
    %103 = arith.index_cast %102 : i32 to index
    %104 = memref.load %arg1[%103] : memref<80xi32, #tpu.memory_space<smem>>
    %c10_i32_28 = arith.constant 10 : i32
    %105 = arith.muli %1, %c10_i32_28 : i32
    %106 = arith.addi %105, %c7_i32 : i32
    %107 = arith.index_cast %106 : i32 to index
    %108 = memref.load %arg2[%107] : memref<80xi32, #tpu.memory_space<smem>>
    %109 = arith.index_cast %104 : i32 to index
    %c0_29 = arith.constant 0 : index
    %110 = vector.load %arg3[%109, %c0_29] : memref<64x128xf32, #tpu.memory_space<vmem>>, vector<1x128xf32>
    %111 = arith.addf %97, %110 : vector<1x128xf32>
    %112 = arith.index_cast %108 : i32 to index
    %c0_30 = arith.constant 0 : index
    %113 = vector.load %arg3[%112, %c0_30] : memref<64x128xf32, #tpu.memory_space<vmem>>, vector<1x128xf32>
    %114 = arith.addf %100, %113 : vector<1x128xf32>
    %c8_i32_31 = arith.constant 8 : i32
    %c10_i32_32 = arith.constant 10 : i32
    %115 = arith.muli %1, %c10_i32_32 : i32
    %116 = arith.addi %115, %c8_i32_31 : i32
    %117 = arith.index_cast %116 : i32 to index
    %118 = memref.load %arg1[%117] : memref<80xi32, #tpu.memory_space<smem>>
    %c10_i32_33 = arith.constant 10 : i32
    %119 = arith.muli %1, %c10_i32_33 : i32
    %120 = arith.addi %119, %c8_i32_31 : i32
    %121 = arith.index_cast %120 : i32 to index
    %122 = memref.load %arg2[%121] : memref<80xi32, #tpu.memory_space<smem>>
    %123 = arith.index_cast %118 : i32 to index
    %c0_34 = arith.constant 0 : index
    %124 = vector.load %arg3[%123, %c0_34] : memref<64x128xf32, #tpu.memory_space<vmem>>, vector<1x128xf32>
    %125 = arith.addf %111, %124 : vector<1x128xf32>
    %126 = arith.index_cast %122 : i32 to index
    %c0_35 = arith.constant 0 : index
    %127 = vector.load %arg3[%126, %c0_35] : memref<64x128xf32, #tpu.memory_space<vmem>>, vector<1x128xf32>
    %128 = arith.addf %114, %127 : vector<1x128xf32>
    %c9_i32 = arith.constant 9 : i32
    %c10_i32_36 = arith.constant 10 : i32
    %129 = arith.muli %1, %c10_i32_36 : i32
    %130 = arith.addi %129, %c9_i32 : i32
    %131 = arith.index_cast %130 : i32 to index
    %132 = memref.load %arg1[%131] : memref<80xi32, #tpu.memory_space<smem>>
    %c10_i32_37 = arith.constant 10 : i32
    %133 = arith.muli %1, %c10_i32_37 : i32
    %134 = arith.addi %133, %c9_i32 : i32
    %135 = arith.index_cast %134 : i32 to index
    %136 = memref.load %arg2[%135] : memref<80xi32, #tpu.memory_space<smem>>
    %137 = arith.index_cast %132 : i32 to index
    %c0_38 = arith.constant 0 : index
    %138 = vector.load %arg3[%137, %c0_38] : memref<64x128xf32, #tpu.memory_space<vmem>>, vector<1x128xf32>
    %139 = arith.addf %125, %138 : vector<1x128xf32>
    %140 = arith.index_cast %136 : i32 to index
    %c0_39 = arith.constant 0 : index
    %141 = vector.load %arg3[%140, %c0_39] : memref<64x128xf32, #tpu.memory_space<vmem>>, vector<1x128xf32>
    %142 = arith.addf %128, %141 : vector<1x128xf32>
    %c10_i32_40 = arith.constant 10 : i32
    %cst_41 = arith.constant 1.000000e-01 : f32
    %143 = vector.broadcast %cst_41 : f32 to vector<1x128xf32>
    %144 = arith.mulf %139, %143 : vector<1x128xf32>
    %cst_42 = arith.constant 1.000000e-01 : f32
    %145 = vector.broadcast %cst_42 : f32 to vector<1x128xf32>
    %146 = arith.mulf %142, %145 : vector<1x128xf32>
    %c1_i32_43 = arith.constant 1 : i32
    %147 = arith.addi %0, %c1_i32_43 : i32
    %cst_44 = arith.constant 0.000000e+00 : f32
    %148 = vector.broadcast %cst_44 : f32 to vector<1x128xf32>
    %c0_i32_45 = arith.constant 0 : i32
    %c10_i32_46 = arith.constant 10 : i32
    %149 = arith.muli %147, %c10_i32_46 : i32
    %150 = arith.addi %149, %c0_i32_45 : i32
    %151 = arith.index_cast %150 : i32 to index
    %152 = memref.load %arg1[%151] : memref<80xi32, #tpu.memory_space<smem>>
    %c10_i32_47 = arith.constant 10 : i32
    %153 = arith.muli %147, %c10_i32_47 : i32
    %154 = arith.addi %153, %c0_i32_45 : i32
    %155 = arith.index_cast %154 : i32 to index
    %156 = memref.load %arg2[%155] : memref<80xi32, #tpu.memory_space<smem>>
    %157 = arith.index_cast %152 : i32 to index
    %c0_48 = arith.constant 0 : index
    %158 = vector.load %arg3[%157, %c0_48] : memref<64x128xf32, #tpu.memory_space<vmem>>, vector<1x128xf32>
    %159 = arith.addf %148, %158 : vector<1x128xf32>
    %160 = arith.index_cast %156 : i32 to index
    %c0_49 = arith.constant 0 : index
    %161 = vector.load %arg3[%160, %c0_49] : memref<64x128xf32, #tpu.memory_space<vmem>>, vector<1x128xf32>
    %162 = arith.addf %148, %161 : vector<1x128xf32>
    %c1_i32_50 = arith.constant 1 : i32
    %c10_i32_51 = arith.constant 10 : i32
    %163 = arith.muli %147, %c10_i32_51 : i32
    %164 = arith.addi %163, %c1_i32_50 : i32
    %165 = arith.index_cast %164 : i32 to index
    %166 = memref.load %arg1[%165] : memref<80xi32, #tpu.memory_space<smem>>
    %c10_i32_52 = arith.constant 10 : i32
    %167 = arith.muli %147, %c10_i32_52 : i32
    %168 = arith.addi %167, %c1_i32_50 : i32
    %169 = arith.index_cast %168 : i32 to index
    %170 = memref.load %arg2[%169] : memref<80xi32, #tpu.memory_space<smem>>
    %171 = arith.index_cast %166 : i32 to index
    %c0_53 = arith.constant 0 : index
    %172 = vector.load %arg3[%171, %c0_53] : memref<64x128xf32, #tpu.memory_space<vmem>>, vector<1x128xf32>
    %173 = arith.addf %159, %172 : vector<1x128xf32>
    %174 = arith.index_cast %170 : i32 to index
    %c0_54 = arith.constant 0 : index
    %175 = vector.load %arg3[%174, %c0_54] : memref<64x128xf32, #tpu.memory_space<vmem>>, vector<1x128xf32>
    %176 = arith.addf %162, %175 : vector<1x128xf32>
    %c2_i32_55 = arith.constant 2 : i32
    %c10_i32_56 = arith.constant 10 : i32
    %177 = arith.muli %147, %c10_i32_56 : i32
    %178 = arith.addi %177, %c2_i32_55 : i32
    %179 = arith.index_cast %178 : i32 to index
    %180 = memref.load %arg1[%179] : memref<80xi32, #tpu.memory_space<smem>>
    %c10_i32_57 = arith.constant 10 : i32
    %181 = arith.muli %147, %c10_i32_57 : i32
    %182 = arith.addi %181, %c2_i32_55 : i32
    %183 = arith.index_cast %182 : i32 to index
    %184 = memref.load %arg2[%183] : memref<80xi32, #tpu.memory_space<smem>>
    %185 = arith.index_cast %180 : i32 to index
    %c0_58 = arith.constant 0 : index
    %186 = vector.load %arg3[%185, %c0_58] : memref<64x128xf32, #tpu.memory_space<vmem>>, vector<1x128xf32>
    %187 = arith.addf %173, %186 : vector<1x128xf32>
    %188 = arith.index_cast %184 : i32 to index
    %c0_59 = arith.constant 0 : index
    %189 = vector.load %arg3[%188, %c0_59] : memref<64x128xf32, #tpu.memory_space<vmem>>, vector<1x128xf32>
    %190 = arith.addf %176, %189 : vector<1x128xf32>
    %c3_i32_60 = arith.constant 3 : i32
    %c10_i32_61 = arith.constant 10 : i32
    %191 = arith.muli %147, %c10_i32_61 : i32
    %192 = arith.addi %191, %c3_i32_60 : i32
    %193 = arith.index_cast %192 : i32 to index
    %194 = memref.load %arg1[%193] : memref<80xi32, #tpu.memory_space<smem>>
    %c10_i32_62 = arith.constant 10 : i32
    %195 = arith.muli %147, %c10_i32_62 : i32
    %196 = arith.addi %195, %c3_i32_60 : i32
    %197 = arith.index_cast %196 : i32 to index
    %198 = memref.load %arg2[%197] : memref<80xi32, #tpu.memory_space<smem>>
    %199 = arith.index_cast %194 : i32 to index
    %c0_63 = arith.constant 0 : index
    %200 = vector.load %arg3[%199, %c0_63] : memref<64x128xf32, #tpu.memory_space<vmem>>, vector<1x128xf32>
    %201 = arith.addf %187, %200 : vector<1x128xf32>
    %202 = arith.index_cast %198 : i32 to index
    %c0_64 = arith.constant 0 : index
    %203 = vector.load %arg3[%202, %c0_64] : memref<64x128xf32, #tpu.memory_space<vmem>>, vector<1x128xf32>
    %204 = arith.addf %190, %203 : vector<1x128xf32>
    %c4_i32_65 = arith.constant 4 : i32
    %c10_i32_66 = arith.constant 10 : i32
    %205 = arith.muli %147, %c10_i32_66 : i32
    %206 = arith.addi %205, %c4_i32_65 : i32
    %207 = arith.index_cast %206 : i32 to index
    %208 = memref.load %arg1[%207] : memref<80xi32, #tpu.memory_space<smem>>
    %c10_i32_67 = arith.constant 10 : i32
    %209 = arith.muli %147, %c10_i32_67 : i32
    %210 = arith.addi %209, %c4_i32_65 : i32
    %211 = arith.index_cast %210 : i32 to index
    %212 = memref.load %arg2[%211] : memref<80xi32, #tpu.memory_space<smem>>
    %213 = arith.index_cast %208 : i32 to index
    %c0_68 = arith.constant 0 : index
    %214 = vector.load %arg3[%213, %c0_68] : memref<64x128xf32, #tpu.memory_space<vmem>>, vector<1x128xf32>
    %215 = arith.addf %201, %214 : vector<1x128xf32>
    %216 = arith.index_cast %212 : i32 to index
    %c0_69 = arith.constant 0 : index
    %217 = vector.load %arg3[%216, %c0_69] : memref<64x128xf32, #tpu.memory_space<vmem>>, vector<1x128xf32>
    %218 = arith.addf %204, %217 : vector<1x128xf32>
    %c5_i32_70 = arith.constant 5 : i32
    %c10_i32_71 = arith.constant 10 : i32
    %219 = arith.muli %147, %c10_i32_71 : i32
    %220 = arith.addi %219, %c5_i32_70 : i32
    %221 = arith.index_cast %220 : i32 to index
    %222 = memref.load %arg1[%221] : memref<80xi32, #tpu.memory_space<smem>>
    %c10_i32_72 = arith.constant 10 : i32
    %223 = arith.muli %147, %c10_i32_72 : i32
    %224 = arith.addi %223, %c5_i32_70 : i32
    %225 = arith.index_cast %224 : i32 to index
    %226 = memref.load %arg2[%225] : memref<80xi32, #tpu.memory_space<smem>>
    %227 = arith.index_cast %222 : i32 to index
    %c0_73 = arith.constant 0 : index
    %228 = vector.load %arg3[%227, %c0_73] : memref<64x128xf32, #tpu.memory_space<vmem>>, vector<1x128xf32>
    %229 = arith.addf %215, %228 : vector<1x128xf32>
    %230 = arith.index_cast %226 : i32 to index
    %c0_74 = arith.constant 0 : index
    %231 = vector.load %arg3[%230, %c0_74] : memref<64x128xf32, #tpu.memory_space<vmem>>, vector<1x128xf32>
    %232 = arith.addf %218, %231 : vector<1x128xf32>
    %c6_i32_75 = arith.constant 6 : i32
    %c10_i32_76 = arith.constant 10 : i32
    %233 = arith.muli %147, %c10_i32_76 : i32
    %234 = arith.addi %233, %c6_i32_75 : i32
    %235 = arith.index_cast %234 : i32 to index
    %236 = memref.load %arg1[%235] : memref<80xi32, #tpu.memory_space<smem>>
    %c10_i32_77 = arith.constant 10 : i32
    %237 = arith.muli %147, %c10_i32_77 : i32
    %238 = arith.addi %237, %c6_i32_75 : i32
    %239 = arith.index_cast %238 : i32 to index
    %240 = memref.load %arg2[%239] : memref<80xi32, #tpu.memory_space<smem>>
    %241 = arith.index_cast %236 : i32 to index
    %c0_78 = arith.constant 0 : index
    %242 = vector.load %arg3[%241, %c0_78] : memref<64x128xf32, #tpu.memory_space<vmem>>, vector<1x128xf32>
    %243 = arith.addf %229, %242 : vector<1x128xf32>
    %244 = arith.index_cast %240 : i32 to index
    %c0_79 = arith.constant 0 : index
    %245 = vector.load %arg3[%244, %c0_79] : memref<64x128xf32, #tpu.memory_space<vmem>>, vector<1x128xf32>
    %246 = arith.addf %232, %245 : vector<1x128xf32>
    %c7_i32_80 = arith.constant 7 : i32
    %c10_i32_81 = arith.constant 10 : i32
    %247 = arith.muli %147, %c10_i32_81 : i32
    %248 = arith.addi %247, %c7_i32_80 : i32
    %249 = arith.index_cast %248 : i32 to index
    %250 = memref.load %arg1[%249] : memref<80xi32, #tpu.memory_space<smem>>
    %c10_i32_82 = arith.constant 10 : i32
    %251 = arith.muli %147, %c10_i32_82 : i32
    %252 = arith.addi %251, %c7_i32_80 : i32
    %253 = arith.index_cast %252 : i32 to index
    %254 = memref.load %arg2[%253] : memref<80xi32, #tpu.memory_space<smem>>
    %255 = arith.index_cast %250 : i32 to index
    %c0_83 = arith.constant 0 : index
    %256 = vector.load %arg3[%255, %c0_83] : memref<64x128xf32, #tpu.memory_space<vmem>>, vector<1x128xf32>
    %257 = arith.addf %243, %256 : vector<1x128xf32>
    %258 = arith.index_cast %254 : i32 to index
    %c0_84 = arith.constant 0 : index
    %259 = vector.load %arg3[%258, %c0_84] : memref<64x128xf32, #tpu.memory_space<vmem>>, vector<1x128xf32>
    %260 = arith.addf %246, %259 : vector<1x128xf32>
    %c8_i32_85 = arith.constant 8 : i32
    %c10_i32_86 = arith.constant 10 : i32
    %261 = arith.muli %147, %c10_i32_86 : i32
    %262 = arith.addi %261, %c8_i32_85 : i32
    %263 = arith.index_cast %262 : i32 to index
    %264 = memref.load %arg1[%263] : memref<80xi32, #tpu.memory_space<smem>>
    %c10_i32_87 = arith.constant 10 : i32
    %265 = arith.muli %147, %c10_i32_87 : i32
    %266 = arith.addi %265, %c8_i32_85 : i32
    %267 = arith.index_cast %266 : i32 to index
    %268 = memref.load %arg2[%267] : memref<80xi32, #tpu.memory_space<smem>>
    %269 = arith.index_cast %264 : i32 to index
    %c0_88 = arith.constant 0 : index
    %270 = vector.load %arg3[%269, %c0_88] : memref<64x128xf32, #tpu.memory_space<vmem>>, vector<1x128xf32>
    %271 = arith.addf %257, %270 : vector<1x128xf32>
    %272 = arith.index_cast %268 : i32 to index
    %c0_89 = arith.constant 0 : index
    %273 = vector.load %arg3[%272, %c0_89] : memref<64x128xf32, #tpu.memory_space<vmem>>, vector<1x128xf32>
    %274 = arith.addf %260, %273 : vector<1x128xf32>
    %c9_i32_90 = arith.constant 9 : i32
    %c10_i32_91 = arith.constant 10 : i32
    %275 = arith.muli %147, %c10_i32_91 : i32
    %276 = arith.addi %275, %c9_i32_90 : i32
    %277 = arith.index_cast %276 : i32 to index
    %278 = memref.load %arg1[%277] : memref<80xi32, #tpu.memory_space<smem>>
    %c10_i32_92 = arith.constant 10 : i32
    %279 = arith.muli %147, %c10_i32_92 : i32
    %280 = arith.addi %279, %c9_i32_90 : i32
    %281 = arith.index_cast %280 : i32 to index
    %282 = memref.load %arg2[%281] : memref<80xi32, #tpu.memory_space<smem>>
    %283 = arith.index_cast %278 : i32 to index
    %c0_93 = arith.constant 0 : index
    %284 = vector.load %arg3[%283, %c0_93] : memref<64x128xf32, #tpu.memory_space<vmem>>, vector<1x128xf32>
    %285 = arith.addf %271, %284 : vector<1x128xf32>
    %286 = arith.index_cast %282 : i32 to index
    %c0_94 = arith.constant 0 : index
    %287 = vector.load %arg3[%286, %c0_94] : memref<64x128xf32, #tpu.memory_space<vmem>>, vector<1x128xf32>
    %288 = arith.addf %274, %287 : vector<1x128xf32>
    %c10_i32_95 = arith.constant 10 : i32
    %cst_96 = arith.constant 1.000000e-01 : f32
    %289 = vector.broadcast %cst_96 : f32 to vector<1x128xf32>
    %290 = arith.mulf %285, %289 : vector<1x128xf32>
    %cst_97 = arith.constant 1.000000e-01 : f32
    %291 = vector.broadcast %cst_97 : f32 to vector<1x128xf32>
    %292 = arith.mulf %288, %291 : vector<1x128xf32>
    %c2_i32_98 = arith.constant 2 : i32
    %293 = arith.addi %0, %c2_i32_98 : i32
    %cst_99 = arith.constant 0.000000e+00 : f32
    %294 = vector.broadcast %cst_99 : f32 to vector<1x128xf32>
    %c0_i32_100 = arith.constant 0 : i32
    %c10_i32_101 = arith.constant 10 : i32
    %295 = arith.muli %293, %c10_i32_101 : i32
    %296 = arith.addi %295, %c0_i32_100 : i32
    %297 = arith.index_cast %296 : i32 to index
    %298 = memref.load %arg1[%297] : memref<80xi32, #tpu.memory_space<smem>>
    %c10_i32_102 = arith.constant 10 : i32
    %299 = arith.muli %293, %c10_i32_102 : i32
    %300 = arith.addi %299, %c0_i32_100 : i32
    %301 = arith.index_cast %300 : i32 to index
    %302 = memref.load %arg2[%301] : memref<80xi32, #tpu.memory_space<smem>>
    %303 = arith.index_cast %298 : i32 to index
    %c0_103 = arith.constant 0 : index
    %304 = vector.load %arg3[%303, %c0_103] : memref<64x128xf32, #tpu.memory_space<vmem>>, vector<1x128xf32>
    %305 = arith.addf %294, %304 : vector<1x128xf32>
    %306 = arith.index_cast %302 : i32 to index
    %c0_104 = arith.constant 0 : index
    %307 = vector.load %arg3[%306, %c0_104] : memref<64x128xf32, #tpu.memory_space<vmem>>, vector<1x128xf32>
    %308 = arith.addf %294, %307 : vector<1x128xf32>
    %c1_i32_105 = arith.constant 1 : i32
    %c10_i32_106 = arith.constant 10 : i32
    %309 = arith.muli %293, %c10_i32_106 : i32
    %310 = arith.addi %309, %c1_i32_105 : i32
    %311 = arith.index_cast %310 : i32 to index
    %312 = memref.load %arg1[%311] : memref<80xi32, #tpu.memory_space<smem>>
    %c10_i32_107 = arith.constant 10 : i32
    %313 = arith.muli %293, %c10_i32_107 : i32
    %314 = arith.addi %313, %c1_i32_105 : i32
    %315 = arith.index_cast %314 : i32 to index
    %316 = memref.load %arg2[%315] : memref<80xi32, #tpu.memory_space<smem>>
    %317 = arith.index_cast %312 : i32 to index
    %c0_108 = arith.constant 0 : index
    %318 = vector.load %arg3[%317, %c0_108] : memref<64x128xf32, #tpu.memory_space<vmem>>, vector<1x128xf32>
    %319 = arith.addf %305, %318 : vector<1x128xf32>
    %320 = arith.index_cast %316 : i32 to index
    %c0_109 = arith.constant 0 : index
    %321 = vector.load %arg3[%320, %c0_109] : memref<64x128xf32, #tpu.memory_space<vmem>>, vector<1x128xf32>
    %322 = arith.addf %308, %321 : vector<1x128xf32>
    %c2_i32_110 = arith.constant 2 : i32
    %c10_i32_111 = arith.constant 10 : i32
    %323 = arith.muli %293, %c10_i32_111 : i32
    %324 = arith.addi %323, %c2_i32_110 : i32
    %325 = arith.index_cast %324 : i32 to index
    %326 = memref.load %arg1[%325] : memref<80xi32, #tpu.memory_space<smem>>
    %c10_i32_112 = arith.constant 10 : i32
    %327 = arith.muli %293, %c10_i32_112 : i32
    %328 = arith.addi %327, %c2_i32_110 : i32
    %329 = arith.index_cast %328 : i32 to index
    %330 = memref.load %arg2[%329] : memref<80xi32, #tpu.memory_space<smem>>
    %331 = arith.index_cast %326 : i32 to index
    %c0_113 = arith.constant 0 : index
    %332 = vector.load %arg3[%331, %c0_113] : memref<64x128xf32, #tpu.memory_space<vmem>>, vector<1x128xf32>
    %333 = arith.addf %319, %332 : vector<1x128xf32>
    %334 = arith.index_cast %330 : i32 to index
    %c0_114 = arith.constant 0 : index
    %335 = vector.load %arg3[%334, %c0_114] : memref<64x128xf32, #tpu.memory_space<vmem>>, vector<1x128xf32>
    %336 = arith.addf %322, %335 : vector<1x128xf32>
    %c3_i32_115 = arith.constant 3 : i32
    %c10_i32_116 = arith.constant 10 : i32
    %337 = arith.muli %293, %c10_i32_116 : i32
    %338 = arith.addi %337, %c3_i32_115 : i32
    %339 = arith.index_cast %338 : i32 to index
    %340 = memref.load %arg1[%339] : memref<80xi32, #tpu.memory_space<smem>>
    %c10_i32_117 = arith.constant 10 : i32
    %341 = arith.muli %293, %c10_i32_117 : i32
    %342 = arith.addi %341, %c3_i32_115 : i32
    %343 = arith.index_cast %342 : i32 to index
    %344 = memref.load %arg2[%343] : memref<80xi32, #tpu.memory_space<smem>>
    %345 = arith.index_cast %340 : i32 to index
    %c0_118 = arith.constant 0 : index
    %346 = vector.load %arg3[%345, %c0_118] : memref<64x128xf32, #tpu.memory_space<vmem>>, vector<1x128xf32>
    %347 = arith.addf %333, %346 : vector<1x128xf32>
    %348 = arith.index_cast %344 : i32 to index
    %c0_119 = arith.constant 0 : index
    %349 = vector.load %arg3[%348, %c0_119] : memref<64x128xf32, #tpu.memory_space<vmem>>, vector<1x128xf32>
    %350 = arith.addf %336, %349 : vector<1x128xf32>
    %c4_i32_120 = arith.constant 4 : i32
    %c10_i32_121 = arith.constant 10 : i32
    %351 = arith.muli %293, %c10_i32_121 : i32
    %352 = arith.addi %351, %c4_i32_120 : i32
    %353 = arith.index_cast %352 : i32 to index
    %354 = memref.load %arg1[%353] : memref<80xi32, #tpu.memory_space<smem>>
    %c10_i32_122 = arith.constant 10 : i32
    %355 = arith.muli %293, %c10_i32_122 : i32
    %356 = arith.addi %355, %c4_i32_120 : i32
    %357 = arith.index_cast %356 : i32 to index
    %358 = memref.load %arg2[%357] : memref<80xi32, #tpu.memory_space<smem>>
    %359 = arith.index_cast %354 : i32 to index
    %c0_123 = arith.constant 0 : index
    %360 = vector.load %arg3[%359, %c0_123] : memref<64x128xf32, #tpu.memory_space<vmem>>, vector<1x128xf32>
    %361 = arith.addf %347, %360 : vector<1x128xf32>
    %362 = arith.index_cast %358 : i32 to index
    %c0_124 = arith.constant 0 : index
    %363 = vector.load %arg3[%362, %c0_124] : memref<64x128xf32, #tpu.memory_space<vmem>>, vector<1x128xf32>
    %364 = arith.addf %350, %363 : vector<1x128xf32>
    %c5_i32_125 = arith.constant 5 : i32
    %c10_i32_126 = arith.constant 10 : i32
    %365 = arith.muli %293, %c10_i32_126 : i32
    %366 = arith.addi %365, %c5_i32_125 : i32
    %367 = arith.index_cast %366 : i32 to index
    %368 = memref.load %arg1[%367] : memref<80xi32, #tpu.memory_space<smem>>
    %c10_i32_127 = arith.constant 10 : i32
    %369 = arith.muli %293, %c10_i32_127 : i32
    %370 = arith.addi %369, %c5_i32_125 : i32
    %371 = arith.index_cast %370 : i32 to index
    %372 = memref.load %arg2[%371] : memref<80xi32, #tpu.memory_space<smem>>
    %373 = arith.index_cast %368 : i32 to index
    %c0_128 = arith.constant 0 : index
    %374 = vector.load %arg3[%373, %c0_128] : memref<64x128xf32, #tpu.memory_space<vmem>>, vector<1x128xf32>
    %375 = arith.addf %361, %374 : vector<1x128xf32>
    %376 = arith.index_cast %372 : i32 to index
    %c0_129 = arith.constant 0 : index
    %377 = vector.load %arg3[%376, %c0_129] : memref<64x128xf32, #tpu.memory_space<vmem>>, vector<1x128xf32>
    %378 = arith.addf %364, %377 : vector<1x128xf32>
    %c6_i32_130 = arith.constant 6 : i32
    %c10_i32_131 = arith.constant 10 : i32
    %379 = arith.muli %293, %c10_i32_131 : i32
    %380 = arith.addi %379, %c6_i32_130 : i32
    %381 = arith.index_cast %380 : i32 to index
    %382 = memref.load %arg1[%381] : memref<80xi32, #tpu.memory_space<smem>>
    %c10_i32_132 = arith.constant 10 : i32
    %383 = arith.muli %293, %c10_i32_132 : i32
    %384 = arith.addi %383, %c6_i32_130 : i32
    %385 = arith.index_cast %384 : i32 to index
    %386 = memref.load %arg2[%385] : memref<80xi32, #tpu.memory_space<smem>>
    %387 = arith.index_cast %382 : i32 to index
    %c0_133 = arith.constant 0 : index
    %388 = vector.load %arg3[%387, %c0_133] : memref<64x128xf32, #tpu.memory_space<vmem>>, vector<1x128xf32>
    %389 = arith.addf %375, %388 : vector<1x128xf32>
    %390 = arith.index_cast %386 : i32 to index
    %c0_134 = arith.constant 0 : index
    %391 = vector.load %arg3[%390, %c0_134] : memref<64x128xf32, #tpu.memory_space<vmem>>, vector<1x128xf32>
    %392 = arith.addf %378, %391 : vector<1x128xf32>
    %c7_i32_135 = arith.constant 7 : i32
    %c10_i32_136 = arith.constant 10 : i32
    %393 = arith.muli %293, %c10_i32_136 : i32
    %394 = arith.addi %393, %c7_i32_135 : i32
    %395 = arith.index_cast %394 : i32 to index
    %396 = memref.load %arg1[%395] : memref<80xi32, #tpu.memory_space<smem>>
    %c10_i32_137 = arith.constant 10 : i32
    %397 = arith.muli %293, %c10_i32_137 : i32
    %398 = arith.addi %397, %c7_i32_135 : i32
    %399 = arith.index_cast %398 : i32 to index
    %400 = memref.load %arg2[%399] : memref<80xi32, #tpu.memory_space<smem>>
    %401 = arith.index_cast %396 : i32 to index
    %c0_138 = arith.constant 0 : index
    %402 = vector.load %arg3[%401, %c0_138] : memref<64x128xf32, #tpu.memory_space<vmem>>, vector<1x128xf32>
    %403 = arith.addf %389, %402 : vector<1x128xf32>
    %404 = arith.index_cast %400 : i32 to index
    %c0_139 = arith.constant 0 : index
    %405 = vector.load %arg3[%404, %c0_139] : memref<64x128xf32, #tpu.memory_space<vmem>>, vector<1x128xf32>
    %406 = arith.addf %392, %405 : vector<1x128xf32>
    %c8_i32_140 = arith.constant 8 : i32
    %c10_i32_141 = arith.constant 10 : i32
    %407 = arith.muli %293, %c10_i32_141 : i32
    %408 = arith.addi %407, %c8_i32_140 : i32
    %409 = arith.index_cast %408 : i32 to index
    %410 = memref.load %arg1[%409] : memref<80xi32, #tpu.memory_space<smem>>
    %c10_i32_142 = arith.constant 10 : i32
    %411 = arith.muli %293, %c10_i32_142 : i32
    %412 = arith.addi %411, %c8_i32_140 : i32
    %413 = arith.index_cast %412 : i32 to index
    %414 = memref.load %arg2[%413] : memref<80xi32, #tpu.memory_space<smem>>
    %415 = arith.index_cast %410 : i32 to index
    %c0_143 = arith.constant 0 : index
    %416 = vector.load %arg3[%415, %c0_143] : memref<64x128xf32, #tpu.memory_space<vmem>>, vector<1x128xf32>
    %417 = arith.addf %403, %416 : vector<1x128xf32>
    %418 = arith.index_cast %414 : i32 to index
    %c0_144 = arith.constant 0 : index
    %419 = vector.load %arg3[%418, %c0_144] : memref<64x128xf32, #tpu.memory_space<vmem>>, vector<1x128xf32>
    %420 = arith.addf %406, %419 : vector<1x128xf32>
    %c9_i32_145 = arith.constant 9 : i32
    %c10_i32_146 = arith.constant 10 : i32
    %421 = arith.muli %293, %c10_i32_146 : i32
    %422 = arith.addi %421, %c9_i32_145 : i32
    %423 = arith.index_cast %422 : i32 to index
    %424 = memref.load %arg1[%423] : memref<80xi32, #tpu.memory_space<smem>>
    %c10_i32_147 = arith.constant 10 : i32
    %425 = arith.muli %293, %c10_i32_147 : i32
    %426 = arith.addi %425, %c9_i32_145 : i32
    %427 = arith.index_cast %426 : i32 to index
    %428 = memref.load %arg2[%427] : memref<80xi32, #tpu.memory_space<smem>>
    %429 = arith.index_cast %424 : i32 to index
    %c0_148 = arith.constant 0 : index
    %430 = vector.load %arg3[%429, %c0_148] : memref<64x128xf32, #tpu.memory_space<vmem>>, vector<1x128xf32>
    %431 = arith.addf %417, %430 : vector<1x128xf32>
    %432 = arith.index_cast %428 : i32 to index
    %c0_149 = arith.constant 0 : index
    %433 = vector.load %arg3[%432, %c0_149] : memref<64x128xf32, #tpu.memory_space<vmem>>, vector<1x128xf32>
    %434 = arith.addf %420, %433 : vector<1x128xf32>
    %c10_i32_150 = arith.constant 10 : i32
    %cst_151 = arith.constant 1.000000e-01 : f32
    %435 = vector.broadcast %cst_151 : f32 to vector<1x128xf32>
    %436 = arith.mulf %431, %435 : vector<1x128xf32>
    %cst_152 = arith.constant 1.000000e-01 : f32
    %437 = vector.broadcast %cst_152 : f32 to vector<1x128xf32>
    %438 = arith.mulf %434, %437 : vector<1x128xf32>
    %c3_i32_153 = arith.constant 3 : i32
    %439 = arith.addi %0, %c3_i32_153 : i32
    %cst_154 = arith.constant 0.000000e+00 : f32
    %440 = vector.broadcast %cst_154 : f32 to vector<1x128xf32>
    %c0_i32_155 = arith.constant 0 : i32
    %c10_i32_156 = arith.constant 10 : i32
    %441 = arith.muli %439, %c10_i32_156 : i32
    %442 = arith.addi %441, %c0_i32_155 : i32
    %443 = arith.index_cast %442 : i32 to index
    %444 = memref.load %arg1[%443] : memref<80xi32, #tpu.memory_space<smem>>
    %c10_i32_157 = arith.constant 10 : i32
    %445 = arith.muli %439, %c10_i32_157 : i32
    %446 = arith.addi %445, %c0_i32_155 : i32
    %447 = arith.index_cast %446 : i32 to index
    %448 = memref.load %arg2[%447] : memref<80xi32, #tpu.memory_space<smem>>
    %449 = arith.index_cast %444 : i32 to index
    %c0_158 = arith.constant 0 : index
    %450 = vector.load %arg3[%449, %c0_158] : memref<64x128xf32, #tpu.memory_space<vmem>>, vector<1x128xf32>
    %451 = arith.addf %440, %450 : vector<1x128xf32>
    %452 = arith.index_cast %448 : i32 to index
    %c0_159 = arith.constant 0 : index
    %453 = vector.load %arg3[%452, %c0_159] : memref<64x128xf32, #tpu.memory_space<vmem>>, vector<1x128xf32>
    %454 = arith.addf %440, %453 : vector<1x128xf32>
    %c1_i32_160 = arith.constant 1 : i32
    %c10_i32_161 = arith.constant 10 : i32
    %455 = arith.muli %439, %c10_i32_161 : i32
    %456 = arith.addi %455, %c1_i32_160 : i32
    %457 = arith.index_cast %456 : i32 to index
    %458 = memref.load %arg1[%457] : memref<80xi32, #tpu.memory_space<smem>>
    %c10_i32_162 = arith.constant 10 : i32
    %459 = arith.muli %439, %c10_i32_162 : i32
    %460 = arith.addi %459, %c1_i32_160 : i32
    %461 = arith.index_cast %460 : i32 to index
    %462 = memref.load %arg2[%461] : memref<80xi32, #tpu.memory_space<smem>>
    %463 = arith.index_cast %458 : i32 to index
    %c0_163 = arith.constant 0 : index
    %464 = vector.load %arg3[%463, %c0_163] : memref<64x128xf32, #tpu.memory_space<vmem>>, vector<1x128xf32>
    %465 = arith.addf %451, %464 : vector<1x128xf32>
    %466 = arith.index_cast %462 : i32 to index
    %c0_164 = arith.constant 0 : index
    %467 = vector.load %arg3[%466, %c0_164] : memref<64x128xf32, #tpu.memory_space<vmem>>, vector<1x128xf32>
    %468 = arith.addf %454, %467 : vector<1x128xf32>
    %c2_i32_165 = arith.constant 2 : i32
    %c10_i32_166 = arith.constant 10 : i32
    %469 = arith.muli %439, %c10_i32_166 : i32
    %470 = arith.addi %469, %c2_i32_165 : i32
    %471 = arith.index_cast %470 : i32 to index
    %472 = memref.load %arg1[%471] : memref<80xi32, #tpu.memory_space<smem>>
    %c10_i32_167 = arith.constant 10 : i32
    %473 = arith.muli %439, %c10_i32_167 : i32
    %474 = arith.addi %473, %c2_i32_165 : i32
    %475 = arith.index_cast %474 : i32 to index
    %476 = memref.load %arg2[%475] : memref<80xi32, #tpu.memory_space<smem>>
    %477 = arith.index_cast %472 : i32 to index
    %c0_168 = arith.constant 0 : index
    %478 = vector.load %arg3[%477, %c0_168] : memref<64x128xf32, #tpu.memory_space<vmem>>, vector<1x128xf32>
    %479 = arith.addf %465, %478 : vector<1x128xf32>
    %480 = arith.index_cast %476 : i32 to index
    %c0_169 = arith.constant 0 : index
    %481 = vector.load %arg3[%480, %c0_169] : memref<64x128xf32, #tpu.memory_space<vmem>>, vector<1x128xf32>
    %482 = arith.addf %468, %481 : vector<1x128xf32>
    %c3_i32_170 = arith.constant 3 : i32
    %c10_i32_171 = arith.constant 10 : i32
    %483 = arith.muli %439, %c10_i32_171 : i32
    %484 = arith.addi %483, %c3_i32_170 : i32
    %485 = arith.index_cast %484 : i32 to index
    %486 = memref.load %arg1[%485] : memref<80xi32, #tpu.memory_space<smem>>
    %c10_i32_172 = arith.constant 10 : i32
    %487 = arith.muli %439, %c10_i32_172 : i32
    %488 = arith.addi %487, %c3_i32_170 : i32
    %489 = arith.index_cast %488 : i32 to index
    %490 = memref.load %arg2[%489] : memref<80xi32, #tpu.memory_space<smem>>
    %491 = arith.index_cast %486 : i32 to index
    %c0_173 = arith.constant 0 : index
    %492 = vector.load %arg3[%491, %c0_173] : memref<64x128xf32, #tpu.memory_space<vmem>>, vector<1x128xf32>
    %493 = arith.addf %479, %492 : vector<1x128xf32>
    %494 = arith.index_cast %490 : i32 to index
    %c0_174 = arith.constant 0 : index
    %495 = vector.load %arg3[%494, %c0_174] : memref<64x128xf32, #tpu.memory_space<vmem>>, vector<1x128xf32>
    %496 = arith.addf %482, %495 : vector<1x128xf32>
    %c4_i32_175 = arith.constant 4 : i32
    %c10_i32_176 = arith.constant 10 : i32
    %497 = arith.muli %439, %c10_i32_176 : i32
    %498 = arith.addi %497, %c4_i32_175 : i32
    %499 = arith.index_cast %498 : i32 to index
    %500 = memref.load %arg1[%499] : memref<80xi32, #tpu.memory_space<smem>>
    %c10_i32_177 = arith.constant 10 : i32
    %501 = arith.muli %439, %c10_i32_177 : i32
    %502 = arith.addi %501, %c4_i32_175 : i32
    %503 = arith.index_cast %502 : i32 to index
    %504 = memref.load %arg2[%503] : memref<80xi32, #tpu.memory_space<smem>>
    %505 = arith.index_cast %500 : i32 to index
    %c0_178 = arith.constant 0 : index
    %506 = vector.load %arg3[%505, %c0_178] : memref<64x128xf32, #tpu.memory_space<vmem>>, vector<1x128xf32>
    %507 = arith.addf %493, %506 : vector<1x128xf32>
    %508 = arith.index_cast %504 : i32 to index
    %c0_179 = arith.constant 0 : index
    %509 = vector.load %arg3[%508, %c0_179] : memref<64x128xf32, #tpu.memory_space<vmem>>, vector<1x128xf32>
    %510 = arith.addf %496, %509 : vector<1x128xf32>
    %c5_i32_180 = arith.constant 5 : i32
    %c10_i32_181 = arith.constant 10 : i32
    %511 = arith.muli %439, %c10_i32_181 : i32
    %512 = arith.addi %511, %c5_i32_180 : i32
    %513 = arith.index_cast %512 : i32 to index
    %514 = memref.load %arg1[%513] : memref<80xi32, #tpu.memory_space<smem>>
    %c10_i32_182 = arith.constant 10 : i32
    %515 = arith.muli %439, %c10_i32_182 : i32
    %516 = arith.addi %515, %c5_i32_180 : i32
    %517 = arith.index_cast %516 : i32 to index
    %518 = memref.load %arg2[%517] : memref<80xi32, #tpu.memory_space<smem>>
    %519 = arith.index_cast %514 : i32 to index
    %c0_183 = arith.constant 0 : index
    %520 = vector.load %arg3[%519, %c0_183] : memref<64x128xf32, #tpu.memory_space<vmem>>, vector<1x128xf32>
    %521 = arith.addf %507, %520 : vector<1x128xf32>
    %522 = arith.index_cast %518 : i32 to index
    %c0_184 = arith.constant 0 : index
    %523 = vector.load %arg3[%522, %c0_184] : memref<64x128xf32, #tpu.memory_space<vmem>>, vector<1x128xf32>
    %524 = arith.addf %510, %523 : vector<1x128xf32>
    %c6_i32_185 = arith.constant 6 : i32
    %c10_i32_186 = arith.constant 10 : i32
    %525 = arith.muli %439, %c10_i32_186 : i32
    %526 = arith.addi %525, %c6_i32_185 : i32
    %527 = arith.index_cast %526 : i32 to index
    %528 = memref.load %arg1[%527] : memref<80xi32, #tpu.memory_space<smem>>
    %c10_i32_187 = arith.constant 10 : i32
    %529 = arith.muli %439, %c10_i32_187 : i32
    %530 = arith.addi %529, %c6_i32_185 : i32
    %531 = arith.index_cast %530 : i32 to index
    %532 = memref.load %arg2[%531] : memref<80xi32, #tpu.memory_space<smem>>
    %533 = arith.index_cast %528 : i32 to index
    %c0_188 = arith.constant 0 : index
    %534 = vector.load %arg3[%533, %c0_188] : memref<64x128xf32, #tpu.memory_space<vmem>>, vector<1x128xf32>
    %535 = arith.addf %521, %534 : vector<1x128xf32>
    %536 = arith.index_cast %532 : i32 to index
    %c0_189 = arith.constant 0 : index
    %537 = vector.load %arg3[%536, %c0_189] : memref<64x128xf32, #tpu.memory_space<vmem>>, vector<1x128xf32>
    %538 = arith.addf %524, %537 : vector<1x128xf32>
    %c7_i32_190 = arith.constant 7 : i32
    %c10_i32_191 = arith.constant 10 : i32
    %539 = arith.muli %439, %c10_i32_191 : i32
    %540 = arith.addi %539, %c7_i32_190 : i32
    %541 = arith.index_cast %540 : i32 to index
    %542 = memref.load %arg1[%541] : memref<80xi32, #tpu.memory_space<smem>>
    %c10_i32_192 = arith.constant 10 : i32
    %543 = arith.muli %439, %c10_i32_192 : i32
    %544 = arith.addi %543, %c7_i32_190 : i32
    %545 = arith.index_cast %544 : i32 to index
    %546 = memref.load %arg2[%545] : memref<80xi32, #tpu.memory_space<smem>>
    %547 = arith.index_cast %542 : i32 to index
    %c0_193 = arith.constant 0 : index
    %548 = vector.load %arg3[%547, %c0_193] : memref<64x128xf32, #tpu.memory_space<vmem>>, vector<1x128xf32>
    %549 = arith.addf %535, %548 : vector<1x128xf32>
    %550 = arith.index_cast %546 : i32 to index
    %c0_194 = arith.constant 0 : index
    %551 = vector.load %arg3[%550, %c0_194] : memref<64x128xf32, #tpu.memory_space<vmem>>, vector<1x128xf32>
    %552 = arith.addf %538, %551 : vector<1x128xf32>
    %c8_i32_195 = arith.constant 8 : i32
    %c10_i32_196 = arith.constant 10 : i32
    %553 = arith.muli %439, %c10_i32_196 : i32
    %554 = arith.addi %553, %c8_i32_195 : i32
    %555 = arith.index_cast %554 : i32 to index
    %556 = memref.load %arg1[%555] : memref<80xi32, #tpu.memory_space<smem>>
    %c10_i32_197 = arith.constant 10 : i32
    %557 = arith.muli %439, %c10_i32_197 : i32
    %558 = arith.addi %557, %c8_i32_195 : i32
    %559 = arith.index_cast %558 : i32 to index
    %560 = memref.load %arg2[%559] : memref<80xi32, #tpu.memory_space<smem>>
    %561 = arith.index_cast %556 : i32 to index
    %c0_198 = arith.constant 0 : index
    %562 = vector.load %arg3[%561, %c0_198] : memref<64x128xf32, #tpu.memory_space<vmem>>, vector<1x128xf32>
    %563 = arith.addf %549, %562 : vector<1x128xf32>
    %564 = arith.index_cast %560 : i32 to index
    %c0_199 = arith.constant 0 : index
    %565 = vector.load %arg3[%564, %c0_199] : memref<64x128xf32, #tpu.memory_space<vmem>>, vector<1x128xf32>
    %566 = arith.addf %552, %565 : vector<1x128xf32>
    %c9_i32_200 = arith.constant 9 : i32
    %c10_i32_201 = arith.constant 10 : i32
    %567 = arith.muli %439, %c10_i32_201 : i32
    %568 = arith.addi %567, %c9_i32_200 : i32
    %569 = arith.index_cast %568 : i32 to index
    %570 = memref.load %arg1[%569] : memref<80xi32, #tpu.memory_space<smem>>
    %c10_i32_202 = arith.constant 10 : i32
    %571 = arith.muli %439, %c10_i32_202 : i32
    %572 = arith.addi %571, %c9_i32_200 : i32
    %573 = arith.index_cast %572 : i32 to index
    %574 = memref.load %arg2[%573] : memref<80xi32, #tpu.memory_space<smem>>
    %575 = arith.index_cast %570 : i32 to index
    %c0_203 = arith.constant 0 : index
    %576 = vector.load %arg3[%575, %c0_203] : memref<64x128xf32, #tpu.memory_space<vmem>>, vector<1x128xf32>
    %577 = arith.addf %563, %576 : vector<1x128xf32>
    %578 = arith.index_cast %574 : i32 to index
    %c0_204 = arith.constant 0 : index
    %579 = vector.load %arg3[%578, %c0_204] : memref<64x128xf32, #tpu.memory_space<vmem>>, vector<1x128xf32>
    %580 = arith.addf %566, %579 : vector<1x128xf32>
    %c10_i32_205 = arith.constant 10 : i32
    %cst_206 = arith.constant 1.000000e-01 : f32
    %581 = vector.broadcast %cst_206 : f32 to vector<1x128xf32>
    %582 = arith.mulf %577, %581 : vector<1x128xf32>
    %cst_207 = arith.constant 1.000000e-01 : f32
    %583 = vector.broadcast %cst_207 : f32 to vector<1x128xf32>
    %584 = arith.mulf %580, %583 : vector<1x128xf32>
    %c4_i32_208 = arith.constant 4 : i32
    %585 = arith.addi %0, %c4_i32_208 : i32
    %cst_209 = arith.constant 0.000000e+00 : f32
    %586 = vector.broadcast %cst_209 : f32 to vector<1x128xf32>
    %c0_i32_210 = arith.constant 0 : i32
    %c10_i32_211 = arith.constant 10 : i32
    %587 = arith.muli %585, %c10_i32_211 : i32
    %588 = arith.addi %587, %c0_i32_210 : i32
    %589 = arith.index_cast %588 : i32 to index
    %590 = memref.load %arg1[%589] : memref<80xi32, #tpu.memory_space<smem>>
    %c10_i32_212 = arith.constant 10 : i32
    %591 = arith.muli %585, %c10_i32_212 : i32
    %592 = arith.addi %591, %c0_i32_210 : i32
    %593 = arith.index_cast %592 : i32 to index
    %594 = memref.load %arg2[%593] : memref<80xi32, #tpu.memory_space<smem>>
    %595 = arith.index_cast %590 : i32 to index
    %c0_213 = arith.constant 0 : index
    %596 = vector.load %arg3[%595, %c0_213] : memref<64x128xf32, #tpu.memory_space<vmem>>, vector<1x128xf32>
    %597 = arith.addf %586, %596 : vector<1x128xf32>
    %598 = arith.index_cast %594 : i32 to index
    %c0_214 = arith.constant 0 : index
    %599 = vector.load %arg3[%598, %c0_214] : memref<64x128xf32, #tpu.memory_space<vmem>>, vector<1x128xf32>
    %600 = arith.addf %586, %599 : vector<1x128xf32>
    %c1_i32_215 = arith.constant 1 : i32
    %c10_i32_216 = arith.constant 10 : i32
    %601 = arith.muli %585, %c10_i32_216 : i32
    %602 = arith.addi %601, %c1_i32_215 : i32
    %603 = arith.index_cast %602 : i32 to index
    %604 = memref.load %arg1[%603] : memref<80xi32, #tpu.memory_space<smem>>
    %c10_i32_217 = arith.constant 10 : i32
    %605 = arith.muli %585, %c10_i32_217 : i32
    %606 = arith.addi %605, %c1_i32_215 : i32
    %607 = arith.index_cast %606 : i32 to index
    %608 = memref.load %arg2[%607] : memref<80xi32, #tpu.memory_space<smem>>
    %609 = arith.index_cast %604 : i32 to index
    %c0_218 = arith.constant 0 : index
    %610 = vector.load %arg3[%609, %c0_218] : memref<64x128xf32, #tpu.memory_space<vmem>>, vector<1x128xf32>
    %611 = arith.addf %597, %610 : vector<1x128xf32>
    %612 = arith.index_cast %608 : i32 to index
    %c0_219 = arith.constant 0 : index
    %613 = vector.load %arg3[%612, %c0_219] : memref<64x128xf32, #tpu.memory_space<vmem>>, vector<1x128xf32>
    %614 = arith.addf %600, %613 : vector<1x128xf32>
    %c2_i32_220 = arith.constant 2 : i32
    %c10_i32_221 = arith.constant 10 : i32
    %615 = arith.muli %585, %c10_i32_221 : i32
    %616 = arith.addi %615, %c2_i32_220 : i32
    %617 = arith.index_cast %616 : i32 to index
    %618 = memref.load %arg1[%617] : memref<80xi32, #tpu.memory_space<smem>>
    %c10_i32_222 = arith.constant 10 : i32
    %619 = arith.muli %585, %c10_i32_222 : i32
    %620 = arith.addi %619, %c2_i32_220 : i32
    %621 = arith.index_cast %620 : i32 to index
    %622 = memref.load %arg2[%621] : memref<80xi32, #tpu.memory_space<smem>>
    %623 = arith.index_cast %618 : i32 to index
    %c0_223 = arith.constant 0 : index
    %624 = vector.load %arg3[%623, %c0_223] : memref<64x128xf32, #tpu.memory_space<vmem>>, vector<1x128xf32>
    %625 = arith.addf %611, %624 : vector<1x128xf32>
    %626 = arith.index_cast %622 : i32 to index
    %c0_224 = arith.constant 0 : index
    %627 = vector.load %arg3[%626, %c0_224] : memref<64x128xf32, #tpu.memory_space<vmem>>, vector<1x128xf32>
    %628 = arith.addf %614, %627 : vector<1x128xf32>
    %c3_i32_225 = arith.constant 3 : i32
    %c10_i32_226 = arith.constant 10 : i32
    %629 = arith.muli %585, %c10_i32_226 : i32
    %630 = arith.addi %629, %c3_i32_225 : i32
    %631 = arith.index_cast %630 : i32 to index
    %632 = memref.load %arg1[%631] : memref<80xi32, #tpu.memory_space<smem>>
    %c10_i32_227 = arith.constant 10 : i32
    %633 = arith.muli %585, %c10_i32_227 : i32
    %634 = arith.addi %633, %c3_i32_225 : i32
    %635 = arith.index_cast %634 : i32 to index
    %636 = memref.load %arg2[%635] : memref<80xi32, #tpu.memory_space<smem>>
    %637 = arith.index_cast %632 : i32 to index
    %c0_228 = arith.constant 0 : index
    %638 = vector.load %arg3[%637, %c0_228] : memref<64x128xf32, #tpu.memory_space<vmem>>, vector<1x128xf32>
    %639 = arith.addf %625, %638 : vector<1x128xf32>
    %640 = arith.index_cast %636 : i32 to index
    %c0_229 = arith.constant 0 : index
    %641 = vector.load %arg3[%640, %c0_229] : memref<64x128xf32, #tpu.memory_space<vmem>>, vector<1x128xf32>
    %642 = arith.addf %628, %641 : vector<1x128xf32>
    %c4_i32_230 = arith.constant 4 : i32
    %c10_i32_231 = arith.constant 10 : i32
    %643 = arith.muli %585, %c10_i32_231 : i32
    %644 = arith.addi %643, %c4_i32_230 : i32
    %645 = arith.index_cast %644 : i32 to index
    %646 = memref.load %arg1[%645] : memref<80xi32, #tpu.memory_space<smem>>
    %c10_i32_232 = arith.constant 10 : i32
    %647 = arith.muli %585, %c10_i32_232 : i32
    %648 = arith.addi %647, %c4_i32_230 : i32
    %649 = arith.index_cast %648 : i32 to index
    %650 = memref.load %arg2[%649] : memref<80xi32, #tpu.memory_space<smem>>
    %651 = arith.index_cast %646 : i32 to index
    %c0_233 = arith.constant 0 : index
    %652 = vector.load %arg3[%651, %c0_233] : memref<64x128xf32, #tpu.memory_space<vmem>>, vector<1x128xf32>
    %653 = arith.addf %639, %652 : vector<1x128xf32>
    %654 = arith.index_cast %650 : i32 to index
    %c0_234 = arith.constant 0 : index
    %655 = vector.load %arg3[%654, %c0_234] : memref<64x128xf32, #tpu.memory_space<vmem>>, vector<1x128xf32>
    %656 = arith.addf %642, %655 : vector<1x128xf32>
    %c5_i32_235 = arith.constant 5 : i32
    %c10_i32_236 = arith.constant 10 : i32
    %657 = arith.muli %585, %c10_i32_236 : i32
    %658 = arith.addi %657, %c5_i32_235 : i32
    %659 = arith.index_cast %658 : i32 to index
    %660 = memref.load %arg1[%659] : memref<80xi32, #tpu.memory_space<smem>>
    %c10_i32_237 = arith.constant 10 : i32
    %661 = arith.muli %585, %c10_i32_237 : i32
    %662 = arith.addi %661, %c5_i32_235 : i32
    %663 = arith.index_cast %662 : i32 to index
    %664 = memref.load %arg2[%663] : memref<80xi32, #tpu.memory_space<smem>>
    %665 = arith.index_cast %660 : i32 to index
    %c0_238 = arith.constant 0 : index
    %666 = vector.load %arg3[%665, %c0_238] : memref<64x128xf32, #tpu.memory_space<vmem>>, vector<1x128xf32>
    %667 = arith.addf %653, %666 : vector<1x128xf32>
    %668 = arith.index_cast %664 : i32 to index
    %c0_239 = arith.constant 0 : index
    %669 = vector.load %arg3[%668, %c0_239] : memref<64x128xf32, #tpu.memory_space<vmem>>, vector<1x128xf32>
    %670 = arith.addf %656, %669 : vector<1x128xf32>
    %c6_i32_240 = arith.constant 6 : i32
    %c10_i32_241 = arith.constant 10 : i32
    %671 = arith.muli %585, %c10_i32_241 : i32
    %672 = arith.addi %671, %c6_i32_240 : i32
    %673 = arith.index_cast %672 : i32 to index
    %674 = memref.load %arg1[%673] : memref<80xi32, #tpu.memory_space<smem>>
    %c10_i32_242 = arith.constant 10 : i32
    %675 = arith.muli %585, %c10_i32_242 : i32
    %676 = arith.addi %675, %c6_i32_240 : i32
    %677 = arith.index_cast %676 : i32 to index
    %678 = memref.load %arg2[%677] : memref<80xi32, #tpu.memory_space<smem>>
    %679 = arith.index_cast %674 : i32 to index
    %c0_243 = arith.constant 0 : index
    %680 = vector.load %arg3[%679, %c0_243] : memref<64x128xf32, #tpu.memory_space<vmem>>, vector<1x128xf32>
    %681 = arith.addf %667, %680 : vector<1x128xf32>
    %682 = arith.index_cast %678 : i32 to index
    %c0_244 = arith.constant 0 : index
    %683 = vector.load %arg3[%682, %c0_244] : memref<64x128xf32, #tpu.memory_space<vmem>>, vector<1x128xf32>
    %684 = arith.addf %670, %683 : vector<1x128xf32>
    %c7_i32_245 = arith.constant 7 : i32
    %c10_i32_246 = arith.constant 10 : i32
    %685 = arith.muli %585, %c10_i32_246 : i32
    %686 = arith.addi %685, %c7_i32_245 : i32
    %687 = arith.index_cast %686 : i32 to index
    %688 = memref.load %arg1[%687] : memref<80xi32, #tpu.memory_space<smem>>
    %c10_i32_247 = arith.constant 10 : i32
    %689 = arith.muli %585, %c10_i32_247 : i32
    %690 = arith.addi %689, %c7_i32_245 : i32
    %691 = arith.index_cast %690 : i32 to index
    %692 = memref.load %arg2[%691] : memref<80xi32, #tpu.memory_space<smem>>
    %693 = arith.index_cast %688 : i32 to index
    %c0_248 = arith.constant 0 : index
    %694 = vector.load %arg3[%693, %c0_248] : memref<64x128xf32, #tpu.memory_space<vmem>>, vector<1x128xf32>
    %695 = arith.addf %681, %694 : vector<1x128xf32>
    %696 = arith.index_cast %692 : i32 to index
    %c0_249 = arith.constant 0 : index
    %697 = vector.load %arg3[%696, %c0_249] : memref<64x128xf32, #tpu.memory_space<vmem>>, vector<1x128xf32>
    %698 = arith.addf %684, %697 : vector<1x128xf32>
    %c8_i32_250 = arith.constant 8 : i32
    %c10_i32_251 = arith.constant 10 : i32
    %699 = arith.muli %585, %c10_i32_251 : i32
    %700 = arith.addi %699, %c8_i32_250 : i32
    %701 = arith.index_cast %700 : i32 to index
    %702 = memref.load %arg1[%701] : memref<80xi32, #tpu.memory_space<smem>>
    %c10_i32_252 = arith.constant 10 : i32
    %703 = arith.muli %585, %c10_i32_252 : i32
    %704 = arith.addi %703, %c8_i32_250 : i32
    %705 = arith.index_cast %704 : i32 to index
    %706 = memref.load %arg2[%705] : memref<80xi32, #tpu.memory_space<smem>>
    %707 = arith.index_cast %702 : i32 to index
    %c0_253 = arith.constant 0 : index
    %708 = vector.load %arg3[%707, %c0_253] : memref<64x128xf32, #tpu.memory_space<vmem>>, vector<1x128xf32>
    %709 = arith.addf %695, %708 : vector<1x128xf32>
    %710 = arith.index_cast %706 : i32 to index
    %c0_254 = arith.constant 0 : index
    %711 = vector.load %arg3[%710, %c0_254] : memref<64x128xf32, #tpu.memory_space<vmem>>, vector<1x128xf32>
    %712 = arith.addf %698, %711 : vector<1x128xf32>
    %c9_i32_255 = arith.constant 9 : i32
    %c10_i32_256 = arith.constant 10 : i32
    %713 = arith.muli %585, %c10_i32_256 : i32
    %714 = arith.addi %713, %c9_i32_255 : i32
    %715 = arith.index_cast %714 : i32 to index
    %716 = memref.load %arg1[%715] : memref<80xi32, #tpu.memory_space<smem>>
    %c10_i32_257 = arith.constant 10 : i32
    %717 = arith.muli %585, %c10_i32_257 : i32
    %718 = arith.addi %717, %c9_i32_255 : i32
    %719 = arith.index_cast %718 : i32 to index
    %720 = memref.load %arg2[%719] : memref<80xi32, #tpu.memory_space<smem>>
    %721 = arith.index_cast %716 : i32 to index
    %c0_258 = arith.constant 0 : index
    %722 = vector.load %arg3[%721, %c0_258] : memref<64x128xf32, #tpu.memory_space<vmem>>, vector<1x128xf32>
    %723 = arith.addf %709, %722 : vector<1x128xf32>
    %724 = arith.index_cast %720 : i32 to index
    %c0_259 = arith.constant 0 : index
    %725 = vector.load %arg3[%724, %c0_259] : memref<64x128xf32, #tpu.memory_space<vmem>>, vector<1x128xf32>
    %726 = arith.addf %712, %725 : vector<1x128xf32>
    %c10_i32_260 = arith.constant 10 : i32
    %cst_261 = arith.constant 1.000000e-01 : f32
    %727 = vector.broadcast %cst_261 : f32 to vector<1x128xf32>
    %728 = arith.mulf %723, %727 : vector<1x128xf32>
    %cst_262 = arith.constant 1.000000e-01 : f32
    %729 = vector.broadcast %cst_262 : f32 to vector<1x128xf32>
    %730 = arith.mulf %726, %729 : vector<1x128xf32>
    %c5_i32_263 = arith.constant 5 : i32
    %731 = arith.addi %0, %c5_i32_263 : i32
    %cst_264 = arith.constant 0.000000e+00 : f32
    %732 = vector.broadcast %cst_264 : f32 to vector<1x128xf32>
    %c0_i32_265 = arith.constant 0 : i32
    %c10_i32_266 = arith.constant 10 : i32
    %733 = arith.muli %731, %c10_i32_266 : i32
    %734 = arith.addi %733, %c0_i32_265 : i32
    %735 = arith.index_cast %734 : i32 to index
    %736 = memref.load %arg1[%735] : memref<80xi32, #tpu.memory_space<smem>>
    %c10_i32_267 = arith.constant 10 : i32
    %737 = arith.muli %731, %c10_i32_267 : i32
    %738 = arith.addi %737, %c0_i32_265 : i32
    %739 = arith.index_cast %738 : i32 to index
    %740 = memref.load %arg2[%739] : memref<80xi32, #tpu.memory_space<smem>>
    %741 = arith.index_cast %736 : i32 to index
    %c0_268 = arith.constant 0 : index
    %742 = vector.load %arg3[%741, %c0_268] : memref<64x128xf32, #tpu.memory_space<vmem>>, vector<1x128xf32>
    %743 = arith.addf %732, %742 : vector<1x128xf32>
    %744 = arith.index_cast %740 : i32 to index
    %c0_269 = arith.constant 0 : index
    %745 = vector.load %arg3[%744, %c0_269] : memref<64x128xf32, #tpu.memory_space<vmem>>, vector<1x128xf32>
    %746 = arith.addf %732, %745 : vector<1x128xf32>
    %c1_i32_270 = arith.constant 1 : i32
    %c10_i32_271 = arith.constant 10 : i32
    %747 = arith.muli %731, %c10_i32_271 : i32
    %748 = arith.addi %747, %c1_i32_270 : i32
    %749 = arith.index_cast %748 : i32 to index
    %750 = memref.load %arg1[%749] : memref<80xi32, #tpu.memory_space<smem>>
    %c10_i32_272 = arith.constant 10 : i32
    %751 = arith.muli %731, %c10_i32_272 : i32
    %752 = arith.addi %751, %c1_i32_270 : i32
    %753 = arith.index_cast %752 : i32 to index
    %754 = memref.load %arg2[%753] : memref<80xi32, #tpu.memory_space<smem>>
    %755 = arith.index_cast %750 : i32 to index
    %c0_273 = arith.constant 0 : index
    %756 = vector.load %arg3[%755, %c0_273] : memref<64x128xf32, #tpu.memory_space<vmem>>, vector<1x128xf32>
    %757 = arith.addf %743, %756 : vector<1x128xf32>
    %758 = arith.index_cast %754 : i32 to index
    %c0_274 = arith.constant 0 : index
    %759 = vector.load %arg3[%758, %c0_274] : memref<64x128xf32, #tpu.memory_space<vmem>>, vector<1x128xf32>
    %760 = arith.addf %746, %759 : vector<1x128xf32>
    %c2_i32_275 = arith.constant 2 : i32
    %c10_i32_276 = arith.constant 10 : i32
    %761 = arith.muli %731, %c10_i32_276 : i32
    %762 = arith.addi %761, %c2_i32_275 : i32
    %763 = arith.index_cast %762 : i32 to index
    %764 = memref.load %arg1[%763] : memref<80xi32, #tpu.memory_space<smem>>
    %c10_i32_277 = arith.constant 10 : i32
    %765 = arith.muli %731, %c10_i32_277 : i32
    %766 = arith.addi %765, %c2_i32_275 : i32
    %767 = arith.index_cast %766 : i32 to index
    %768 = memref.load %arg2[%767] : memref<80xi32, #tpu.memory_space<smem>>
    %769 = arith.index_cast %764 : i32 to index
    %c0_278 = arith.constant 0 : index
    %770 = vector.load %arg3[%769, %c0_278] : memref<64x128xf32, #tpu.memory_space<vmem>>, vector<1x128xf32>
    %771 = arith.addf %757, %770 : vector<1x128xf32>
    %772 = arith.index_cast %768 : i32 to index
    %c0_279 = arith.constant 0 : index
    %773 = vector.load %arg3[%772, %c0_279] : memref<64x128xf32, #tpu.memory_space<vmem>>, vector<1x128xf32>
    %774 = arith.addf %760, %773 : vector<1x128xf32>
    %c3_i32_280 = arith.constant 3 : i32
    %c10_i32_281 = arith.constant 10 : i32
    %775 = arith.muli %731, %c10_i32_281 : i32
    %776 = arith.addi %775, %c3_i32_280 : i32
    %777 = arith.index_cast %776 : i32 to index
    %778 = memref.load %arg1[%777] : memref<80xi32, #tpu.memory_space<smem>>
    %c10_i32_282 = arith.constant 10 : i32
    %779 = arith.muli %731, %c10_i32_282 : i32
    %780 = arith.addi %779, %c3_i32_280 : i32
    %781 = arith.index_cast %780 : i32 to index
    %782 = memref.load %arg2[%781] : memref<80xi32, #tpu.memory_space<smem>>
    %783 = arith.index_cast %778 : i32 to index
    %c0_283 = arith.constant 0 : index
    %784 = vector.load %arg3[%783, %c0_283] : memref<64x128xf32, #tpu.memory_space<vmem>>, vector<1x128xf32>
    %785 = arith.addf %771, %784 : vector<1x128xf32>
    %786 = arith.index_cast %782 : i32 to index
    %c0_284 = arith.constant 0 : index
    %787 = vector.load %arg3[%786, %c0_284] : memref<64x128xf32, #tpu.memory_space<vmem>>, vector<1x128xf32>
    %788 = arith.addf %774, %787 : vector<1x128xf32>
    %c4_i32_285 = arith.constant 4 : i32
    %c10_i32_286 = arith.constant 10 : i32
    %789 = arith.muli %731, %c10_i32_286 : i32
    %790 = arith.addi %789, %c4_i32_285 : i32
    %791 = arith.index_cast %790 : i32 to index
    %792 = memref.load %arg1[%791] : memref<80xi32, #tpu.memory_space<smem>>
    %c10_i32_287 = arith.constant 10 : i32
    %793 = arith.muli %731, %c10_i32_287 : i32
    %794 = arith.addi %793, %c4_i32_285 : i32
    %795 = arith.index_cast %794 : i32 to index
    %796 = memref.load %arg2[%795] : memref<80xi32, #tpu.memory_space<smem>>
    %797 = arith.index_cast %792 : i32 to index
    %c0_288 = arith.constant 0 : index
    %798 = vector.load %arg3[%797, %c0_288] : memref<64x128xf32, #tpu.memory_space<vmem>>, vector<1x128xf32>
    %799 = arith.addf %785, %798 : vector<1x128xf32>
    %800 = arith.index_cast %796 : i32 to index
    %c0_289 = arith.constant 0 : index
    %801 = vector.load %arg3[%800, %c0_289] : memref<64x128xf32, #tpu.memory_space<vmem>>, vector<1x128xf32>
    %802 = arith.addf %788, %801 : vector<1x128xf32>
    %c5_i32_290 = arith.constant 5 : i32
    %c10_i32_291 = arith.constant 10 : i32
    %803 = arith.muli %731, %c10_i32_291 : i32
    %804 = arith.addi %803, %c5_i32_290 : i32
    %805 = arith.index_cast %804 : i32 to index
    %806 = memref.load %arg1[%805] : memref<80xi32, #tpu.memory_space<smem>>
    %c10_i32_292 = arith.constant 10 : i32
    %807 = arith.muli %731, %c10_i32_292 : i32
    %808 = arith.addi %807, %c5_i32_290 : i32
    %809 = arith.index_cast %808 : i32 to index
    %810 = memref.load %arg2[%809] : memref<80xi32, #tpu.memory_space<smem>>
    %811 = arith.index_cast %806 : i32 to index
    %c0_293 = arith.constant 0 : index
    %812 = vector.load %arg3[%811, %c0_293] : memref<64x128xf32, #tpu.memory_space<vmem>>, vector<1x128xf32>
    %813 = arith.addf %799, %812 : vector<1x128xf32>
    %814 = arith.index_cast %810 : i32 to index
    %c0_294 = arith.constant 0 : index
    %815 = vector.load %arg3[%814, %c0_294] : memref<64x128xf32, #tpu.memory_space<vmem>>, vector<1x128xf32>
    %816 = arith.addf %802, %815 : vector<1x128xf32>
    %c6_i32_295 = arith.constant 6 : i32
    %c10_i32_296 = arith.constant 10 : i32
    %817 = arith.muli %731, %c10_i32_296 : i32
    %818 = arith.addi %817, %c6_i32_295 : i32
    %819 = arith.index_cast %818 : i32 to index
    %820 = memref.load %arg1[%819] : memref<80xi32, #tpu.memory_space<smem>>
    %c10_i32_297 = arith.constant 10 : i32
    %821 = arith.muli %731, %c10_i32_297 : i32
    %822 = arith.addi %821, %c6_i32_295 : i32
    %823 = arith.index_cast %822 : i32 to index
    %824 = memref.load %arg2[%823] : memref<80xi32, #tpu.memory_space<smem>>
    %825 = arith.index_cast %820 : i32 to index
    %c0_298 = arith.constant 0 : index
    %826 = vector.load %arg3[%825, %c0_298] : memref<64x128xf32, #tpu.memory_space<vmem>>, vector<1x128xf32>
    %827 = arith.addf %813, %826 : vector<1x128xf32>
    %828 = arith.index_cast %824 : i32 to index
    %c0_299 = arith.constant 0 : index
    %829 = vector.load %arg3[%828, %c0_299] : memref<64x128xf32, #tpu.memory_space<vmem>>, vector<1x128xf32>
    %830 = arith.addf %816, %829 : vector<1x128xf32>
    %c7_i32_300 = arith.constant 7 : i32
    %c10_i32_301 = arith.constant 10 : i32
    %831 = arith.muli %731, %c10_i32_301 : i32
    %832 = arith.addi %831, %c7_i32_300 : i32
    %833 = arith.index_cast %832 : i32 to index
    %834 = memref.load %arg1[%833] : memref<80xi32, #tpu.memory_space<smem>>
    %c10_i32_302 = arith.constant 10 : i32
    %835 = arith.muli %731, %c10_i32_302 : i32
    %836 = arith.addi %835, %c7_i32_300 : i32
    %837 = arith.index_cast %836 : i32 to index
    %838 = memref.load %arg2[%837] : memref<80xi32, #tpu.memory_space<smem>>
    %839 = arith.index_cast %834 : i32 to index
    %c0_303 = arith.constant 0 : index
    %840 = vector.load %arg3[%839, %c0_303] : memref<64x128xf32, #tpu.memory_space<vmem>>, vector<1x128xf32>
    %841 = arith.addf %827, %840 : vector<1x128xf32>
    %842 = arith.index_cast %838 : i32 to index
    %c0_304 = arith.constant 0 : index
    %843 = vector.load %arg3[%842, %c0_304] : memref<64x128xf32, #tpu.memory_space<vmem>>, vector<1x128xf32>
    %844 = arith.addf %830, %843 : vector<1x128xf32>
    %c8_i32_305 = arith.constant 8 : i32
    %c10_i32_306 = arith.constant 10 : i32
    %845 = arith.muli %731, %c10_i32_306 : i32
    %846 = arith.addi %845, %c8_i32_305 : i32
    %847 = arith.index_cast %846 : i32 to index
    %848 = memref.load %arg1[%847] : memref<80xi32, #tpu.memory_space<smem>>
    %c10_i32_307 = arith.constant 10 : i32
    %849 = arith.muli %731, %c10_i32_307 : i32
    %850 = arith.addi %849, %c8_i32_305 : i32
    %851 = arith.index_cast %850 : i32 to index
    %852 = memref.load %arg2[%851] : memref<80xi32, #tpu.memory_space<smem>>
    %853 = arith.index_cast %848 : i32 to index
    %c0_308 = arith.constant 0 : index
    %854 = vector.load %arg3[%853, %c0_308] : memref<64x128xf32, #tpu.memory_space<vmem>>, vector<1x128xf32>
    %855 = arith.addf %841, %854 : vector<1x128xf32>
    %856 = arith.index_cast %852 : i32 to index
    %c0_309 = arith.constant 0 : index
    %857 = vector.load %arg3[%856, %c0_309] : memref<64x128xf32, #tpu.memory_space<vmem>>, vector<1x128xf32>
    %858 = arith.addf %844, %857 : vector<1x128xf32>
    %c9_i32_310 = arith.constant 9 : i32
    %c10_i32_311 = arith.constant 10 : i32
    %859 = arith.muli %731, %c10_i32_311 : i32
    %860 = arith.addi %859, %c9_i32_310 : i32
    %861 = arith.index_cast %860 : i32 to index
    %862 = memref.load %arg1[%861] : memref<80xi32, #tpu.memory_space<smem>>
    %c10_i32_312 = arith.constant 10 : i32
    %863 = arith.muli %731, %c10_i32_312 : i32
    %864 = arith.addi %863, %c9_i32_310 : i32
    %865 = arith.index_cast %864 : i32 to index
    %866 = memref.load %arg2[%865] : memref<80xi32, #tpu.memory_space<smem>>
    %867 = arith.index_cast %862 : i32 to index
    %c0_313 = arith.constant 0 : index
    %868 = vector.load %arg3[%867, %c0_313] : memref<64x128xf32, #tpu.memory_space<vmem>>, vector<1x128xf32>
    %869 = arith.addf %855, %868 : vector<1x128xf32>
    %870 = arith.index_cast %866 : i32 to index
    %c0_314 = arith.constant 0 : index
    %871 = vector.load %arg3[%870, %c0_314] : memref<64x128xf32, #tpu.memory_space<vmem>>, vector<1x128xf32>
    %872 = arith.addf %858, %871 : vector<1x128xf32>
    %c10_i32_315 = arith.constant 10 : i32
    %cst_316 = arith.constant 1.000000e-01 : f32
    %873 = vector.broadcast %cst_316 : f32 to vector<1x128xf32>
    %874 = arith.mulf %869, %873 : vector<1x128xf32>
    %cst_317 = arith.constant 1.000000e-01 : f32
    %875 = vector.broadcast %cst_317 : f32 to vector<1x128xf32>
    %876 = arith.mulf %872, %875 : vector<1x128xf32>
    %c6_i32_318 = arith.constant 6 : i32
    %877 = arith.addi %0, %c6_i32_318 : i32
    %cst_319 = arith.constant 0.000000e+00 : f32
    %878 = vector.broadcast %cst_319 : f32 to vector<1x128xf32>
    %c0_i32_320 = arith.constant 0 : i32
    %c10_i32_321 = arith.constant 10 : i32
    %879 = arith.muli %877, %c10_i32_321 : i32
    %880 = arith.addi %879, %c0_i32_320 : i32
    %881 = arith.index_cast %880 : i32 to index
    %882 = memref.load %arg1[%881] : memref<80xi32, #tpu.memory_space<smem>>
    %c10_i32_322 = arith.constant 10 : i32
    %883 = arith.muli %877, %c10_i32_322 : i32
    %884 = arith.addi %883, %c0_i32_320 : i32
    %885 = arith.index_cast %884 : i32 to index
    %886 = memref.load %arg2[%885] : memref<80xi32, #tpu.memory_space<smem>>
    %887 = arith.index_cast %882 : i32 to index
    %c0_323 = arith.constant 0 : index
    %888 = vector.load %arg3[%887, %c0_323] : memref<64x128xf32, #tpu.memory_space<vmem>>, vector<1x128xf32>
    %889 = arith.addf %878, %888 : vector<1x128xf32>
    %890 = arith.index_cast %886 : i32 to index
    %c0_324 = arith.constant 0 : index
    %891 = vector.load %arg3[%890, %c0_324] : memref<64x128xf32, #tpu.memory_space<vmem>>, vector<1x128xf32>
    %892 = arith.addf %878, %891 : vector<1x128xf32>
    %c1_i32_325 = arith.constant 1 : i32
    %c10_i32_326 = arith.constant 10 : i32
    %893 = arith.muli %877, %c10_i32_326 : i32
    %894 = arith.addi %893, %c1_i32_325 : i32
    %895 = arith.index_cast %894 : i32 to index
    %896 = memref.load %arg1[%895] : memref<80xi32, #tpu.memory_space<smem>>
    %c10_i32_327 = arith.constant 10 : i32
    %897 = arith.muli %877, %c10_i32_327 : i32
    %898 = arith.addi %897, %c1_i32_325 : i32
    %899 = arith.index_cast %898 : i32 to index
    %900 = memref.load %arg2[%899] : memref<80xi32, #tpu.memory_space<smem>>
    %901 = arith.index_cast %896 : i32 to index
    %c0_328 = arith.constant 0 : index
    %902 = vector.load %arg3[%901, %c0_328] : memref<64x128xf32, #tpu.memory_space<vmem>>, vector<1x128xf32>
    %903 = arith.addf %889, %902 : vector<1x128xf32>
    %904 = arith.index_cast %900 : i32 to index
    %c0_329 = arith.constant 0 : index
    %905 = vector.load %arg3[%904, %c0_329] : memref<64x128xf32, #tpu.memory_space<vmem>>, vector<1x128xf32>
    %906 = arith.addf %892, %905 : vector<1x128xf32>
    %c2_i32_330 = arith.constant 2 : i32
    %c10_i32_331 = arith.constant 10 : i32
    %907 = arith.muli %877, %c10_i32_331 : i32
    %908 = arith.addi %907, %c2_i32_330 : i32
    %909 = arith.index_cast %908 : i32 to index
    %910 = memref.load %arg1[%909] : memref<80xi32, #tpu.memory_space<smem>>
    %c10_i32_332 = arith.constant 10 : i32
    %911 = arith.muli %877, %c10_i32_332 : i32
    %912 = arith.addi %911, %c2_i32_330 : i32
    %913 = arith.index_cast %912 : i32 to index
    %914 = memref.load %arg2[%913] : memref<80xi32, #tpu.memory_space<smem>>
    %915 = arith.index_cast %910 : i32 to index
    %c0_333 = arith.constant 0 : index
    %916 = vector.load %arg3[%915, %c0_333] : memref<64x128xf32, #tpu.memory_space<vmem>>, vector<1x128xf32>
    %917 = arith.addf %903, %916 : vector<1x128xf32>
    %918 = arith.index_cast %914 : i32 to index
    %c0_334 = arith.constant 0 : index
    %919 = vector.load %arg3[%918, %c0_334] : memref<64x128xf32, #tpu.memory_space<vmem>>, vector<1x128xf32>
    %920 = arith.addf %906, %919 : vector<1x128xf32>
    %c3_i32_335 = arith.constant 3 : i32
    %c10_i32_336 = arith.constant 10 : i32
    %921 = arith.muli %877, %c10_i32_336 : i32
    %922 = arith.addi %921, %c3_i32_335 : i32
    %923 = arith.index_cast %922 : i32 to index
    %924 = memref.load %arg1[%923] : memref<80xi32, #tpu.memory_space<smem>>
    %c10_i32_337 = arith.constant 10 : i32
    %925 = arith.muli %877, %c10_i32_337 : i32
    %926 = arith.addi %925, %c3_i32_335 : i32
    %927 = arith.index_cast %926 : i32 to index
    %928 = memref.load %arg2[%927] : memref<80xi32, #tpu.memory_space<smem>>
    %929 = arith.index_cast %924 : i32 to index
    %c0_338 = arith.constant 0 : index
    %930 = vector.load %arg3[%929, %c0_338] : memref<64x128xf32, #tpu.memory_space<vmem>>, vector<1x128xf32>
    %931 = arith.addf %917, %930 : vector<1x128xf32>
    %932 = arith.index_cast %928 : i32 to index
    %c0_339 = arith.constant 0 : index
    %933 = vector.load %arg3[%932, %c0_339] : memref<64x128xf32, #tpu.memory_space<vmem>>, vector<1x128xf32>
    %934 = arith.addf %920, %933 : vector<1x128xf32>
    %c4_i32_340 = arith.constant 4 : i32
    %c10_i32_341 = arith.constant 10 : i32
    %935 = arith.muli %877, %c10_i32_341 : i32
    %936 = arith.addi %935, %c4_i32_340 : i32
    %937 = arith.index_cast %936 : i32 to index
    %938 = memref.load %arg1[%937] : memref<80xi32, #tpu.memory_space<smem>>
    %c10_i32_342 = arith.constant 10 : i32
    %939 = arith.muli %877, %c10_i32_342 : i32
    %940 = arith.addi %939, %c4_i32_340 : i32
    %941 = arith.index_cast %940 : i32 to index
    %942 = memref.load %arg2[%941] : memref<80xi32, #tpu.memory_space<smem>>
    %943 = arith.index_cast %938 : i32 to index
    %c0_343 = arith.constant 0 : index
    %944 = vector.load %arg3[%943, %c0_343] : memref<64x128xf32, #tpu.memory_space<vmem>>, vector<1x128xf32>
    %945 = arith.addf %931, %944 : vector<1x128xf32>
    %946 = arith.index_cast %942 : i32 to index
    %c0_344 = arith.constant 0 : index
    %947 = vector.load %arg3[%946, %c0_344] : memref<64x128xf32, #tpu.memory_space<vmem>>, vector<1x128xf32>
    %948 = arith.addf %934, %947 : vector<1x128xf32>
    %c5_i32_345 = arith.constant 5 : i32
    %c10_i32_346 = arith.constant 10 : i32
    %949 = arith.muli %877, %c10_i32_346 : i32
    %950 = arith.addi %949, %c5_i32_345 : i32
    %951 = arith.index_cast %950 : i32 to index
    %952 = memref.load %arg1[%951] : memref<80xi32, #tpu.memory_space<smem>>
    %c10_i32_347 = arith.constant 10 : i32
    %953 = arith.muli %877, %c10_i32_347 : i32
    %954 = arith.addi %953, %c5_i32_345 : i32
    %955 = arith.index_cast %954 : i32 to index
    %956 = memref.load %arg2[%955] : memref<80xi32, #tpu.memory_space<smem>>
    %957 = arith.index_cast %952 : i32 to index
    %c0_348 = arith.constant 0 : index
    %958 = vector.load %arg3[%957, %c0_348] : memref<64x128xf32, #tpu.memory_space<vmem>>, vector<1x128xf32>
    %959 = arith.addf %945, %958 : vector<1x128xf32>
    %960 = arith.index_cast %956 : i32 to index
    %c0_349 = arith.constant 0 : index
    %961 = vector.load %arg3[%960, %c0_349] : memref<64x128xf32, #tpu.memory_space<vmem>>, vector<1x128xf32>
    %962 = arith.addf %948, %961 : vector<1x128xf32>
    %c6_i32_350 = arith.constant 6 : i32
    %c10_i32_351 = arith.constant 10 : i32
    %963 = arith.muli %877, %c10_i32_351 : i32
    %964 = arith.addi %963, %c6_i32_350 : i32
    %965 = arith.index_cast %964 : i32 to index
    %966 = memref.load %arg1[%965] : memref<80xi32, #tpu.memory_space<smem>>
    %c10_i32_352 = arith.constant 10 : i32
    %967 = arith.muli %877, %c10_i32_352 : i32
    %968 = arith.addi %967, %c6_i32_350 : i32
    %969 = arith.index_cast %968 : i32 to index
    %970 = memref.load %arg2[%969] : memref<80xi32, #tpu.memory_space<smem>>
    %971 = arith.index_cast %966 : i32 to index
    %c0_353 = arith.constant 0 : index
    %972 = vector.load %arg3[%971, %c0_353] : memref<64x128xf32, #tpu.memory_space<vmem>>, vector<1x128xf32>
    %973 = arith.addf %959, %972 : vector<1x128xf32>
    %974 = arith.index_cast %970 : i32 to index
    %c0_354 = arith.constant 0 : index
    %975 = vector.load %arg3[%974, %c0_354] : memref<64x128xf32, #tpu.memory_space<vmem>>, vector<1x128xf32>
    %976 = arith.addf %962, %975 : vector<1x128xf32>
    %c7_i32_355 = arith.constant 7 : i32
    %c10_i32_356 = arith.constant 10 : i32
    %977 = arith.muli %877, %c10_i32_356 : i32
    %978 = arith.addi %977, %c7_i32_355 : i32
    %979 = arith.index_cast %978 : i32 to index
    %980 = memref.load %arg1[%979] : memref<80xi32, #tpu.memory_space<smem>>
    %c10_i32_357 = arith.constant 10 : i32
    %981 = arith.muli %877, %c10_i32_357 : i32
    %982 = arith.addi %981, %c7_i32_355 : i32
    %983 = arith.index_cast %982 : i32 to index
    %984 = memref.load %arg2[%983] : memref<80xi32, #tpu.memory_space<smem>>
    %985 = arith.index_cast %980 : i32 to index
    %c0_358 = arith.constant 0 : index
    %986 = vector.load %arg3[%985, %c0_358] : memref<64x128xf32, #tpu.memory_space<vmem>>, vector<1x128xf32>
    %987 = arith.addf %973, %986 : vector<1x128xf32>
    %988 = arith.index_cast %984 : i32 to index
    %c0_359 = arith.constant 0 : index
    %989 = vector.load %arg3[%988, %c0_359] : memref<64x128xf32, #tpu.memory_space<vmem>>, vector<1x128xf32>
    %990 = arith.addf %976, %989 : vector<1x128xf32>
    %c8_i32_360 = arith.constant 8 : i32
    %c10_i32_361 = arith.constant 10 : i32
    %991 = arith.muli %877, %c10_i32_361 : i32
    %992 = arith.addi %991, %c8_i32_360 : i32
    %993 = arith.index_cast %992 : i32 to index
    %994 = memref.load %arg1[%993] : memref<80xi32, #tpu.memory_space<smem>>
    %c10_i32_362 = arith.constant 10 : i32
    %995 = arith.muli %877, %c10_i32_362 : i32
    %996 = arith.addi %995, %c8_i32_360 : i32
    %997 = arith.index_cast %996 : i32 to index
    %998 = memref.load %arg2[%997] : memref<80xi32, #tpu.memory_space<smem>>
    %999 = arith.index_cast %994 : i32 to index
    %c0_363 = arith.constant 0 : index
    %1000 = vector.load %arg3[%999, %c0_363] : memref<64x128xf32, #tpu.memory_space<vmem>>, vector<1x128xf32>
    %1001 = arith.addf %987, %1000 : vector<1x128xf32>
    %1002 = arith.index_cast %998 : i32 to index
    %c0_364 = arith.constant 0 : index
    %1003 = vector.load %arg3[%1002, %c0_364] : memref<64x128xf32, #tpu.memory_space<vmem>>, vector<1x128xf32>
    %1004 = arith.addf %990, %1003 : vector<1x128xf32>
    %c9_i32_365 = arith.constant 9 : i32
    %c10_i32_366 = arith.constant 10 : i32
    %1005 = arith.muli %877, %c10_i32_366 : i32
    %1006 = arith.addi %1005, %c9_i32_365 : i32
    %1007 = arith.index_cast %1006 : i32 to index
    %1008 = memref.load %arg1[%1007] : memref<80xi32, #tpu.memory_space<smem>>
    %c10_i32_367 = arith.constant 10 : i32
    %1009 = arith.muli %877, %c10_i32_367 : i32
    %1010 = arith.addi %1009, %c9_i32_365 : i32
    %1011 = arith.index_cast %1010 : i32 to index
    %1012 = memref.load %arg2[%1011] : memref<80xi32, #tpu.memory_space<smem>>
    %1013 = arith.index_cast %1008 : i32 to index
    %c0_368 = arith.constant 0 : index
    %1014 = vector.load %arg3[%1013, %c0_368] : memref<64x128xf32, #tpu.memory_space<vmem>>, vector<1x128xf32>
    %1015 = arith.addf %1001, %1014 : vector<1x128xf32>
    %1016 = arith.index_cast %1012 : i32 to index
    %c0_369 = arith.constant 0 : index
    %1017 = vector.load %arg3[%1016, %c0_369] : memref<64x128xf32, #tpu.memory_space<vmem>>, vector<1x128xf32>
    %1018 = arith.addf %1004, %1017 : vector<1x128xf32>
    %c10_i32_370 = arith.constant 10 : i32
    %cst_371 = arith.constant 1.000000e-01 : f32
    %1019 = vector.broadcast %cst_371 : f32 to vector<1x128xf32>
    %1020 = arith.mulf %1015, %1019 : vector<1x128xf32>
    %cst_372 = arith.constant 1.000000e-01 : f32
    %1021 = vector.broadcast %cst_372 : f32 to vector<1x128xf32>
    %1022 = arith.mulf %1018, %1021 : vector<1x128xf32>
    %c7_i32_373 = arith.constant 7 : i32
    %1023 = arith.addi %0, %c7_i32_373 : i32
    %cst_374 = arith.constant 0.000000e+00 : f32
    %1024 = vector.broadcast %cst_374 : f32 to vector<1x128xf32>
    %c0_i32_375 = arith.constant 0 : i32
    %c10_i32_376 = arith.constant 10 : i32
    %1025 = arith.muli %1023, %c10_i32_376 : i32
    %1026 = arith.addi %1025, %c0_i32_375 : i32
    %1027 = arith.index_cast %1026 : i32 to index
    %1028 = memref.load %arg1[%1027] : memref<80xi32, #tpu.memory_space<smem>>
    %c10_i32_377 = arith.constant 10 : i32
    %1029 = arith.muli %1023, %c10_i32_377 : i32
    %1030 = arith.addi %1029, %c0_i32_375 : i32
    %1031 = arith.index_cast %1030 : i32 to index
    %1032 = memref.load %arg2[%1031] : memref<80xi32, #tpu.memory_space<smem>>
    %1033 = arith.index_cast %1028 : i32 to index
    %c0_378 = arith.constant 0 : index
    %1034 = vector.load %arg3[%1033, %c0_378] : memref<64x128xf32, #tpu.memory_space<vmem>>, vector<1x128xf32>
    %1035 = arith.addf %1024, %1034 : vector<1x128xf32>
    %1036 = arith.index_cast %1032 : i32 to index
    %c0_379 = arith.constant 0 : index
    %1037 = vector.load %arg3[%1036, %c0_379] : memref<64x128xf32, #tpu.memory_space<vmem>>, vector<1x128xf32>
    %1038 = arith.addf %1024, %1037 : vector<1x128xf32>
    %c1_i32_380 = arith.constant 1 : i32
    %c10_i32_381 = arith.constant 10 : i32
    %1039 = arith.muli %1023, %c10_i32_381 : i32
    %1040 = arith.addi %1039, %c1_i32_380 : i32
    %1041 = arith.index_cast %1040 : i32 to index
    %1042 = memref.load %arg1[%1041] : memref<80xi32, #tpu.memory_space<smem>>
    %c10_i32_382 = arith.constant 10 : i32
    %1043 = arith.muli %1023, %c10_i32_382 : i32
    %1044 = arith.addi %1043, %c1_i32_380 : i32
    %1045 = arith.index_cast %1044 : i32 to index
    %1046 = memref.load %arg2[%1045] : memref<80xi32, #tpu.memory_space<smem>>
    %1047 = arith.index_cast %1042 : i32 to index
    %c0_383 = arith.constant 0 : index
    %1048 = vector.load %arg3[%1047, %c0_383] : memref<64x128xf32, #tpu.memory_space<vmem>>, vector<1x128xf32>
    %1049 = arith.addf %1035, %1048 : vector<1x128xf32>
    %1050 = arith.index_cast %1046 : i32 to index
    %c0_384 = arith.constant 0 : index
    %1051 = vector.load %arg3[%1050, %c0_384] : memref<64x128xf32, #tpu.memory_space<vmem>>, vector<1x128xf32>
    %1052 = arith.addf %1038, %1051 : vector<1x128xf32>
    %c2_i32_385 = arith.constant 2 : i32
    %c10_i32_386 = arith.constant 10 : i32
    %1053 = arith.muli %1023, %c10_i32_386 : i32
    %1054 = arith.addi %1053, %c2_i32_385 : i32
    %1055 = arith.index_cast %1054 : i32 to index
    %1056 = memref.load %arg1[%1055] : memref<80xi32, #tpu.memory_space<smem>>
    %c10_i32_387 = arith.constant 10 : i32
    %1057 = arith.muli %1023, %c10_i32_387 : i32
    %1058 = arith.addi %1057, %c2_i32_385 : i32
    %1059 = arith.index_cast %1058 : i32 to index
    %1060 = memref.load %arg2[%1059] : memref<80xi32, #tpu.memory_space<smem>>
    %1061 = arith.index_cast %1056 : i32 to index
    %c0_388 = arith.constant 0 : index
    %1062 = vector.load %arg3[%1061, %c0_388] : memref<64x128xf32, #tpu.memory_space<vmem>>, vector<1x128xf32>
    %1063 = arith.addf %1049, %1062 : vector<1x128xf32>
    %1064 = arith.index_cast %1060 : i32 to index
    %c0_389 = arith.constant 0 : index
    %1065 = vector.load %arg3[%1064, %c0_389] : memref<64x128xf32, #tpu.memory_space<vmem>>, vector<1x128xf32>
    %1066 = arith.addf %1052, %1065 : vector<1x128xf32>
    %c3_i32_390 = arith.constant 3 : i32
    %c10_i32_391 = arith.constant 10 : i32
    %1067 = arith.muli %1023, %c10_i32_391 : i32
    %1068 = arith.addi %1067, %c3_i32_390 : i32
    %1069 = arith.index_cast %1068 : i32 to index
    %1070 = memref.load %arg1[%1069] : memref<80xi32, #tpu.memory_space<smem>>
    %c10_i32_392 = arith.constant 10 : i32
    %1071 = arith.muli %1023, %c10_i32_392 : i32
    %1072 = arith.addi %1071, %c3_i32_390 : i32
    %1073 = arith.index_cast %1072 : i32 to index
    %1074 = memref.load %arg2[%1073] : memref<80xi32, #tpu.memory_space<smem>>
    %1075 = arith.index_cast %1070 : i32 to index
    %c0_393 = arith.constant 0 : index
    %1076 = vector.load %arg3[%1075, %c0_393] : memref<64x128xf32, #tpu.memory_space<vmem>>, vector<1x128xf32>
    %1077 = arith.addf %1063, %1076 : vector<1x128xf32>
    %1078 = arith.index_cast %1074 : i32 to index
    %c0_394 = arith.constant 0 : index
    %1079 = vector.load %arg3[%1078, %c0_394] : memref<64x128xf32, #tpu.memory_space<vmem>>, vector<1x128xf32>
    %1080 = arith.addf %1066, %1079 : vector<1x128xf32>
    %c4_i32_395 = arith.constant 4 : i32
    %c10_i32_396 = arith.constant 10 : i32
    %1081 = arith.muli %1023, %c10_i32_396 : i32
    %1082 = arith.addi %1081, %c4_i32_395 : i32
    %1083 = arith.index_cast %1082 : i32 to index
    %1084 = memref.load %arg1[%1083] : memref<80xi32, #tpu.memory_space<smem>>
    %c10_i32_397 = arith.constant 10 : i32
    %1085 = arith.muli %1023, %c10_i32_397 : i32
    %1086 = arith.addi %1085, %c4_i32_395 : i32
    %1087 = arith.index_cast %1086 : i32 to index
    %1088 = memref.load %arg2[%1087] : memref<80xi32, #tpu.memory_space<smem>>
    %1089 = arith.index_cast %1084 : i32 to index
    %c0_398 = arith.constant 0 : index
    %1090 = vector.load %arg3[%1089, %c0_398] : memref<64x128xf32, #tpu.memory_space<vmem>>, vector<1x128xf32>
    %1091 = arith.addf %1077, %1090 : vector<1x128xf32>
    %1092 = arith.index_cast %1088 : i32 to index
    %c0_399 = arith.constant 0 : index
    %1093 = vector.load %arg3[%1092, %c0_399] : memref<64x128xf32, #tpu.memory_space<vmem>>, vector<1x128xf32>
    %1094 = arith.addf %1080, %1093 : vector<1x128xf32>
    %c5_i32_400 = arith.constant 5 : i32
    %c10_i32_401 = arith.constant 10 : i32
    %1095 = arith.muli %1023, %c10_i32_401 : i32
    %1096 = arith.addi %1095, %c5_i32_400 : i32
    %1097 = arith.index_cast %1096 : i32 to index
    %1098 = memref.load %arg1[%1097] : memref<80xi32, #tpu.memory_space<smem>>
    %c10_i32_402 = arith.constant 10 : i32
    %1099 = arith.muli %1023, %c10_i32_402 : i32
    %1100 = arith.addi %1099, %c5_i32_400 : i32
    %1101 = arith.index_cast %1100 : i32 to index
    %1102 = memref.load %arg2[%1101] : memref<80xi32, #tpu.memory_space<smem>>
    %1103 = arith.index_cast %1098 : i32 to index
    %c0_403 = arith.constant 0 : index
    %1104 = vector.load %arg3[%1103, %c0_403] : memref<64x128xf32, #tpu.memory_space<vmem>>, vector<1x128xf32>
    %1105 = arith.addf %1091, %1104 : vector<1x128xf32>
    %1106 = arith.index_cast %1102 : i32 to index
    %c0_404 = arith.constant 0 : index
    %1107 = vector.load %arg3[%1106, %c0_404] : memref<64x128xf32, #tpu.memory_space<vmem>>, vector<1x128xf32>
    %1108 = arith.addf %1094, %1107 : vector<1x128xf32>
    %c6_i32_405 = arith.constant 6 : i32
    %c10_i32_406 = arith.constant 10 : i32
    %1109 = arith.muli %1023, %c10_i32_406 : i32
    %1110 = arith.addi %1109, %c6_i32_405 : i32
    %1111 = arith.index_cast %1110 : i32 to index
    %1112 = memref.load %arg1[%1111] : memref<80xi32, #tpu.memory_space<smem>>
    %c10_i32_407 = arith.constant 10 : i32
    %1113 = arith.muli %1023, %c10_i32_407 : i32
    %1114 = arith.addi %1113, %c6_i32_405 : i32
    %1115 = arith.index_cast %1114 : i32 to index
    %1116 = memref.load %arg2[%1115] : memref<80xi32, #tpu.memory_space<smem>>
    %1117 = arith.index_cast %1112 : i32 to index
    %c0_408 = arith.constant 0 : index
    %1118 = vector.load %arg3[%1117, %c0_408] : memref<64x128xf32, #tpu.memory_space<vmem>>, vector<1x128xf32>
    %1119 = arith.addf %1105, %1118 : vector<1x128xf32>
    %1120 = arith.index_cast %1116 : i32 to index
    %c0_409 = arith.constant 0 : index
    %1121 = vector.load %arg3[%1120, %c0_409] : memref<64x128xf32, #tpu.memory_space<vmem>>, vector<1x128xf32>
    %1122 = arith.addf %1108, %1121 : vector<1x128xf32>
    %c7_i32_410 = arith.constant 7 : i32
    %c10_i32_411 = arith.constant 10 : i32
    %1123 = arith.muli %1023, %c10_i32_411 : i32
    %1124 = arith.addi %1123, %c7_i32_410 : i32
    %1125 = arith.index_cast %1124 : i32 to index
    %1126 = memref.load %arg1[%1125] : memref<80xi32, #tpu.memory_space<smem>>
    %c10_i32_412 = arith.constant 10 : i32
    %1127 = arith.muli %1023, %c10_i32_412 : i32
    %1128 = arith.addi %1127, %c7_i32_410 : i32
    %1129 = arith.index_cast %1128 : i32 to index
    %1130 = memref.load %arg2[%1129] : memref<80xi32, #tpu.memory_space<smem>>
    %1131 = arith.index_cast %1126 : i32 to index
    %c0_413 = arith.constant 0 : index
    %1132 = vector.load %arg3[%1131, %c0_413] : memref<64x128xf32, #tpu.memory_space<vmem>>, vector<1x128xf32>
    %1133 = arith.addf %1119, %1132 : vector<1x128xf32>
    %1134 = arith.index_cast %1130 : i32 to index
    %c0_414 = arith.constant 0 : index
    %1135 = vector.load %arg3[%1134, %c0_414] : memref<64x128xf32, #tpu.memory_space<vmem>>, vector<1x128xf32>
    %1136 = arith.addf %1122, %1135 : vector<1x128xf32>
    %c8_i32_415 = arith.constant 8 : i32
    %c10_i32_416 = arith.constant 10 : i32
    %1137 = arith.muli %1023, %c10_i32_416 : i32
    %1138 = arith.addi %1137, %c8_i32_415 : i32
    %1139 = arith.index_cast %1138 : i32 to index
    %1140 = memref.load %arg1[%1139] : memref<80xi32, #tpu.memory_space<smem>>
    %c10_i32_417 = arith.constant 10 : i32
    %1141 = arith.muli %1023, %c10_i32_417 : i32
    %1142 = arith.addi %1141, %c8_i32_415 : i32
    %1143 = arith.index_cast %1142 : i32 to index
    %1144 = memref.load %arg2[%1143] : memref<80xi32, #tpu.memory_space<smem>>
    %1145 = arith.index_cast %1140 : i32 to index
    %c0_418 = arith.constant 0 : index
    %1146 = vector.load %arg3[%1145, %c0_418] : memref<64x128xf32, #tpu.memory_space<vmem>>, vector<1x128xf32>
    %1147 = arith.addf %1133, %1146 : vector<1x128xf32>
    %1148 = arith.index_cast %1144 : i32 to index
    %c0_419 = arith.constant 0 : index
    %1149 = vector.load %arg3[%1148, %c0_419] : memref<64x128xf32, #tpu.memory_space<vmem>>, vector<1x128xf32>
    %1150 = arith.addf %1136, %1149 : vector<1x128xf32>
    %c9_i32_420 = arith.constant 9 : i32
    %c10_i32_421 = arith.constant 10 : i32
    %1151 = arith.muli %1023, %c10_i32_421 : i32
    %1152 = arith.addi %1151, %c9_i32_420 : i32
    %1153 = arith.index_cast %1152 : i32 to index
    %1154 = memref.load %arg1[%1153] : memref<80xi32, #tpu.memory_space<smem>>
    %c10_i32_422 = arith.constant 10 : i32
    %1155 = arith.muli %1023, %c10_i32_422 : i32
    %1156 = arith.addi %1155, %c9_i32_420 : i32
    %1157 = arith.index_cast %1156 : i32 to index
    %1158 = memref.load %arg2[%1157] : memref<80xi32, #tpu.memory_space<smem>>
    %1159 = arith.index_cast %1154 : i32 to index
    %c0_423 = arith.constant 0 : index
    %1160 = vector.load %arg3[%1159, %c0_423] : memref<64x128xf32, #tpu.memory_space<vmem>>, vector<1x128xf32>
    %1161 = arith.addf %1147, %1160 : vector<1x128xf32>
    %1162 = arith.index_cast %1158 : i32 to index
    %c0_424 = arith.constant 0 : index
    %1163 = vector.load %arg3[%1162, %c0_424] : memref<64x128xf32, #tpu.memory_space<vmem>>, vector<1x128xf32>
    %1164 = arith.addf %1150, %1163 : vector<1x128xf32>
    %c10_i32_425 = arith.constant 10 : i32
    %cst_426 = arith.constant 1.000000e-01 : f32
    %1165 = vector.broadcast %cst_426 : f32 to vector<1x128xf32>
    %1166 = arith.mulf %1161, %1165 : vector<1x128xf32>
    %cst_427 = arith.constant 1.000000e-01 : f32
    %1167 = vector.broadcast %cst_427 : f32 to vector<1x128xf32>
    %1168 = arith.mulf %1164, %1167 : vector<1x128xf32>
    %1169 = tpu.concatenate %144, %290, %436, %582, %728, %874, %1020, %1166 in 0 : vector<1x128xf32>, vector<1x128xf32>, vector<1x128xf32>, vector<1x128xf32>, vector<1x128xf32>, vector<1x128xf32>, vector<1x128xf32>, vector<1x128xf32> -> vector<8x128xf32>
    %1170 = tpu.concatenate %146, %292, %438, %584, %730, %876, %1022, %1168 in 0 : vector<1x128xf32>, vector<1x128xf32>, vector<1x128xf32>, vector<1x128xf32>, vector<1x128xf32>, vector<1x128xf32>, vector<1x128xf32>, vector<1x128xf32> -> vector<8x128xf32>
    %1171 = arith.truncf %1169 : vector<8x128xf32> to vector<8x128xbf16>
    %c0_428 = arith.constant 0 : index
    %c0_429 = arith.constant 0 : index
    %1172 = vector.load %arg4[%c0_428, %c0_429] : memref<128x128xbf16, #tpu.memory_space<vmem>>, vector<128x128xbf16>
    %cst_430 = arith.constant dense<0.000000e+00> : vector<8x128xf32>
    %1173 = tpu.matmul %1171, %1172, %cst_430 {dimension_numbers = #tpu.dot_dimension_numbers<[1], [0], [0], [1], [0, 0, 1, 1], [], []>} : vector<8x128xbf16>, vector<128x128xbf16>, vector<8x128xf32> -> vector<8x128xf32>
    %1174 = arith.truncf %1170 : vector<8x128xf32> to vector<8x128xbf16>
    %c0_431 = arith.constant 0 : index
    %c0_432 = arith.constant 0 : index
    %1175 = vector.load %arg5[%c0_431, %c0_432] : memref<128x128xbf16, #tpu.memory_space<vmem>>, vector<128x128xbf16>
    %cst_433 = arith.constant dense<0.000000e+00> : vector<8x128xf32>
    %1176 = tpu.matmul %1174, %1175, %cst_433 {dimension_numbers = #tpu.dot_dimension_numbers<[1], [0], [0], [1], [0, 0, 1, 1], [], []>} : vector<8x128xbf16>, vector<128x128xbf16>, vector<8x128xf32> -> vector<8x128xf32>
    %1177 = arith.addf %1173, %1176 : vector<8x128xf32>
    %c0_434 = arith.constant 0 : index
    %c0_435 = arith.constant 0 : index
    %1178 = vector.load %arg6[%c0_434, %c0_435] : memref<1x128xf32, #tpu.memory_space<vmem>>, vector<1x128xf32>
    %1179 = vector.broadcast %1178 : vector<1x128xf32> to vector<8x128xf32>
    %1180 = arith.addf %1177, %1179 : vector<8x128xf32>
    %cst_436 = arith.constant 0.000000e+00 : f32
    %1181 = vector.broadcast %cst_436 : f32 to vector<8x128xf32>
    %1182 = arith.maximumf %1180, %1181 : vector<8x128xf32>
    %1183 = arith.truncf %1182 : vector<8x128xf32> to vector<8x128xbf16>
    %c0_437 = arith.constant 0 : index
    %c0_438 = arith.constant 0 : index
    %1184 = vector.load %arg7[%c0_437, %c0_438] : memref<128x128xbf16, #tpu.memory_space<vmem>>, vector<128x128xbf16>
    %cst_439 = arith.constant dense<0.000000e+00> : vector<8x128xf32>
    %1185 = tpu.matmul %1183, %1184, %cst_439 {dimension_numbers = #tpu.dot_dimension_numbers<[1], [0], [0], [1], [0, 0, 1, 1], [], []>} : vector<8x128xbf16>, vector<128x128xbf16>, vector<8x128xf32> -> vector<8x128xf32>
    %c0_440 = arith.constant 0 : index
    %c0_441 = arith.constant 0 : index
    %1186 = vector.load %arg8[%c0_440, %c0_441] : memref<1x128xf32, #tpu.memory_space<vmem>>, vector<1x128xf32>
    %1187 = vector.broadcast %1186 : vector<1x128xf32> to vector<8x128xf32>
    %1188 = arith.addf %1185, %1187 : vector<8x128xf32>
    %cst_442 = arith.constant 0.000000e+00 : f32
    %1189 = vector.broadcast %cst_442 : f32 to vector<8x128xf32>
    %1190 = arith.maximumf %1188, %1189 : vector<8x128xf32>
    %1191 = arith.truncf %1190 : vector<8x128xf32> to vector<8x128xbf16>
    %c0_443 = arith.constant 0 : index
    %c0_444 = arith.constant 0 : index
    %1192 = vector.load %arg9[%c0_443, %c0_444] : memref<128x128xbf16, #tpu.memory_space<vmem>>, vector<128x128xbf16>
    %cst_445 = arith.constant dense<0.000000e+00> : vector<8x128xf32>
    %1193 = tpu.matmul %1191, %1192, %cst_445 {dimension_numbers = #tpu.dot_dimension_numbers<[1], [0], [0], [1], [0, 0, 1, 1], [], []>} : vector<8x128xbf16>, vector<128x128xbf16>, vector<8x128xf32> -> vector<8x128xf32>
    %c0_446 = arith.constant 0 : index
    %c0_447 = arith.constant 0 : index
    %1194 = vector.load %arg10[%c0_446, %c0_447] : memref<1x128xf32, #tpu.memory_space<vmem>>, vector<1x128xf32>
    %1195 = vector.broadcast %1194 : vector<1x128xf32> to vector<8x128xf32>
    %1196 = arith.addf %1193, %1195 : vector<8x128xf32>
    %1197 = tpu.iota {dimensions = array<i32: 1>} : vector<8x128xi32>
    %c4_i32_448 = arith.constant 4 : i32
    %1198 = vector.broadcast %c4_i32_448 : i32 to vector<8x128xi32>
    %1199 = arith.cmpi slt, %1197, %1198 : vector<8x128xi32>
    %cst_449 = arith.constant 0xFF800000 : f32
    %1200 = vector.broadcast %cst_449 : f32 to vector<8x128xf32>
    %1201 = arith.select %1199, %1196, %1200 : vector<8x128xi1>, vector<8x128xf32>
    %cst_450 = arith.constant dense<0xFF800000> : vector<8xf32>
    %1202 = vector.multi_reduction <maximumf>, %1201, %cst_450 [1] : vector<8x128xf32> to vector<8xf32>
    %1203 = vector.shape_cast %1202 : vector<8xf32> to vector<8x1xf32>
    %1204 = vector.broadcast %1203 : vector<8x1xf32> to vector<8x128xf32>
    %1205 = arith.subf %1201, %1204 : vector<8x128xf32>
    %1206 = math.exp %1205 : vector<8x128xf32>
    %cst_451 = arith.constant dense<0.000000e+00> : vector<8xf32>
    %1207 = vector.multi_reduction <add>, %1206, %cst_451 [1] : vector<8x128xf32> to vector<8xf32>
    %1208 = vector.shape_cast %1207 : vector<8xf32> to vector<8x1xf32>
    %1209 = math.log %1208 : vector<8x1xf32>
    %1210 = arith.addf %1203, %1209 : vector<8x1xf32>
    %1211 = vector.broadcast %1210 : vector<8x1xf32> to vector<8x128xf32>
    %1212 = arith.subf %1201, %1211 : vector<8x128xf32>
    %c0_452 = arith.constant 0 : index
    %c0_453 = arith.constant 0 : index
    %1213 = vector.load %arg11[%c0_452, %c0_453] : memref<8x128xf32, #tpu.memory_space<vmem>>, vector<8x128xf32>
    tpu.vector_store %arg11[%c0_452, %c0_453], %1212 {strides = array<i32>} : memref<8x128xf32, #tpu.memory_space<vmem>>, vector<8x128xf32>,
    return
  }
  func.func @transform_0(%arg0: i32, %arg1: memref<80xi32, #tpu.memory_space<smem>>, %arg2: memref<80xi32, #tpu.memory_space<smem>>) -> (i32, i32) {
    %c0_i32 = arith.constant 0 : i32
    %c0_i32_0 = arith.constant 0 : i32
    %c0_i32_1 = arith.constant 0 : i32
    return %c0_i32, %c0_i32_0 : i32, i32
  }
  func.func @transform_1(%arg0: i32, %arg1: memref<80xi32, #tpu.memory_space<smem>>, %arg2: memref<80xi32, #tpu.memory_space<smem>>) -> (i32, i32) {
    %c0_i32 = arith.constant 0 : i32
    %c0_i32_0 = arith.constant 0 : i32
    %c0_i32_1 = arith.constant 0 : i32
    return %c0_i32, %c0_i32_0 : i32, i32
  }
  func.func @transform_2(%arg0: i32, %arg1: memref<80xi32, #tpu.memory_space<smem>>, %arg2: memref<80xi32, #tpu.memory_space<smem>>) -> (i32, i32) {
    %c0_i32 = arith.constant 0 : i32
    %c0_i32_0 = arith.constant 0 : i32
    %c0_i32_1 = arith.constant 0 : i32
    return %c0_i32, %c0_i32_0 : i32, i32
  }
  func.func @transform_3(%arg0: i32, %arg1: memref<80xi32, #tpu.memory_space<smem>>, %arg2: memref<80xi32, #tpu.memory_space<smem>>) -> (i32, i32) {
    %c0_i32 = arith.constant 0 : i32
    %c0_i32_0 = arith.constant 0 : i32
    %c0_i32_1 = arith.constant 0 : i32
    return %c0_i32, %c0_i32_0 : i32, i32
  }
  func.func @transform_4(%arg0: i32, %arg1: memref<80xi32, #tpu.memory_space<smem>>, %arg2: memref<80xi32, #tpu.memory_space<smem>>) -> (i32, i32) {
    %c0_i32 = arith.constant 0 : i32
    %c0_i32_0 = arith.constant 0 : i32
    %c0_i32_1 = arith.constant 0 : i32
    return %c0_i32, %c0_i32_0 : i32, i32
  }
  func.func @transform_5(%arg0: i32, %arg1: memref<80xi32, #tpu.memory_space<smem>>, %arg2: memref<80xi32, #tpu.memory_space<smem>>) -> (i32, i32) {
    %c0_i32 = arith.constant 0 : i32
    %c0_i32_0 = arith.constant 0 : i32
    %c0_i32_1 = arith.constant 0 : i32
    return %c0_i32, %c0_i32_0 : i32, i32
  }
  func.func @transform_6(%arg0: i32, %arg1: memref<80xi32, #tpu.memory_space<smem>>, %arg2: memref<80xi32, #tpu.memory_space<smem>>) -> (i32, i32) {
    %c0_i32 = arith.constant 0 : i32
    %c0_i32_0 = arith.constant 0 : i32
    %c0_i32_1 = arith.constant 0 : i32
    return %c0_i32, %c0_i32_0 : i32, i32
  }
  func.func @transform_7(%arg0: i32, %arg1: memref<80xi32, #tpu.memory_space<smem>>, %arg2: memref<80xi32, #tpu.memory_space<smem>>) -> (i32, i32) {
    %c0_i32 = arith.constant 0 : i32
    %c0_i32_0 = arith.constant 0 : i32
    %c0_i32_1 = arith.constant 0 : i32
    return %c0_i32, %c0_i32_0 : i32, i32
  }
  func.func @transform_8(%arg0: i32, %arg1: memref<80xi32, #tpu.memory_space<smem>>, %arg2: memref<80xi32, #tpu.memory_space<smem>>) -> (i32, i32) {
    %c0_i32 = arith.constant 0 : i32
    %c0_i32_0 = arith.constant 0 : i32
    return %arg0, %c0_i32 : i32, i32
  }
}

</mosaic_0001>

<llo_original>
// kernel: tpu_custom_call.1
$region0: #{tpu_custom_call.1}
  #allocation0 [shape = 'u32[]', space=smem, size = 0x4, offset = 0x4, fixed_abs, tag = 'smem constant byte address 0x4 - core index']
  #allocation1 [shape = 'u32[144,128]{1,0:T(1,128)}', space=vmem, size = 0x12000, scoped, tag = 'internal scratch']
  #allocation2 [shape = 's32[1]{0}', space=sflag, size = 0x4, scoped, tag = 'scoped memory for tpu_custom_call.1']
  #allocation3 [shape = 'u8[512]{0}', space=smem, size = 0x200, scoped, tag = 'prefetched SMEM operand 0']
  #allocation4 [shape = 'u8[512]{0}', space=smem, size = 0x200, scoped, tag = 'prefetched SMEM operand 1']
  %s0 = inlined_call_operand.hbm [shape: s32[80], index: 0, kind: input, shape index: {}]
  %s1 = inlined_call_operand.vmem [shape: s32[80], index: 1, kind: input, shape index: {}]
  %s2 = inlined_call_operand.hbm [shape: f32[64,128], index: 2, kind: input, shape index: {}]
  %s3 = inlined_call_operand.hbm [shape: bf16[128,128], index: 3, kind: input, shape index: {}]
  %s4 = inlined_call_operand.hbm [shape: bf16[128,128], index: 4, kind: input, shape index: {}]
  %s5 = inlined_call_operand.vmem [shape: f32[1,128], index: 5, kind: input, shape index: {}]
  %s6 = inlined_call_operand.hbm [shape: bf16[128,128], index: 6, kind: input, shape index: {}]
  %s7 = inlined_call_operand.vmem [shape: f32[1,128], index: 7, kind: input, shape index: {}]
  %s8 = inlined_call_operand.hbm [shape: bf16[128,128], index: 8, kind: input, shape index: {}]
  %s9 = inlined_call_operand.vmem [shape: f32[1,128], index: 9, kind: input, shape index: {}]
  %s10 = inlined_call_operand.hbm [shape: f32[8,128], index: 10, kind: output, shape index: {}]
  %s11 = sld [smem:[#allocation0]]
  $region62: #{tpu_custom_call.1} parent=0
    _
  %s13 = ssub.s32 1, %s11
  %s14 = scalar_select 0, %s13, %s11
  %16 = dma.hbm_to_smem %s0, 16, [#allocation3], [#allocation2]
  %s17 = sshll.u32 %s1, 4
  %s18 = int_to_ptr.vmem [resolvable:$true] %s17
  %20 = dma.vmem_to_smem %s18, 16, [#allocation4], [#allocation2]
  %21 = dma.done [#allocation2], 32
  %22 = sfence
  $region1: #{tpu_custom_call.1} parent=0
    #allocation5 [shape = 'u8[32768]{0}', space=vmem, size = 0x8000, scoped, tag = 'input window, operand 2, single buffered']
    #allocation6 [shape = 's32[1]{0}', space=sflag, size = 0x4, scoped, tag = 'scoped memory for tpu_custom_call.1']
    #allocation7 [shape = 's32[1]{0}', space=sflag, size = 0x4, scoped, tag = 'scoped memory for tpu_custom_call.1']
    #allocation8 [shape = 'u8[32768]{0}', space=vmem, size = 0x8000, scoped, tag = 'input window, operand 3, single buffered']
    #allocation9 [shape = 's32[1]{0}', space=sflag, size = 0x4, scoped, tag = 'scoped memory for tpu_custom_call.1']
    #allocation10 [shape = 'u8[32768]{0}', space=vmem, size = 0x8000, scoped, tag = 'input window, operand 4, single buffered']
    #allocation11 [shape = 'u8[32768]{0}', space=vmem, size = 0x8000, scoped, tag = 'input window, operand 6, single buffered']
    #allocation12 [shape = 's32[1]{0}', space=sflag, size = 0x4, scoped, tag = 'scoped memory for tpu_custom_call.1']
    #allocation13 [shape = 'u8[32768]{0}', space=vmem, size = 0x8000, scoped, tag = 'input window, operand 8, single buffered']
    #allocation14 [shape = 'u8[4096]{0}', space=vmem, size = 0x1000, scoped, tag = 'output window, operand 0, single buffered']
    %23 = vsyncpa [#allocation6], 0
    %24 = vsyncpa [#allocation9], 0
    %25 = vsyncpa [#allocation12], 0
    %26 = vsyncpa [#allocation7], 0
    // Predicated region
    $region2: #{tpu_custom_call.1} parent=1 // pred_check
      _
    $region3: #{tpu_custom_call.1} parent=1 // pred_check_branch
      %28 = sbr.rel (0) target = $region5
    $region4: #{tpu_custom_call.1} parent=1 // pred_region
      %s30 = ssub.s32 1024, 1024
      %31 = vsyncadd [#allocation6], %s30
      %s32 = sshll.u32 [#allocation5], 4
      %s33 = int_to_ptr.vmem [resolvable:$true] %s32
      %38 = dma.hbm_to_vmem [thread:$0]  %s2, 1024, %s33, [#allocation6], 128, 128, 8
    $region5: #{tpu_custom_call.1} parent=1 // pred_fallthru
      _
    // Predicated region
    $region6: #{tpu_custom_call.1} parent=1 // pred_check
      _
    $region7: #{tpu_custom_call.1} parent=1 // pred_check_branch
      %40 = sbr.rel (0) target = $region9
    $region8: #{tpu_custom_call.1} parent=1 // pred_region
      %s42 = ssub.s32 1024, 1024
      %43 = vsyncadd [#allocation9], %s42
      %s44 = sshll.u32 [#allocation8], 4
      %s45 = int_to_ptr.vmem [resolvable:$true] %s44
      %50 = dma.hbm_to_vmem [thread:$0]  %s3, 1024, %s45, [#allocation9], 64, 64, 4
    $region9: #{tpu_custom_call.1} parent=1 // pred_fallthru
      _
    // Predicated region
    $region10: #{tpu_custom_call.1} parent=1 // pred_check
      _
    $region11: #{tpu_custom_call.1} parent=1 // pred_check_branch
      %52 = sbr.rel (0) target = $region13
    $region12: #{tpu_custom_call.1} parent=1 // pred_region
      %s54 = ssub.s32 1024, 1024
      %55 = vsyncadd [#allocation9], %s54
      %s56 = sshll.u32 [#allocation10], 4
      %s57 = int_to_ptr.vmem [resolvable:$true] %s56
      %62 = dma.hbm_to_vmem [thread:$0]  %s4, 1024, %s57, [#allocation9], 64, 64, 4
    $region13: #{tpu_custom_call.1} parent=1 // pred_fallthru
      _
    // Predicated region
    $region14: #{tpu_custom_call.1} parent=1 // pred_check
      _
    $region15: #{tpu_custom_call.1} parent=1 // pred_check_branch
      %64 = sbr.rel (0) target = $region17
    $region16: #{tpu_custom_call.1} parent=1 // pred_region
      _
    $region17: #{tpu_custom_call.1} parent=1 // pred_fallthru
      _
    // Predicated region
    $region18: #{tpu_custom_call.1} parent=1 // pred_check
      _
    $region19: #{tpu_custom_call.1} parent=1 // pred_check_branch
      %66 = sbr.rel (0) target = $region21
    $region20: #{tpu_custom_call.1} parent=1 // pred_region
      %s68 = ssub.s32 1024, 1024
      %69 = vsyncadd [#allocation12], %s68
      %s70 = sshll.u32 [#allocation11], 4
      %s71 = int_to_ptr.vmem [resolvable:$true] %s70
      %76 = dma.hbm_to_vmem [thread:$0]  %s6, 1024, %s71, [#allocation12], 64, 64, 4
    $region21: #{tpu_custom_call.1} parent=1 // pred_fallthru
      _
    // Predicated region
    $region22: #{tpu_custom_call.1} parent=1 // pred_check
      _
    $region23: #{tpu_custom_call.1} parent=1 // pred_check_branch
      %78 = sbr.rel (0) target = $region25
    $region24: #{tpu_custom_call.1} parent=1 // pred_region
      _
    $region25: #{tpu_custom_call.1} parent=1 // pred_fallthru
      _
    // Predicated region
    $region26: #{tpu_custom_call.1} parent=1 // pred_check
      _
    $region27: #{tpu_custom_call.1} parent=1 // pred_check_branch
      %80 = sbr.rel (0) target = $region29
    $region28: #{tpu_custom_call.1} parent=1 // pred_region
      %s82 = ssub.s32 1024, 1024
      %83 = vsyncadd [#allocation12], %s82
      %s84 = sshll.u32 [#allocation13], 4
      %s85 = int_to_ptr.vmem [resolvable:$true] %s84
      %90 = dma.hbm_to_vmem [thread:$0]  %s8, 1024, %s85, [#allocation12], 64, 64, 4
    $region29: #{tpu_custom_call.1} parent=1 // pred_fallthru
      _
    // Predicated region
    $region30: #{tpu_custom_call.1} parent=1 // pred_check
      _
    $region31: #{tpu_custom_call.1} parent=1 // pred_check_branch
      %92 = sbr.rel (0) target = $region33
    $region32: #{tpu_custom_call.1} parent=1 // pred_region
      _
    $region33: #{tpu_custom_call.1} parent=1 // pred_fallthru
      _
    // Predicated region
    $region34: #{tpu_custom_call.1} parent=1 // pred_check
      _
    $region35: #{tpu_custom_call.1} parent=1 // pred_check_branch
      %94 = sbr.rel (0) target = $region37
    $region36: #{tpu_custom_call.1} parent=1 // pred_region
      %95 = dma.done [#allocation6], 1024
    $region37: #{tpu_custom_call.1} parent=1 // pred_fallthru
      _
    // Predicated region
    $region38: #{tpu_custom_call.1} parent=1 // pred_check
      _
    $region39: #{tpu_custom_call.1} parent=1 // pred_check_branch
      %97 = sbr.rel (0) target = $region41
    $region40: #{tpu_custom_call.1} parent=1 // pred_region
      %98 = dma.done [#allocation9], 1024
    $region41: #{tpu_custom_call.1} parent=1 // pred_fallthru
      _
    // Predicated region
    $region42: #{tpu_custom_call.1} parent=1 // pred_check
      _
    $region43: #{tpu_custom_call.1} parent=1 // pred_check_branch
      %100 = sbr.rel (0) target = $region45
    $region44: #{tpu_custom_call.1} parent=1 // pred_region
      %101 = dma.done [#allocation9], 1024
    $region45: #{tpu_custom_call.1} parent=1 // pred_fallthru
      _
    // Predicated region
    $region46: #{tpu_custom_call.1} parent=1 // pred_check
      _
    $region47: #{tpu_custom_call.1} parent=1 // pred_check_branch
      %103 = sbr.rel (0) target = $region49
    $region48: #{tpu_custom_call.1} parent=1 // pred_region
      %104 = dma.done [#allocation12], 1024
    $region49: #{tpu_custom_call.1} parent=1 // pred_fallthru
      _
    // Predicated region
    $region50: #{tpu_custom_call.1} parent=1 // pred_check
      _
    $region51: #{tpu_custom_call.1} parent=1 // pred_check_branch
      %106 = sbr.rel (0) target = $region53
    $region52: #{tpu_custom_call.1} parent=1 // pred_region
      %107 = dma.done [#allocation12], 1024
    $region53: #{tpu_custom_call.1} parent=1 // pred_fallthru
      _
    %s109 = smul.u32 0, 8
    %s110 = smul.u32 0, 80
    %s111 = sld [smem:[#allocation3 + %s110]]
    %s112 = sld [smem:[#allocation4 + %s110]]
    %s113 = scalar_lea.vmem [#allocation5], %s111
    %v114 = vld [vmem:[%s113] sm:$0x1]
    %v115 = vadd.f32 %v114, 0.0
    %s116 = scalar_lea.vmem [#allocation5], %s112
    %v117 = vld [vmem:[%s116] sm:$0x1]
    %v118 = vadd.f32 %v117, 0.0
    %s119 = sadd.s32 %s110, 1
    %s120 = sld [smem:[#allocation3 + %s119]]
    %s121 = sld [smem:[#allocation4 + %s119]]
    %s122 = scalar_lea.vmem [#allocation5], %s120
    %v123 = vld [vmem:[%s122] sm:$0x1]
    %v124 = vadd.f32 %v115, %v123
    %s125 = scalar_lea.vmem [#allocation5], %s121
    %v126 = vld [vmem:[%s125] sm:$0x1]
    %v127 = vadd.f32 %v118, %v126
    %s128 = sadd.s32 %s110, 2
    %s129 = sld [smem:[#allocation3 + %s128]]
    %s130 = sld [smem:[#allocation4 + %s128]]
    %s131 = scalar_lea.vmem [#allocation5], %s129
    %v132 = vld [vmem:[%s131] sm:$0x1]
    %v133 = vadd.f32 %v124, %v132
    %s134 = scalar_lea.vmem [#allocation5], %s130
    %v135 = vld [vmem:[%s134] sm:$0x1]
    %v136 = vadd.f32 %v127, %v135
    %s137 = sadd.s32 %s110, 3
    %s138 = sld [smem:[#allocation3 + %s137]]
    %s139 = sld [smem:[#allocation4 + %s137]]
    %s140 = scalar_lea.vmem [#allocation5], %s138
    %v141 = vld [vmem:[%s140] sm:$0x1]
    %v142 = vadd.f32 %v133, %v141
    %s143 = scalar_lea.vmem [#allocation5], %s139
    %v144 = vld [vmem:[%s143] sm:$0x1]
    %v145 = vadd.f32 %v136, %v144
    %s146 = sadd.s32 %s110, 4
    %s147 = sld [smem:[#allocation3 + %s146]]
    %s148 = sld [smem:[#allocation4 + %s146]]
    %s149 = scalar_lea.vmem [#allocation5], %s147
    %v150 = vld [vmem:[%s149] sm:$0x1]
    %v151 = vadd.f32 %v142, %v150
    %s152 = scalar_lea.vmem [#allocation5], %s148
    %v153 = vld [vmem:[%s152] sm:$0x1]
    %v154 = vadd.f32 %v145, %v153
    %s155 = sadd.s32 %s110, 5
    %s156 = sld [smem:[#allocation3 + %s155]]
    %s157 = sld [smem:[#allocation4 + %s155]]
    %s158 = scalar_lea.vmem [#allocation5], %s156
    %v159 = vld [vmem:[%s158] sm:$0x1]
    %v160 = vadd.f32 %v151, %v159
    %s161 = scalar_lea.vmem [#allocation5], %s157
    %v162 = vld [vmem:[%s161] sm:$0x1]
    %v163 = vadd.f32 %v154, %v162
    %s164 = sadd.s32 %s110, 6
    %s165 = sld [smem:[#allocation3 + %s164]]
    %s166 = sld [smem:[#allocation4 + %s164]]
    %s167 = scalar_lea.vmem [#allocation5], %s165
    %v168 = vld [vmem:[%s167] sm:$0x1]
    %v169 = vadd.f32 %v160, %v168
    %s170 = scalar_lea.vmem [#allocation5], %s166
    %v171 = vld [vmem:[%s170] sm:$0x1]
    %v172 = vadd.f32 %v163, %v171
    %s173 = sadd.s32 %s110, 7
    %s174 = sld [smem:[#allocation3 + %s173]]
    %s175 = sld [smem:[#allocation4 + %s173]]
    %s176 = scalar_lea.vmem [#allocation5], %s174
    %v177 = vld [vmem:[%s176] sm:$0x1]
    %v178 = vadd.f32 %v169, %v177
    %s179 = scalar_lea.vmem [#allocation5], %s175
    %v180 = vld [vmem:[%s179] sm:$0x1]
    %v181 = vadd.f32 %v172, %v180
    %s182 = sadd.s32 %s110, 8
    %s183 = sld [smem:[#allocation3 + %s182]]
    %s184 = sld [smem:[#allocation4 + %s182]]
    %s185 = scalar_lea.vmem [#allocation5], %s183
    %v186 = vld [vmem:[%s185] sm:$0x1]
    %v187 = vadd.f32 %v178, %v186
    %s188 = scalar_lea.vmem [#allocation5], %s184
    %v189 = vld [vmem:[%s188] sm:$0x1]
    %v190 = vadd.f32 %v181, %v189
    %s191 = sadd.s32 %s110, 9
    %s192 = sld [smem:[#allocation3 + %s191]]
    %s193 = sld [smem:[#allocation4 + %s191]]
    %s194 = scalar_lea.vmem [#allocation5], %s192
    %v195 = vld [vmem:[%s194] sm:$0x1]
    %v196 = vadd.f32 %v187, %v195
    %s197 = scalar_lea.vmem [#allocation5], %s193
    %v198 = vld [vmem:[%s197] sm:$0x1]
    %v199 = vadd.f32 %v190, %v198
    %v200 = vmul.f32 %v196, 0.1
    %v201 = vmul.f32 %v199, 0.1
    %s202 = sadd.s32 %s109, 1
    %s203 = smul.u32 %s202, 10
    %s204 = sld [smem:[#allocation3 + %s203]]
    %s205 = sld [smem:[#allocation4 + %s203]]
    %s206 = scalar_lea.vmem [#allocation5], %s204
    %v207 = vld [vmem:[%s206] sm:$0x1]
    %v208 = vadd.f32 %v207, 0.0
    %s209 = scalar_lea.vmem [#allocation5], %s205
    %v210 = vld [vmem:[%s209] sm:$0x1]
    %v211 = vadd.f32 %v210, 0.0
    %s212 = sadd.s32 %s203, 1
    %s213 = sld [smem:[#allocation3 + %s212]]
    %s214 = sld [smem:[#allocation4 + %s212]]
    %s215 = scalar_lea.vmem [#allocation5], %s213
    %v216 = vld [vmem:[%s215] sm:$0x1]
    %v217 = vadd.f32 %v208, %v216
    %s218 = scalar_lea.vmem [#allocation5], %s214
    %v219 = vld [vmem:[%s218] sm:$0x1]
    %v220 = vadd.f32 %v211, %v219
    %s221 = sadd.s32 %s203, 2
    %s222 = sld [smem:[#allocation3 + %s221]]
    %s223 = sld [smem:[#allocation4 + %s221]]
    %s224 = scalar_lea.vmem [#allocation5], %s222
    %v225 = vld [vmem:[%s224] sm:$0x1]
    %v226 = vadd.f32 %v217, %v225
    %s227 = scalar_lea.vmem [#allocation5], %s223
    %v228 = vld [vmem:[%s227] sm:$0x1]
    %v229 = vadd.f32 %v220, %v228
    %s230 = sadd.s32 %s203, 3
    %s231 = sld [smem:[#allocation3 + %s230]]
    %s232 = sld [smem:[#allocation4 + %s230]]
    %s233 = scalar_lea.vmem [#allocation5], %s231
    %v234 = vld [vmem:[%s233] sm:$0x1]
    %v235 = vadd.f32 %v226, %v234
    %s236 = scalar_lea.vmem [#allocation5], %s232
    %v237 = vld [vmem:[%s236] sm:$0x1]
    %v238 = vadd.f32 %v229, %v237
    %s239 = sadd.s32 %s203, 4
    %s240 = sld [smem:[#allocation3 + %s239]]
    %s241 = sld [smem:[#allocation4 + %s239]]
    %s242 = scalar_lea.vmem [#allocation5], %s240
    %v243 = vld [vmem:[%s242] sm:$0x1]
    %v244 = vadd.f32 %v235, %v243
    %s245 = scalar_lea.vmem [#allocation5], %s241
    %v246 = vld [vmem:[%s245] sm:$0x1]
    %v247 = vadd.f32 %v238, %v246
    %s248 = sadd.s32 %s203, 5
    %s249 = sld [smem:[#allocation3 + %s248]]
    %s250 = sld [smem:[#allocation4 + %s248]]
    %s251 = scalar_lea.vmem [#allocation5], %s249
    %v252 = vld [vmem:[%s251] sm:$0x1]
    %v253 = vadd.f32 %v244, %v252
    %s254 = scalar_lea.vmem [#allocation5], %s250
    %v255 = vld [vmem:[%s254] sm:$0x1]
    %v256 = vadd.f32 %v247, %v255
    %s257 = sadd.s32 %s203, 6
    %s258 = sld [smem:[#allocation3 + %s257]]
    %s259 = sld [smem:[#allocation4 + %s257]]
    %s260 = scalar_lea.vmem [#allocation5], %s258
    %v261 = vld [vmem:[%s260] sm:$0x1]
    %v262 = vadd.f32 %v253, %v261
    %s263 = scalar_lea.vmem [#allocation5], %s259
    %v264 = vld [vmem:[%s263] sm:$0x1]
    %v265 = vadd.f32 %v256, %v264
    %s266 = sadd.s32 %s203, 7
    %s267 = sld [smem:[#allocation3 + %s266]]
    %s268 = sld [smem:[#allocation4 + %s266]]
    %s269 = scalar_lea.vmem [#allocation5], %s267
    %v270 = vld [vmem:[%s269] sm:$0x1]
    %v271 = vadd.f32 %v262, %v270
    %s272 = scalar_lea.vmem [#allocation5], %s268
    %v273 = vld [vmem:[%s272] sm:$0x1]
    %v274 = vadd.f32 %v265, %v273
    %s275 = sadd.s32 %s203, 8
    %s276 = sld [smem:[#allocation3 + %s275]]
    %s277 = sld [smem:[#allocation4 + %s275]]
    %s278 = scalar_lea.vmem [#allocation5], %s276
    %v279 = vld [vmem:[%s278] sm:$0x1]
    %v280 = vadd.f32 %v271, %v279
    %s281 = scalar_lea.vmem [#allocation5], %s277
    %v282 = vld [vmem:[%s281] sm:$0x1]
    %v283 = vadd.f32 %v274, %v282
    %s284 = sadd.s32 %s203, 9
    %s285 = sld [smem:[#allocation3 + %s284]]
    %s286 = sld [smem:[#allocation4 + %s284]]
    %s287 = scalar_lea.vmem [#allocation5], %s285
    %v288 = vld [vmem:[%s287] sm:$0x1]
    %v289 = vadd.f32 %v280, %v288
    %s290 = scalar_lea.vmem [#allocation5], %s286
    %v291 = vld [vmem:[%s290] sm:$0x1]
    %v292 = vadd.f32 %v283, %v291
    %v293 = vmul.f32 %v289, 0.1
    %v294 = vmul.f32 %v292, 0.1
    %s295 = sadd.s32 %s109, 2
    %s296 = smul.u32 %s295, 10
    %s297 = sld [smem:[#allocation3 + %s296]]
    %s298 = sld [smem:[#allocation4 + %s296]]
    %s299 = scalar_lea.vmem [#allocation5], %s297
    %v300 = vld [vmem:[%s299] sm:$0x1]
    %v301 = vadd.f32 %v300, 0.0
    %s302 = scalar_lea.vmem [#allocation5], %s298
    %v303 = vld [vmem:[%s302] sm:$0x1]
    %v304 = vadd.f32 %v303, 0.0
    %s305 = sadd.s32 %s296, 1
    %s306 = sld [smem:[#allocation3 + %s305]]
    %s307 = sld [smem:[#allocation4 + %s305]]
    %s308 = scalar_lea.vmem [#allocation5], %s306
    %v309 = vld [vmem:[%s308] sm:$0x1]
    %v310 = vadd.f32 %v301, %v309
    %s311 = scalar_lea.vmem [#allocation5], %s307
    %v312 = vld [vmem:[%s311] sm:$0x1]
    %v313 = vadd.f32 %v304, %v312
    %s314 = sadd.s32 %s296, 2
    %s315 = sld [smem:[#allocation3 + %s314]]
    %s316 = sld [smem:[#allocation4 + %s314]]
    %s317 = scalar_lea.vmem [#allocation5], %s315
    %v318 = vld [vmem:[%s317] sm:$0x1]
    %v319 = vadd.f32 %v310, %v318
    %s320 = scalar_lea.vmem [#allocation5], %s316
    %v321 = vld [vmem:[%s320] sm:$0x1]
    %v322 = vadd.f32 %v313, %v321
    %s323 = sadd.s32 %s296, 3
    %s324 = sld [smem:[#allocation3 + %s323]]
    %s325 = sld [smem:[#allocation4 + %s323]]
    %s326 = scalar_lea.vmem [#allocation5], %s324
    %v327 = vld [vmem:[%s326] sm:$0x1]
    %v328 = vadd.f32 %v319, %v327
    %s329 = scalar_lea.vmem [#allocation5], %s325
    %v330 = vld [vmem:[%s329] sm:$0x1]
    %v331 = vadd.f32 %v322, %v330
    %s332 = sadd.s32 %s296, 4
    %s333 = sld [smem:[#allocation3 + %s332]]
    %s334 = sld [smem:[#allocation4 + %s332]]
    %s335 = scalar_lea.vmem [#allocation5], %s333
    %v336 = vld [vmem:[%s335] sm:$0x1]
    %v337 = vadd.f32 %v328, %v336
    %s338 = scalar_lea.vmem [#allocation5], %s334
    %v339 = vld [vmem:[%s338] sm:$0x1]
    %v340 = vadd.f32 %v331, %v339
    %s341 = sadd.s32 %s296, 5
    %s342 = sld [smem:[#allocation3 + %s341]]
    %s343 = sld [smem:[#allocation4 + %s341]]
    %s344 = scalar_lea.vmem [#allocation5], %s342
    %v345 = vld [vmem:[%s344] sm:$0x1]
    %v346 = vadd.f32 %v337, %v345
    %s347 = scalar_lea.vmem [#allocation5], %s343
    %v348 = vld [vmem:[%s347] sm:$0x1]
    %v349 = vadd.f32 %v340, %v348
    %s350 = sadd.s32 %s296, 6
    %s351 = sld [smem:[#allocation3 + %s350]]
    %s352 = sld [smem:[#allocation4 + %s350]]
    %s353 = scalar_lea.vmem [#allocation5], %s351
    %v354 = vld [vmem:[%s353] sm:$0x1]
    %v355 = vadd.f32 %v346, %v354
    %s356 = scalar_lea.vmem [#allocation5], %s352
    %v357 = vld [vmem:[%s356] sm:$0x1]
    %v358 = vadd.f32 %v349, %v357
    %s359 = sadd.s32 %s296, 7
    %s360 = sld [smem:[#allocation3 + %s359]]
    %s361 = sld [smem:[#allocation4 + %s359]]
    %s362 = scalar_lea.vmem [#allocation5], %s360
    %v363 = vld [vmem:[%s362] sm:$0x1]
    %v364 = vadd.f32 %v355, %v363
    %s365 = scalar_lea.vmem [#allocation5], %s361
    %v366 = vld [vmem:[%s365] sm:$0x1]
    %v367 = vadd.f32 %v358, %v366
    %s368 = sadd.s32 %s296, 8
    %s369 = sld [smem:[#allocation3 + %s368]]
    %s370 = sld [smem:[#allocation4 + %s368]]
    %s371 = scalar_lea.vmem [#allocation5], %s369
    %v372 = vld [vmem:[%s371] sm:$0x1]
    %v373 = vadd.f32 %v364, %v372
    %s374 = scalar_lea.vmem [#allocation5], %s370
    %v375 = vld [vmem:[%s374] sm:$0x1]
    %v376 = vadd.f32 %v367, %v375
    %s377 = sadd.s32 %s296, 9
    %s378 = sld [smem:[#allocation3 + %s377]]
    %s379 = sld [smem:[#allocation4 + %s377]]
    %s380 = scalar_lea.vmem [#allocation5], %s378
    %v381 = vld [vmem:[%s380] sm:$0x1]
    %v382 = vadd.f32 %v373, %v381
    %s383 = scalar_lea.vmem [#allocation5], %s379
    %v384 = vld [vmem:[%s383] sm:$0x1]
    %v385 = vadd.f32 %v376, %v384
    %v386 = vmul.f32 %v382, 0.1
    %v387 = vmul.f32 %v385, 0.1
    %s388 = sadd.s32 %s109, 3
    %s389 = smul.u32 %s388, 10
    %s390 = sld [smem:[#allocation3 + %s389]]
    %s391 = sld [smem:[#allocation4 + %s389]]
    %s392 = scalar_lea.vmem [#allocation5], %s390
    %v393 = vld [vmem:[%s392] sm:$0x1]
    %v394 = vadd.f32 %v393, 0.0
    %s395 = scalar_lea.vmem [#allocation5], %s391
    %v396 = vld [vmem:[%s395] sm:$0x1]
    %v397 = vadd.f32 %v396, 0.0
    %s398 = sadd.s32 %s389, 1
    %s399 = sld [smem:[#allocation3 + %s398]]
    %s400 = sld [smem:[#allocation4 + %s398]]
    %s401 = scalar_lea.vmem [#allocation5], %s399
    %v402 = vld [vmem:[%s401] sm:$0x1]
    %v403 = vadd.f32 %v394, %v402
    %s404 = scalar_lea.vmem [#allocation5], %s400
    %v405 = vld [vmem:[%s404] sm:$0x1]
    %v406 = vadd.f32 %v397, %v405
    %s407 = sadd.s32 %s389, 2
    %s408 = sld [smem:[#allocation3 + %s407]]
    %s409 = sld [smem:[#allocation4 + %s407]]
    %s410 = scalar_lea.vmem [#allocation5], %s408
    %v411 = vld [vmem:[%s410] sm:$0x1]
    %v412 = vadd.f32 %v403, %v411
    %s413 = scalar_lea.vmem [#allocation5], %s409
    %v414 = vld [vmem:[%s413] sm:$0x1]
    %v415 = vadd.f32 %v406, %v414
    %s416 = sadd.s32 %s389, 3
    %s417 = sld [smem:[#allocation3 + %s416]]
    %s418 = sld [smem:[#allocation4 + %s416]]
    %s419 = scalar_lea.vmem [#allocation5], %s417
    %v420 = vld [vmem:[%s419] sm:$0x1]
    %v421 = vadd.f32 %v412, %v420
    %s422 = scalar_lea.vmem [#allocation5], %s418
    %v423 = vld [vmem:[%s422] sm:$0x1]
    %v424 = vadd.f32 %v415, %v423
    %s425 = sadd.s32 %s389, 4
    %s426 = sld [smem:[#allocation3 + %s425]]
    %s427 = sld [smem:[#allocation4 + %s425]]
    %s428 = scalar_lea.vmem [#allocation5], %s426
    %v429 = vld [vmem:[%s428] sm:$0x1]
    %v430 = vadd.f32 %v421, %v429
    %s431 = scalar_lea.vmem [#allocation5], %s427
    %v432 = vld [vmem:[%s431] sm:$0x1]
    %v433 = vadd.f32 %v424, %v432
    %s434 = sadd.s32 %s389, 5
    %s435 = sld [smem:[#allocation3 + %s434]]
    %s436 = sld [smem:[#allocation4 + %s434]]
    %s437 = scalar_lea.vmem [#allocation5], %s435
    %v438 = vld [vmem:[%s437] sm:$0x1]
    %v439 = vadd.f32 %v430, %v438
    %s440 = scalar_lea.vmem [#allocation5], %s436
    %v441 = vld [vmem:[%s440] sm:$0x1]
    %v442 = vadd.f32 %v433, %v441
    %s443 = sadd.s32 %s389, 6
    %s444 = sld [smem:[#allocation3 + %s443]]
    %s445 = sld [smem:[#allocation4 + %s443]]
    %s446 = scalar_lea.vmem [#allocation5], %s444
    %v447 = vld [vmem:[%s446] sm:$0x1]
    %v448 = vadd.f32 %v439, %v447
    %s449 = scalar_lea.vmem [#allocation5], %s445
    %v450 = vld [vmem:[%s449] sm:$0x1]
    %v451 = vadd.f32 %v442, %v450
    %s452 = sadd.s32 %s389, 7
    %s453 = sld [smem:[#allocation3 + %s452]]
    %s454 = sld [smem:[#allocation4 + %s452]]
    %s455 = scalar_lea.vmem [#allocation5], %s453
    %v456 = vld [vmem:[%s455] sm:$0x1]
    %v457 = vadd.f32 %v448, %v456
    %s458 = scalar_lea.vmem [#allocation5], %s454
    %v459 = vld [vmem:[%s458] sm:$0x1]
    %v460 = vadd.f32 %v451, %v459
    %s461 = sadd.s32 %s389, 8
    %s462 = sld [smem:[#allocation3 + %s461]]
    %s463 = sld [smem:[#allocation4 + %s461]]
    %s464 = scalar_lea.vmem [#allocation5], %s462
    %v465 = vld [vmem:[%s464] sm:$0x1]
    %v466 = vadd.f32 %v457, %v465
    %s467 = scalar_lea.vmem [#allocation5], %s463
    %v468 = vld [vmem:[%s467] sm:$0x1]
    %v469 = vadd.f32 %v460, %v468
    %s470 = sadd.s32 %s389, 9
    %s471 = sld [smem:[#allocation3 + %s470]]
    %s472 = sld [smem:[#allocation4 + %s470]]
    %s473 = scalar_lea.vmem [#allocation5], %s471
    %v474 = vld [vmem:[%s473] sm:$0x1]
    %v475 = vadd.f32 %v466, %v474
    %s476 = scalar_lea.vmem [#allocation5], %s472
    %v477 = vld [vmem:[%s476] sm:$0x1]
    %v478 = vadd.f32 %v469, %v477
    %v479 = vmul.f32 %v475, 0.1
    %v480 = vmul.f32 %v478, 0.1
    %s481 = sadd.s32 %s109, 4
    %s482 = smul.u32 %s481, 10
    %s483 = sld [smem:[#allocation3 + %s482]]
    %s484 = sld [smem:[#allocation4 + %s482]]
    %s485 = scalar_lea.vmem [#allocation5], %s483
    %v486 = vld [vmem:[%s485] sm:$0x1]
    %v487 = vadd.f32 %v486, 0.0
    %s488 = scalar_lea.vmem [#allocation5], %s484
    %v489 = vld [vmem:[%s488] sm:$0x1]
    %v490 = vadd.f32 %v489, 0.0
    %s491 = sadd.s32 %s482, 1
    %s492 = sld [smem:[#allocation3 + %s491]]
    %s493 = sld [smem:[#allocation4 + %s491]]
    %s494 = scalar_lea.vmem [#allocation5], %s492
    %v495 = vld [vmem:[%s494] sm:$0x1]
    %v496 = vadd.f32 %v487, %v495
    %s497 = scalar_lea.vmem [#allocation5], %s493
    %v498 = vld [vmem:[%s497] sm:$0x1]
    %v499 = vadd.f32 %v490, %v498
    %s500 = sadd.s32 %s482, 2
    %s501 = sld [smem:[#allocation3 + %s500]]
    %s502 = sld [smem:[#allocation4 + %s500]]
    %s503 = scalar_lea.vmem [#allocation5], %s501
    %v504 = vld [vmem:[%s503] sm:$0x1]
    %v505 = vadd.f32 %v496, %v504
    %s506 = scalar_lea.vmem [#allocation5], %s502
    %v507 = vld [vmem:[%s506] sm:$0x1]
    %v508 = vadd.f32 %v499, %v507
    %s509 = sadd.s32 %s482, 3
    %s510 = sld [smem:[#allocation3 + %s509]]
    %s511 = sld [smem:[#allocation4 + %s509]]
    %s512 = scalar_lea.vmem [#allocation5], %s510
    %v513 = vld [vmem:[%s512] sm:$0x1]
    %v514 = vadd.f32 %v505, %v513
    %s515 = scalar_lea.vmem [#allocation5], %s511
    %v516 = vld [vmem:[%s515] sm:$0x1]
    %v517 = vadd.f32 %v508, %v516
    %s518 = sadd.s32 %s482, 4
    %s519 = sld [smem:[#allocation3 + %s518]]
    %s520 = sld [smem:[#allocation4 + %s518]]
    %s521 = scalar_lea.vmem [#allocation5], %s519
    %v522 = vld [vmem:[%s521] sm:$0x1]
    %v523 = vadd.f32 %v514, %v522
    %s524 = scalar_lea.vmem [#allocation5], %s520
    %v525 = vld [vmem:[%s524] sm:$0x1]
    %v526 = vadd.f32 %v517, %v525
    %s527 = sadd.s32 %s482, 5
    %s528 = sld [smem:[#allocation3 + %s527]]
    %s529 = sld [smem:[#allocation4 + %s527]]
    %s530 = scalar_lea.vmem [#allocation5], %s528
    %v531 = vld [vmem:[%s530] sm:$0x1]
    %v532 = vadd.f32 %v523, %v531
    %s533 = scalar_lea.vmem [#allocation5], %s529
    %v534 = vld [vmem:[%s533] sm:$0x1]
    %v535 = vadd.f32 %v526, %v534
    %s536 = sadd.s32 %s482, 6
    %s537 = sld [smem:[#allocation3 + %s536]]
    %s538 = sld [smem:[#allocation4 + %s536]]
    %s539 = scalar_lea.vmem [#allocation5], %s537
    %v540 = vld [vmem:[%s539] sm:$0x1]
    %v541 = vadd.f32 %v532, %v540
    %s542 = scalar_lea.vmem [#allocation5], %s538
    %v543 = vld [vmem:[%s542] sm:$0x1]
    %v544 = vadd.f32 %v535, %v543
    %s545 = sadd.s32 %s482, 7
    %s546 = sld [smem:[#allocation3 + %s545]]
    %s547 = sld [smem:[#allocation4 + %s545]]
    %s548 = scalar_lea.vmem [#allocation5], %s546
    %v549 = vld [vmem:[%s548] sm:$0x1]
    %v550 = vadd.f32 %v541, %v549
    %s551 = scalar_lea.vmem [#allocation5], %s547
    %v552 = vld [vmem:[%s551] sm:$0x1]
    %v553 = vadd.f32 %v544, %v552
    %s554 = sadd.s32 %s482, 8
    %s555 = sld [smem:[#allocation3 + %s554]]
    %s556 = sld [smem:[#allocation4 + %s554]]
    %s557 = scalar_lea.vmem [#allocation5], %s555
    %v558 = vld [vmem:[%s557] sm:$0x1]
    %v559 = vadd.f32 %v550, %v558
    %s560 = scalar_lea.vmem [#allocation5], %s556
    %v561 = vld [vmem:[%s560] sm:$0x1]
    %v562 = vadd.f32 %v553, %v561
    %s563 = sadd.s32 %s482, 9
    %s564 = sld [smem:[#allocation3 + %s563]]
    %s565 = sld [smem:[#allocation4 + %s563]]
    %s566 = scalar_lea.vmem [#allocation5], %s564
    %v567 = vld [vmem:[%s566] sm:$0x1]
    %v568 = vadd.f32 %v559, %v567
    %s569 = scalar_lea.vmem [#allocation5], %s565
    %v570 = vld [vmem:[%s569] sm:$0x1]
    %v571 = vadd.f32 %v562, %v570
    %v572 = vmul.f32 %v568, 0.1
    %v573 = vmul.f32 %v571, 0.1
    %s574 = sadd.s32 %s109, 5
    %s575 = smul.u32 %s574, 10
    %s576 = sld [smem:[#allocation3 + %s575]]
    %s577 = sld [smem:[#allocation4 + %s575]]
    %s578 = scalar_lea.vmem [#allocation5], %s576
    %v579 = vld [vmem:[%s578] sm:$0x1]
    %v580 = vadd.f32 %v579, 0.0
    %s581 = scalar_lea.vmem [#allocation5], %s577
    %v582 = vld [vmem:[%s581] sm:$0x1]
    %v583 = vadd.f32 %v582, 0.0
    %s584 = sadd.s32 %s575, 1
    %s585 = sld [smem:[#allocation3 + %s584]]
    %s586 = sld [smem:[#allocation4 + %s584]]
    %s587 = scalar_lea.vmem [#allocation5], %s585
    %v588 = vld [vmem:[%s587] sm:$0x1]
    %v589 = vadd.f32 %v580, %v588
    %s590 = scalar_lea.vmem [#allocation5], %s586
    %v591 = vld [vmem:[%s590] sm:$0x1]
    %v592 = vadd.f32 %v583, %v591
    %s593 = sadd.s32 %s575, 2
    %s594 = sld [smem:[#allocation3 + %s593]]
    %s595 = sld [smem:[#allocation4 + %s593]]
    %s596 = scalar_lea.vmem [#allocation5], %s594
    %v597 = vld [vmem:[%s596] sm:$0x1]
    %v598 = vadd.f32 %v589, %v597
    %s599 = scalar_lea.vmem [#allocation5], %s595
    %v600 = vld [vmem:[%s599] sm:$0x1]
    %v601 = vadd.f32 %v592, %v600
    %s602 = sadd.s32 %s575, 3
    %s603 = sld [smem:[#allocation3 + %s602]]
    %s604 = sld [smem:[#allocation4 + %s602]]
    %s605 = scalar_lea.vmem [#allocation5], %s603
    %v606 = vld [vmem:[%s605] sm:$0x1]
    %v607 = vadd.f32 %v598, %v606
    %s608 = scalar_lea.vmem [#allocation5], %s604
    %v609 = vld [vmem:[%s608] sm:$0x1]
    %v610 = vadd.f32 %v601, %v609
    %s611 = sadd.s32 %s575, 4
    %s612 = sld [smem:[#allocation3 + %s611]]
    %s613 = sld [smem:[#allocation4 + %s611]]
    %s614 = scalar_lea.vmem [#allocation5], %s612
    %v615 = vld [vmem:[%s614] sm:$0x1]
    %v616 = vadd.f32 %v607, %v615
    %s617 = scalar_lea.vmem [#allocation5], %s613
    %v618 = vld [vmem:[%s617] sm:$0x1]
    %v619 = vadd.f32 %v610, %v618
    %s620 = sadd.s32 %s575, 5
    %s621 = sld [smem:[#allocation3 + %s620]]
    %s622 = sld [smem:[#allocation4 + %s620]]
    %s623 = scalar_lea.vmem [#allocation5], %s621
    %v624 = vld [vmem:[%s623] sm:$0x1]
    %v625 = vadd.f32 %v616, %v624
    %s626 = scalar_lea.vmem [#allocation5], %s622
    %v627 = vld [vmem:[%s626] sm:$0x1]
    %v628 = vadd.f32 %v619, %v627
    %s629 = sadd.s32 %s575, 6
    %s630 = sld [smem:[#allocation3 + %s629]]
    %s631 = sld [smem:[#allocation4 + %s629]]
    %s632 = scalar_lea.vmem [#allocation5], %s630
    %v633 = vld [vmem:[%s632] sm:$0x1]
    %v634 = vadd.f32 %v625, %v633
    %s635 = scalar_lea.vmem [#allocation5], %s631
    %v636 = vld [vmem:[%s635] sm:$0x1]
    %v637 = vadd.f32 %v628, %v636
    %s638 = sadd.s32 %s575, 7
    %s639 = sld [smem:[#allocation3 + %s638]]
    %s640 = sld [smem:[#allocation4 + %s638]]
    %s641 = scalar_lea.vmem [#allocation5], %s639
    %v642 = vld [vmem:[%s641] sm:$0x1]
    %v643 = vadd.f32 %v634, %v642
    %s644 = scalar_lea.vmem [#allocation5], %s640
    %v645 = vld [vmem:[%s644] sm:$0x1]
    %v646 = vadd.f32 %v637, %v645
    %s647 = sadd.s32 %s575, 8
    %s648 = sld [smem:[#allocation3 + %s647]]
    %s649 = sld [smem:[#allocation4 + %s647]]
    %s650 = scalar_lea.vmem [#allocation5], %s648
    %v651 = vld [vmem:[%s650] sm:$0x1]
    %v652 = vadd.f32 %v643, %v651
    %s653 = scalar_lea.vmem [#allocation5], %s649
    %v654 = vld [vmem:[%s653] sm:$0x1]
    %v655 = vadd.f32 %v646, %v654
    %s656 = sadd.s32 %s575, 9
    %s657 = sld [smem:[#allocation3 + %s656]]
    %s658 = sld [smem:[#allocation4 + %s656]]
    %s659 = scalar_lea.vmem [#allocation5], %s657
    %v660 = vld [vmem:[%s659] sm:$0x1]
    %v661 = vadd.f32 %v652, %v660
    %s662 = scalar_lea.vmem [#allocation5], %s658
    %v663 = vld [vmem:[%s662] sm:$0x1]
    %v664 = vadd.f32 %v655, %v663
    %v665 = vmul.f32 %v661, 0.1
    %v666 = vmul.f32 %v664, 0.1
    %s667 = sadd.s32 %s109, 6
    %s668 = smul.u32 %s667, 10
    %s669 = sld [smem:[#allocation3 + %s668]]
    %s670 = sld [smem:[#allocation4 + %s668]]
    %s671 = scalar_lea.vmem [#allocation5], %s669
    %v672 = vld [vmem:[%s671] sm:$0x1]
    %v673 = vadd.f32 %v672, 0.0
    %s674 = scalar_lea.vmem [#allocation5], %s670
    %v675 = vld [vmem:[%s674] sm:$0x1]
    %v676 = vadd.f32 %v675, 0.0
    %s677 = sadd.s32 %s668, 1
    %s678 = sld [smem:[#allocation3 + %s677]]
    %s679 = sld [smem:[#allocation4 + %s677]]
    %s680 = scalar_lea.vmem [#allocation5], %s678
    %v681 = vld [vmem:[%s680] sm:$0x1]
    %v682 = vadd.f32 %v673, %v681
    %s683 = scalar_lea.vmem [#allocation5], %s679
    %v684 = vld [vmem:[%s683] sm:$0x1]
    %v685 = vadd.f32 %v676, %v684
    %s686 = sadd.s32 %s668, 2
    %s687 = sld [smem:[#allocation3 + %s686]]
    %s688 = sld [smem:[#allocation4 + %s686]]
    %s689 = scalar_lea.vmem [#allocation5], %s687
    %v690 = vld [vmem:[%s689] sm:$0x1]
    %v691 = vadd.f32 %v682, %v690
    %s692 = scalar_lea.vmem [#allocation5], %s688
    %v693 = vld [vmem:[%s692] sm:$0x1]
    %v694 = vadd.f32 %v685, %v693
    %s695 = sadd.s32 %s668, 3
    %s696 = sld [smem:[#allocation3 + %s695]]
    %s697 = sld [smem:[#allocation4 + %s695]]
    %s698 = scalar_lea.vmem [#allocation5], %s696
    %v699 = vld [vmem:[%s698] sm:$0x1]
    %v700 = vadd.f32 %v691, %v699
    %s701 = scalar_lea.vmem [#allocation5], %s697
    %v702 = vld [vmem:[%s701] sm:$0x1]
    %v703 = vadd.f32 %v694, %v702
    %s704 = sadd.s32 %s668, 4
    %s705 = sld [smem:[#allocation3 + %s704]]
    %s706 = sld [smem:[#allocation4 + %s704]]
    %s707 = scalar_lea.vmem [#allocation5], %s705
    %v708 = vld [vmem:[%s707] sm:$0x1]
    %v709 = vadd.f32 %v700, %v708
    %s710 = scalar_lea.vmem [#allocation5], %s706
    %v711 = vld [vmem:[%s710] sm:$0x1]
    %v712 = vadd.f32 %v703, %v711
    %s713 = sadd.s32 %s668, 5
    %s714 = sld [smem:[#allocation3 + %s713]]
    %s715 = sld [smem:[#allocation4 + %s713]]
    %s716 = scalar_lea.vmem [#allocation5], %s714
    %v717 = vld [vmem:[%s716] sm:$0x1]
    %v718 = vadd.f32 %v709, %v717
    %s719 = scalar_lea.vmem [#allocation5], %s715
    %v720 = vld [vmem:[%s719] sm:$0x1]
    %v721 = vadd.f32 %v712, %v720
    %s722 = sadd.s32 %s668, 6
    %s723 = sld [smem:[#allocation3 + %s722]]
    %s724 = sld [smem:[#allocation4 + %s722]]
    %s725 = scalar_lea.vmem [#allocation5], %s723
    %v726 = vld [vmem:[%s725] sm:$0x1]
    %v727 = vadd.f32 %v718, %v726
    %s728 = scalar_lea.vmem [#allocation5], %s724
    %v729 = vld [vmem:[%s728] sm:$0x1]
    %v730 = vadd.f32 %v721, %v729
    %s731 = sadd.s32 %s668, 7
    %s732 = sld [smem:[#allocation3 + %s731]]
    %s733 = sld [smem:[#allocation4 + %s731]]
    %s734 = scalar_lea.vmem [#allocation5], %s732
    %v735 = vld [vmem:[%s734] sm:$0x1]
    %v736 = vadd.f32 %v727, %v735
    %s737 = scalar_lea.vmem [#allocation5], %s733
    %v738 = vld [vmem:[%s737] sm:$0x1]
    %v739 = vadd.f32 %v730, %v738
    %s740 = sadd.s32 %s668, 8
    %s741 = sld [smem:[#allocation3 + %s740]]
    %s742 = sld [smem:[#allocation4 + %s740]]
    %s743 = scalar_lea.vmem [#allocation5], %s741
    %v744 = vld [vmem:[%s743] sm:$0x1]
    %v745 = vadd.f32 %v736, %v744
    %s746 = scalar_lea.vmem [#allocation5], %s742
    %v747 = vld [vmem:[%s746] sm:$0x1]
    %v748 = vadd.f32 %v739, %v747
    %s749 = sadd.s32 %s668, 9
    %s750 = sld [smem:[#allocation3 + %s749]]
    %s751 = sld [smem:[#allocation4 + %s749]]
    %s752 = scalar_lea.vmem [#allocation5], %s750
    %v753 = vld [vmem:[%s752] sm:$0x1]
    %v754 = vadd.f32 %v745, %v753
    %s755 = scalar_lea.vmem [#allocation5], %s751
    %v756 = vld [vmem:[%s755] sm:$0x1]
    %v757 = vadd.f32 %v748, %v756
    %v758 = vmul.f32 %v754, 0.1
    %v759 = vmul.f32 %v757, 0.1
    %s760 = sadd.s32 %s109, 7
    %s761 = smul.u32 %s760, 10
    %s762 = sld [smem:[#allocation3 + %s761]]
    %s763 = sld [smem:[#allocation4 + %s761]]
    %s764 = scalar_lea.vmem [#allocation5], %s762
    %v765 = vld [vmem:[%s764] sm:$0x1]
    %v766 = vadd.f32 %v765, 0.0
    %s767 = scalar_lea.vmem [#allocation5], %s763
    %v768 = vld [vmem:[%s767] sm:$0x1]
    %v769 = vadd.f32 %v768, 0.0
    %s770 = sadd.s32 %s761, 1
    %s771 = sld [smem:[#allocation3 + %s770]]
    %s772 = sld [smem:[#allocation4 + %s770]]
    %s773 = scalar_lea.vmem [#allocation5], %s771
    %v774 = vld [vmem:[%s773] sm:$0x1]
    %v775 = vadd.f32 %v766, %v774
    %s776 = scalar_lea.vmem [#allocation5], %s772
    %v777 = vld [vmem:[%s776] sm:$0x1]
    %v778 = vadd.f32 %v769, %v777
    %s779 = sadd.s32 %s761, 2
    %s780 = sld [smem:[#allocation3 + %s779]]
    %s781 = sld [smem:[#allocation4 + %s779]]
    %s782 = scalar_lea.vmem [#allocation5], %s780
    %v783 = vld [vmem:[%s782] sm:$0x1]
    %v784 = vadd.f32 %v775, %v783
    %s785 = scalar_lea.vmem [#allocation5], %s781
    %v786 = vld [vmem:[%s785] sm:$0x1]
    %v787 = vadd.f32 %v778, %v786
    %s788 = sadd.s32 %s761, 3
    %s789 = sld [smem:[#allocation3 + %s788]]
    %s790 = sld [smem:[#allocation4 + %s788]]
    %s791 = scalar_lea.vmem [#allocation5], %s789
    %v792 = vld [vmem:[%s791] sm:$0x1]
    %v793 = vadd.f32 %v784, %v792
    %s794 = scalar_lea.vmem [#allocation5], %s790
    %v795 = vld [vmem:[%s794] sm:$0x1]
    %v796 = vadd.f32 %v787, %v795
    %s797 = sadd.s32 %s761, 4
    %s798 = sld [smem:[#allocation3 + %s797]]
    %s799 = sld [smem:[#allocation4 + %s797]]
    %s800 = scalar_lea.vmem [#allocation5], %s798
    %v801 = vld [vmem:[%s800] sm:$0x1]
    %v802 = vadd.f32 %v793, %v801
    %s803 = scalar_lea.vmem [#allocation5], %s799
    %v804 = vld [vmem:[%s803] sm:$0x1]
    %v805 = vadd.f32 %v796, %v804
    %s806 = sadd.s32 %s761, 5
    %s807 = sld [smem:[#allocation3 + %s806]]
    %s808 = sld [smem:[#allocation4 + %s806]]
    %s809 = scalar_lea.vmem [#allocation5], %s807
    %v810 = vld [vmem:[%s809] sm:$0x1]
    %v811 = vadd.f32 %v802, %v810
    %s812 = scalar_lea.vmem [#allocation5], %s808
    %v813 = vld [vmem:[%s812] sm:$0x1]
    %v814 = vadd.f32 %v805, %v813
    %s815 = sadd.s32 %s761, 6
    %s816 = sld [smem:[#allocation3 + %s815]]
    %s817 = sld [smem:[#allocation4 + %s815]]
    %s818 = scalar_lea.vmem [#allocation5], %s816
    %v819 = vld [vmem:[%s818] sm:$0x1]
    %v820 = vadd.f32 %v811, %v819
    %s821 = scalar_lea.vmem [#allocation5], %s817
    %v822 = vld [vmem:[%s821] sm:$0x1]
    %v823 = vadd.f32 %v814, %v822
    %s824 = sadd.s32 %s761, 7
    %s825 = sld [smem:[#allocation3 + %s824]]
    %s826 = sld [smem:[#allocation4 + %s824]]
    %s827 = scalar_lea.vmem [#allocation5], %s825
    %v828 = vld [vmem:[%s827] sm:$0x1]
    %v829 = vadd.f32 %v820, %v828
    %s830 = scalar_lea.vmem [#allocation5], %s826
    %v831 = vld [vmem:[%s830] sm:$0x1]
    %v832 = vadd.f32 %v823, %v831
    %s833 = sadd.s32 %s761, 8
    %s834 = sld [smem:[#allocation3 + %s833]]
    %s835 = sld [smem:[#allocation4 + %s833]]
    %s836 = scalar_lea.vmem [#allocation5], %s834
    %v837 = vld [vmem:[%s836] sm:$0x1]
    %v838 = vadd.f32 %v829, %v837
    %s839 = scalar_lea.vmem [#allocation5], %s835
    %v840 = vld [vmem:[%s839] sm:$0x1]
    %v841 = vadd.f32 %v832, %v840
    %s842 = sadd.s32 %s761, 9
    %s843 = sld [smem:[#allocation3 + %s842]]
    %s844 = sld [smem:[#allocation4 + %s842]]
    %s845 = scalar_lea.vmem [#allocation5], %s843
    %v846 = vld [vmem:[%s845] sm:$0x1]
    %v847 = vadd.f32 %v838, %v846
    %s848 = scalar_lea.vmem [#allocation5], %s844
    %v849 = vld [vmem:[%s848] sm:$0x1]
    %v850 = vadd.f32 %v841, %v849
    %v851 = vmul.f32 %v847, 0.1
    %v852 = vmul.f32 %v850, 0.1
    %v854 = vrot.slane %v293, 7
    %v857 = vrot.slane %v386, 6
    %v860 = vrot.slane %v479, 5
    %v863 = vrot.slane %v572, 4
    %v866 = vrot.slane %v665, 3
    %v869 = vrot.slane %v758, 2
    %v872 = vrot.slane %v851, 1
    %vm874 = vcmask 1040384
    %v875 = vsel %vm874, %v200, %v854
    %vm876 = vcmask 1041408
    %v877 = vsel %vm876, %v875, %v857
    %vm878 = vcmask 1042432
    %v879 = vsel %vm878, %v877, %v860
    %vm880 = vcmask 1043456
    %v881 = vsel %vm880, %v879, %v863
    %vm882 = vcmask 1044480
    %v883 = vsel %vm882, %v881, %v866
    %vm884 = vcmask 1045504
    %v885 = vsel %vm884, %v883, %v869
    %vm886 = vcmask 1046528
    %v887 = vsel %vm886, %v885, %v872
    %v889 = vrot.slane %v294, 7
    %v892 = vrot.slane %v387, 6
    %v895 = vrot.slane %v480, 5
    %v898 = vrot.slane %v573, 4
    %v901 = vrot.slane %v666, 3
    %v904 = vrot.slane %v759, 2
    %v907 = vrot.slane %v852, 1
    %v909 = vsel %vm874, %v201, %v889
    %v910 = vsel %vm876, %v909, %v892
    %v911 = vsel %vm878, %v910, %v895
    %v912 = vsel %vm880, %v911, %v898
    %v913 = vsel %vm882, %v912, %v901
    %v914 = vsel %vm884, %v913, %v904
    %v915 = vsel %vm886, %v914, %v907
    %v916 = vpack.c.bf16 %v887, %v887
    %v917 = vld [vmem:[#allocation8] sm:$0xf]
    %v918 = vld [vmem:[#allocation8 + $0x4] sm:$0xf]
    %v919 = vld [vmem:[#allocation8 + $0x8] sm:$0xf]
    %v920 = vld [vmem:[#allocation8 + $0xc] sm:$0xf]
    %v921 = vld [vmem:[#allocation8 + $0x10] sm:$0xf]
    %v922 = vld [vmem:[#allocation8 + $0x14] sm:$0xf]
    %v923 = vld [vmem:[#allocation8 + $0x18] sm:$0xf]
    %v924 = vld [vmem:[#allocation8 + $0x1c] sm:$0xf]
    %v925 = vld [vmem:[#allocation8 + $0x20] sm:$0xf]
    %v926 = vld [vmem:[#allocation8 + $0x24] sm:$0xf]
    %v927 = vld [vmem:[#allocation8 + $0x28] sm:$0xf]
    %v928 = vld [vmem:[#allocation8 + $0x2c] sm:$0xf]
    %v929 = vld [vmem:[#allocation8 + $0x30] sm:$0xf]
    %v930 = vld [vmem:[#allocation8 + $0x34] sm:$0xf]
    %v931 = vld [vmem:[#allocation8 + $0x38] sm:$0xf]
    %v932 = vld [vmem:[#allocation8 + $0x3c] sm:$0xf]
    %v933 = vpack.c.bf16 %v915, %v915
    %v934 = vld [vmem:[#allocation10] sm:$0xf]
    %v935 = vld [vmem:[#allocation10 + $0x4] sm:$0xf]
    %v936 = vld [vmem:[#allocation10 + $0x8] sm:$0xf]
    %v937 = vld [vmem:[#allocation10 + $0xc] sm:$0xf]
    %v938 = vld [vmem:[#allocation10 + $0x10] sm:$0xf]
    %v939 = vld [vmem:[#allocation10 + $0x14] sm:$0xf]
    %v940 = vld [vmem:[#allocation10 + $0x18] sm:$0xf]
    %v941 = vld [vmem:[#allocation10 + $0x1c] sm:$0xf]
    %v942 = vld [vmem:[#allocation10 + $0x20] sm:$0xf]
    %v943 = vld [vmem:[#allocation10 + $0x24] sm:$0xf]
    %v944 = vld [vmem:[#allocation10 + $0x28] sm:$0xf]
    %v945 = vld [vmem:[#allocation10 + $0x2c] sm:$0xf]
    %v946 = vld [vmem:[#allocation10 + $0x30] sm:$0xf]
    %v947 = vld [vmem:[#allocation10 + $0x34] sm:$0xf]
    %v948 = vld [vmem:[#allocation10 + $0x38] sm:$0xf]
    %v949 = vld [vmem:[#allocation10 + $0x3c] sm:$0xf]
    %v966 = vunpack.c.l.b16 %v934
    %v967 = vunpack.c.l.b16 %v935
    %v968 = vunpack.c.l.b16 %v936
    %v969 = vunpack.c.l.b16 %v937
    %v970 = vunpack.c.l.b16 %v938
    %v971 = vunpack.c.l.b16 %v939
    %v972 = vunpack.c.l.b16 %v940
    %v973 = vunpack.c.l.b16 %v941
    %v974 = vunpack.c.l.b16 %v942
    %v975 = vunpack.c.l.b16 %v943
    %v976 = vunpack.c.l.b16 %v944
    %v977 = vunpack.c.l.b16 %v945
    %v978 = vunpack.c.l.b16 %v946
    %v979 = vunpack.c.l.b16 %v947
    %v980 = vunpack.c.l.b16 %v948
    %v981 = vunpack.c.l.b16 %v949
    %v982 = vpack.c.b16 %v967, %v966
    %v983 = vpack.c.b16 %v969, %v968
    %v984 = vpack.c.b16 %v971, %v970
    %v985 = vpack.c.b16 %v973, %v972
    %v986 = vpack.c.b16 %v975, %v974
    %v987 = vpack.c.b16 %v977, %v976
    %v988 = vpack.c.b16 %v979, %v978
    %v989 = vpack.c.b16 %v981, %v980
    %998 = vmatprep.subr.bf16.mxu0 0
    %999 = vmatpush1.bf16.msra.mxu0 %v982
    %1000 = vmatprep.subr.bf16.mxu0 0
    %1001 = vmatpush1.bf16.msra.mxu0 %v983
    %1002 = vmatprep.subr.bf16.mxu0 0
    %1003 = vmatpush1.bf16.msra.mxu0 %v984
    %1004 = vmatprep.subr.bf16.mxu0 0
    %1005 = vmatpush1.bf16.msra.mxu0 %v985
    %1006 = vmatprep.subr.bf16.mxu0 0
    %1007 = vmatpush1.bf16.msra.mxu0 %v986
    %1008 = vmatprep.subr.bf16.mxu0 0
    %1009 = vmatpush1.bf16.msra.mxu0 %v987
    %1010 = vmatprep.subr.bf16.mxu0 0
    %1011 = vmatpush1.bf16.msra.mxu0 %v988
    %1012 = vmatprep.subr.bf16.mxu0 0
    %1013 = vmatpush1.bf16.msra.mxu0 %v989
    %1014 = vmatprep.subr.bf16.mxu0 0
    %1015 = vmatpush1.bf16.msra.mxu0 0
    %1016 = vmatprep.subr.bf16.mxu0 0
    %1017 = vmatpush1.bf16.msra.mxu0 0
    %1018 = vmatprep.subr.bf16.mxu0 0
    %1019 = vmatpush1.bf16.msra.mxu0 0
    %1020 = vmatprep.subr.bf16.mxu0 0
    %1021 = vmatpush1.bf16.msra.mxu0 0
    %1022 = vmatprep.subr.bf16.mxu0 0
    %1023 = vmatpush1.bf16.msra.mxu0 0
    %1024 = vmatprep.subr.bf16.mxu0 0
    %1025 = vmatpush1.bf16.msra.mxu0 0
    %1026 = vmatprep.subr.bf16.mxu0 0
    %1027 = vmatpush1.bf16.msra.mxu0 0
    %1028 = vmatprep.subr.bf16.mxu0 0
    %1029 = vmatpush1.bf16.msra.mxu0 0
    %1030 = vmatprep.mubr.bf16.mxu0 0
    %1031 = vmatmul.mubr.bf16.gmra.mrb[0].mxu0 %v933
    %v1032 = vpop.f32.mrb[0].mxu0
    %v1033 = vadd.f32 0.0, %v1032
    %v1034 = vpop.f32.mrb[0].mxu0
    %v1035 = vpop.f32.mrb[0].mxu0
    %v1036 = vpop.f32.mrb[0].mxu0
    %1037 = vdwg.mxu0
    %v1054 = vunpack.c.l.b16 %v917
    %v1055 = vunpack.c.l.b16 %v918
    %v1056 = vunpack.c.l.b16 %v919
    %v1057 = vunpack.c.l.b16 %v920
    %v1058 = vunpack.c.l.b16 %v921
    %v1059 = vunpack.c.l.b16 %v922
    %v1060 = vunpack.c.l.b16 %v923
    %v1061 = vunpack.c.l.b16 %v924
    %v1062 = vunpack.c.l.b16 %v925
    %v1063 = vunpack.c.l.b16 %v926
    %v1064 = vunpack.c.l.b16 %v927
    %v1065 = vunpack.c.l.b16 %v928
    %v1066 = vunpack.c.l.b16 %v929
    %v1067 = vunpack.c.l.b16 %v930
    %v1068 = vunpack.c.l.b16 %v931
    %v1069 = vunpack.c.l.b16 %v932
    %v1070 = vpack.c.b16 %v1055, %v1054
    %v1071 = vpack.c.b16 %v1057, %v1056
    %v1072 = vpack.c.b16 %v1059, %v1058
    %v1073 = vpack.c.b16 %v1061, %v1060
    %v1074 = vpack.c.b16 %v1063, %v1062
    %v1075 = vpack.c.b16 %v1065, %v1064
    %v1076 = vpack.c.b16 %v1067, %v1066
    %v1077 = vpack.c.b16 %v1069, %v1068
    %1086 = vmatprep.subr.bf16.mxu0 0
    %1087 = vmatpush1.bf16.msra.mxu0 %v1070
    %1088 = vmatprep.subr.bf16.mxu0 0
    %1089 = vmatpush1.bf16.msra.mxu0 %v1071
    %1090 = vmatprep.subr.bf16.mxu0 0
    %1091 = vmatpush1.bf16.msra.mxu0 %v1072
    %1092 = vmatprep.subr.bf16.mxu0 0
    %1093 = vmatpush1.bf16.msra.mxu0 %v1073
    %1094 = vmatprep.subr.bf16.mxu0 0
    %1095 = vmatpush1.bf16.msra.mxu0 %v1074
    %1096 = vmatprep.subr.bf16.mxu0 0
    %1097 = vmatpush1.bf16.msra.mxu0 %v1075
    %1098 = vmatprep.subr.bf16.mxu0 0
    %1099 = vmatpush1.bf16.msra.mxu0 %v1076
    %1100 = vmatprep.subr.bf16.mxu0 0
    %1101 = vmatpush1.bf16.msra.mxu0 %v1077
    %1102 = vmatprep.subr.bf16.mxu0 0
    %1103 = vmatpush1.bf16.msra.mxu0 0
    %1104 = vmatprep.subr.bf16.mxu0 0
    %1105 = vmatpush1.bf16.msra.mxu0 0
    %1106 = vmatprep.subr.bf16.mxu0 0
    %1107 = vmatpush1.bf16.msra.mxu0 0
    %1108 = vmatprep.subr.bf16.mxu0 0
    %1109 = vmatpush1.bf16.msra.mxu0 0
    %1110 = vmatprep.subr.bf16.mxu0 0
    %1111 = vmatpush1.bf16.msra.mxu0 0
    %1112 = vmatprep.subr.bf16.mxu0 0
    %1113 = vmatpush1.bf16.msra.mxu0 0
    %1114 = vmatprep.subr.bf16.mxu0 0
    %1115 = vmatpush1.bf16.msra.mxu0 0
    %1116 = vmatprep.subr.bf16.mxu0 0
    %1117 = vmatpush1.bf16.msra.mxu0 0
    %1118 = vmatprep.mubr.bf16.mxu0 0
    %1119 = vmatmul.mubr.bf16.gmra.mrb[0].mxu0 %v916
    %v1120 = vpop.f32.mrb[0].mxu0
    %v1121 = vadd.f32 %v1033, %v1120
    %v1122 = vpop.f32.mrb[0].mxu0
    %v1123 = vpop.f32.mrb[0].mxu0
    %v1124 = vpop.f32.mrb[0].mxu0
    %1125 = vdwg.mxu0
    %v1126 = vld [vmem:[%s5] sm:$0x1]
    %v1128 = vlaneseq
    %v1129 = vshrl.u32 %v1128, 7
    %v1130 = vsub.s32 0, %v1129
    %v1131 = vrot.slane %v1126, %v1130
    %v1133 = vadd.f32 %v1121, %v1131
    %v1134 = vmax.f32 %v1133, 0.0
    %v1135 = vpack.c.bf16 %v1134, %v1134
    %v1136 = vld [vmem:[#allocation11] sm:$0xf]
    %v1137 = vld [vmem:[#allocation11 + $0x4] sm:$0xf]
    %v1138 = vld [vmem:[#allocation11 + $0x8] sm:$0xf]
    %v1139 = vld [vmem:[#allocation11 + $0xc] sm:$0xf]
    %v1140 = vld [vmem:[#allocation11 + $0x10] sm:$0xf]
    %v1141 = vld [vmem:[#allocation11 + $0x14] sm:$0xf]
    %v1142 = vld [vmem:[#allocation11 + $0x18] sm:$0xf]
    %v1143 = vld [vmem:[#allocation11 + $0x1c] sm:$0xf]
    %v1144 = vld [vmem:[#allocation11 + $0x20] sm:$0xf]
    %v1145 = vld [vmem:[#allocation11 + $0x24] sm:$0xf]
    %v1146 = vld [vmem:[#allocation11 + $0x28] sm:$0xf]
    %v1147 = vld [vmem:[#allocation11 + $0x2c] sm:$0xf]
    %v1148 = vld [vmem:[#allocation11 + $0x30] sm:$0xf]
    %v1149 = vld [vmem:[#allocation11 + $0x34] sm:$0xf]
    %v1150 = vld [vmem:[#allocation11 + $0x38] sm:$0xf]
    %v1151 = vld [vmem:[#allocation11 + $0x3c] sm:$0xf]
    %v1152 = vld [vmem:[%s7] sm:$0x1]
    %v1154 = vlaneseq
    %v1155 = vshrl.u32 %v1154, 7
    %v1156 = vsub.s32 0, %v1155
    %v1157 = vrot.slane %v1152, %v1156
    %v1175 = vunpack.c.l.b16 %v1136
    %v1176 = vunpack.c.l.b16 %v1137
    %v1177 = vunpack.c.l.b16 %v1138
    %v1178 = vunpack.c.l.b16 %v1139
    %v1179 = vunpack.c.l.b16 %v1140
    %v1180 = vunpack.c.l.b16 %v1141
    %v1181 = vunpack.c.l.b16 %v1142
    %v1182 = vunpack.c.l.b16 %v1143
    %v1183 = vunpack.c.l.b16 %v1144
    %v1184 = vunpack.c.l.b16 %v1145
    %v1185 = vunpack.c.l.b16 %v1146
    %v1186 = vunpack.c.l.b16 %v1147
    %v1187 = vunpack.c.l.b16 %v1148
    %v1188 = vunpack.c.l.b16 %v1149
    %v1189 = vunpack.c.l.b16 %v1150
    %v1190 = vunpack.c.l.b16 %v1151
    %v1191 = vpack.c.b16 %v1176, %v1175
    %v1192 = vpack.c.b16 %v1178, %v1177
    %v1193 = vpack.c.b16 %v1180, %v1179
    %v1194 = vpack.c.b16 %v1182, %v1181
    %v1195 = vpack.c.b16 %v1184, %v1183
    %v1196 = vpack.c.b16 %v1186, %v1185
    %v1197 = vpack.c.b16 %v1188, %v1187
    %v1198 = vpack.c.b16 %v1190, %v1189
    %1207 = vmatprep.subr.bf16.mxu0 0
    %1208 = vmatpush1.bf16.msra.mxu0 %v1191
    %1209 = vmatprep.subr.bf16.mxu0 0
    %1210 = vmatpush1.bf16.msra.mxu0 %v1192
    %1211 = vmatprep.subr.bf16.mxu0 0
    %1212 = vmatpush1.bf16.msra.mxu0 %v1193
    %1213 = vmatprep.subr.bf16.mxu0 0
    %1214 = vmatpush1.bf16.msra.mxu0 %v1194
    %1215 = vmatprep.subr.bf16.mxu0 0
    %1216 = vmatpush1.bf16.msra.mxu0 %v1195
    %1217 = vmatprep.subr.bf16.mxu0 0
    %1218 = vmatpush1.bf16.msra.mxu0 %v1196
    %1219 = vmatprep.subr.bf16.mxu0 0
    %1220 = vmatpush1.bf16.msra.mxu0 %v1197
    %1221 = vmatprep.subr.bf16.mxu0 0
    %1222 = vmatpush1.bf16.msra.mxu0 %v1198
    %1223 = vmatprep.subr.bf16.mxu0 0
    %1224 = vmatpush1.bf16.msra.mxu0 0
    %1225 = vmatprep.subr.bf16.mxu0 0
    %1226 = vmatpush1.bf16.msra.mxu0 0
    %1227 = vmatprep.subr.bf16.mxu0 0
    %1228 = vmatpush1.bf16.msra.mxu0 0
    %1229 = vmatprep.subr.bf16.mxu0 0
    %1230 = vmatpush1.bf16.msra.mxu0 0
    %1231 = vmatprep.subr.bf16.mxu0 0
    %1232 = vmatpush1.bf16.msra.mxu0 0
    %1233 = vmatprep.subr.bf16.mxu0 0
    %1234 = vmatpush1.bf16.msra.mxu0 0
    %1235 = vmatprep.subr.bf16.mxu0 0
    %1236 = vmatpush1.bf16.msra.mxu0 0
    %1237 = vmatprep.subr.bf16.mxu0 0
    %1238 = vmatpush1.bf16.msra.mxu0 0
    %1239 = vmatprep.mubr.bf16.mxu0 0
    %1240 = vmatmul.mubr.bf16.gmra.mrb[0].mxu0 %v1135
    %v1241 = vpop.f32.mrb[0].mxu0
    %v1242 = vadd.f32 %v1157, %v1241
    %v1243 = vpop.f32.mrb[0].mxu0
    %v1244 = vpop.f32.mrb[0].mxu0
    %v1245 = vpop.f32.mrb[0].mxu0
    %1246 = vdwg.mxu0
    %v1247 = vmax.f32 %v1242, 0.0
    %v1248 = vpack.c.bf16 %v1247, %v1247
    %v1249 = vld [vmem:[#allocation13] sm:$0xf]
    %v1250 = vld [vmem:[#allocation13 + $0x4] sm:$0xf]
    %v1251 = vld [vmem:[#allocation13 + $0x8] sm:$0xf]
    %v1252 = vld [vmem:[#allocation13 + $0xc] sm:$0xf]
    %v1253 = vld [vmem:[#allocation13 + $0x10] sm:$0xf]
    %v1254 = vld [vmem:[#allocation13 + $0x14] sm:$0xf]
    %v1255 = vld [vmem:[#allocation13 + $0x18] sm:$0xf]
    %v1256 = vld [vmem:[#allocation13 + $0x1c] sm:$0xf]
    %v1257 = vld [vmem:[#allocation13 + $0x20] sm:$0xf]
    %v1258 = vld [vmem:[#allocation13 + $0x24] sm:$0xf]
    %v1259 = vld [vmem:[#allocation13 + $0x28] sm:$0xf]
    %v1260 = vld [vmem:[#allocation13 + $0x2c] sm:$0xf]
    %v1261 = vld [vmem:[#allocation13 + $0x30] sm:$0xf]
    %v1262 = vld [vmem:[#allocation13 + $0x34] sm:$0xf]
    %v1263 = vld [vmem:[#allocation13 + $0x38] sm:$0xf]
    %v1264 = vld [vmem:[#allocation13 + $0x3c] sm:$0xf]
    %v1265 = vld [vmem:[%s9] sm:$0x1]
    %v1267 = vlaneseq
    %v1268 = vshrl.u32 %v1267, 7
    %v1269 = vsub.s32 0, %v1268
    %v1270 = vrot.slane %v1265, %v1269
    %v1288 = vunpack.c.l.b16 %v1249
    %v1289 = vunpack.c.l.b16 %v1250
    %v1290 = vunpack.c.l.b16 %v1251
    %v1291 = vunpack.c.l.b16 %v1252
    %v1292 = vunpack.c.l.b16 %v1253
    %v1293 = vunpack.c.l.b16 %v1254
    %v1294 = vunpack.c.l.b16 %v1255
    %v1295 = vunpack.c.l.b16 %v1256
    %v1296 = vunpack.c.l.b16 %v1257
    %v1297 = vunpack.c.l.b16 %v1258
    %v1298 = vunpack.c.l.b16 %v1259
    %v1299 = vunpack.c.l.b16 %v1260
    %v1300 = vunpack.c.l.b16 %v1261
    %v1301 = vunpack.c.l.b16 %v1262
    %v1302 = vunpack.c.l.b16 %v1263
    %v1303 = vunpack.c.l.b16 %v1264
    %v1304 = vpack.c.b16 %v1289, %v1288
    %v1305 = vpack.c.b16 %v1291, %v1290
    %v1306 = vpack.c.b16 %v1293, %v1292
    %v1307 = vpack.c.b16 %v1295, %v1294
    %v1308 = vpack.c.b16 %v1297, %v1296
    %v1309 = vpack.c.b16 %v1299, %v1298
    %v1310 = vpack.c.b16 %v1301, %v1300
    %v1311 = vpack.c.b16 %v1303, %v1302
    %1320 = vmatprep.subr.bf16.mxu0 0
    %1321 = vmatpush1.bf16.msra.mxu0 %v1304
    %1322 = vmatprep.subr.bf16.mxu0 0
    %1323 = vmatpush1.bf16.msra.mxu0 %v1305
    %1324 = vmatprep.subr.bf16.mxu0 0
    %1325 = vmatpush1.bf16.msra.mxu0 %v1306
    %1326 = vmatprep.subr.bf16.mxu0 0
    %1327 = vmatpush1.bf16.msra.mxu0 %v1307
    %1328 = vmatprep.subr.bf16.mxu0 0
    %1329 = vmatpush1.bf16.msra.mxu0 %v1308
    %1330 = vmatprep.subr.bf16.mxu0 0
    %1331 = vmatpush1.bf16.msra.mxu0 %v1309
    %1332 = vmatprep.subr.bf16.mxu0 0
    %1333 = vmatpush1.bf16.msra.mxu0 %v1310
    %1334 = vmatprep.subr.bf16.mxu0 0
    %1335 = vmatpush1.bf16.msra.mxu0 %v1311
    %1336 = vmatprep.subr.bf16.mxu0 0
    %1337 = vmatpush1.bf16.msra.mxu0 0
    %1338 = vmatprep.subr.bf16.mxu0 0
    %1339 = vmatpush1.bf16.msra.mxu0 0
    %1340 = vmatprep.subr.bf16.mxu0 0
    %1341 = vmatpush1.bf16.msra.mxu0 0
    %1342 = vmatprep.subr.bf16.mxu0 0
    %1343 = vmatpush1.bf16.msra.mxu0 0
    %1344 = vmatprep.subr.bf16.mxu0 0
    %1345 = vmatpush1.bf16.msra.mxu0 0
    %1346 = vmatprep.subr.bf16.mxu0 0
    %1347 = vmatpush1.bf16.msra.mxu0 0
    %1348 = vmatprep.subr.bf16.mxu0 0
    %1349 = vmatpush1.bf16.msra.mxu0 0
    %1350 = vmatprep.subr.bf16.mxu0 0
    %1351 = vmatpush1.bf16.msra.mxu0 0
    %1352 = vmatprep.mubr.bf16.mxu0 0
    %1353 = vmatmul.mubr.bf16.gmra.mrb[0].mxu0 %v1248
    %v1354 = vpop.f32.mrb[0].mxu0
    %v1355 = vadd.f32 %v1270, %v1354
    %v1356 = vpop.f32.mrb[0].mxu0
    %v1357 = vpop.f32.mrb[0].mxu0
    %v1358 = vpop.f32.mrb[0].mxu0
    %1359 = vdwg.mxu0
    %v1360 = vlaneseq
    %v1361 = vand.u32 %v1360, 127
    %vm1362 = vcmp.lt.s32.totalorder %v1361, 4
    %v1363 = vsel %vm1362, %v1355, -inf
    %1364 = vmax.xlane.f32.xlu0 %v1363
    %v1365 = vpop.xlane.xlu0 %1364
    %v1366 = vsub.f32 %v1363, %v1365
    %v1367 = vmul.f32 %v1366, 1.442695
    %v1368 = vpow.pop %v1367
    %1369 = vadd.xlane.f32.xlu0 %v1368
    %v1370 = vpop.xlane.xlu0 %1369
    %v1371 = vlog2.pop %v1370
    %v1372 = vmul.f32 %v1371, 0.6931472
    %v1373 = vadd.f32 %v1365, %v1372
    %v1374 = vsub.f32 %v1363, %v1373
    %1375 = vst [vmem:[#allocation14] sm:$0xff] %v1374
    // Predicated region
    $region54: #{tpu_custom_call.1} parent=1 // pred_check
      _
    $region55: #{tpu_custom_call.1} parent=1 // pred_check_branch
      %1377 = sbr.rel (0) target = $region57
    $region56: #{tpu_custom_call.1} parent=1 // pred_region
      %s1379 = ssub.s32 128, 128
      %1380 = vsyncadd [#allocation7], %s1379
      %s1382 = sshll.u32 [#allocation14], 4
      %s1383 = int_to_ptr.vmem [resolvable:$true] %s1382
      %1385 = dma.vmem_to_hbm [thread:$0]  %s1383, 128, %s10, [#allocation7]
    $region57: #{tpu_custom_call.1} parent=1 // pred_fallthru
      _
    // Predicated region
    $region58: #{tpu_custom_call.1} parent=1 // pred_check
      _
    $region59: #{tpu_custom_call.1} parent=1 // pred_check_branch
      %1387 = sbr.rel (0) target = $region61
    $region60: #{tpu_custom_call.1} parent=1 // pred_region
      %1388 = dma.done [#allocation7], 128
    $region61: #{tpu_custom_call.1} parent=1 // pred_fallthru
      _
    %1389 = vsyncpa [#allocation6], 1
    %1390 = vsyncpa [#allocation9], 1
    %1391 = vsyncpa [#allocation12], 1
    %1392 = vsyncpa [#allocation7], 1

</llo_original>
